<compile_context>
chip_gen: v6e
topology: v6e:2x2x1
jax: 0.10.0
libtpu: 0.0.40
codegen_flags: <defaults>
</compile_context>

<pallas_src>
import functools

import jax
import jax.numpy as jnp
from jax import lax
from jax.experimental import pallas as pl
from jax.experimental.pallas import tpu as pltpu

_EPS = 1e-5  # PyTorch InstanceNorm2d default eps


def pack_torch_conv3x3_weight(w_oihw):
    """PyTorch conv weight (Cout, Cin, 3, 3) -> fused (3, 3*Cin, Cout) bf16.

    The per-dy matrix's contraction axis is (dx, Cin) with dx major, matching
    the im2col patch built inside the kernel."""
    w = jnp.transpose(w_oihw, (2, 3, 1, 0))                # (kh, kw, Cin, Cout)
    kh, kw, cin, cout = w.shape
    return w.reshape(kh, kw * cin, cout).astype(jnp.bfloat16)


def _reflect_pad_hw(img):
    """(H, W, C) -> (H+2, W+2, C) with PyTorch ReflectionPad2d(1) semantics."""
    top = img[1:2]                     # row 1
    bot = img[-2:-1]                   # row H-2
    x = jnp.concatenate([top, img, bot], axis=0)           # (H+2, W, C)
    left = x[:, 1:2, :]                # col 1
    right = x[:, -2:-1, :]             # col W-2
    return jnp.concatenate([left, x, right], axis=1)       # (H+2, W+2, C)


def _build_dx_patch(xpad, patch_ref, W):
    """Build the dx im2col concat ONCE per conv:
    patch[r, x, dx*C + c] = xpad[r, x + dx, c]   (shape (H+2, W, 3C), bf16)."""
    patch_ref[...] = jnp.concatenate(
        [xpad[:, 0:W, :], xpad[:, 1:W + 1, :], xpad[:, 2:W + 2, :]], axis=-1)


def _conv3x3_chunked(patch_ref, w3, acc_ref, H, W, C, CH):
    """3x3 conv as 3 K=3C bf16 MXU matmuls per row-chunk, f32 accumulation.

    Writes the (H*W, C) f32 conv output into acc_ref and returns per-channel
    (sum, sumsq) accumulated per chunk while the result is hot in vregs."""
    n_chunks = H // CH
    m_rows = CH * W

    def body(ci, carry):
        s, ss = carry
        r0 = pl.multiple_of(ci * CH, CH)
        m0 = pl.multiple_of(ci * m_rows, m_rows)
        acc = jnp.zeros((m_rows, C), jnp.float32)
        for dy in range(3):                      # static: 3 matmuls per chunk
            p = patch_ref[pl.ds(r0 + dy, CH)].reshape(m_rows, 3 * C)
            acc = acc + jnp.dot(p, w3[dy], preferred_element_type=jnp.float32)
        s = s + jnp.sum(acc, axis=0, keepdims=True)
        ss = ss + jnp.sum(acc * acc, axis=0, keepdims=True)
        acc_ref[pl.ds(m0, m_rows)] = acc
        return s, ss

    zero = jnp.zeros((1, C), jnp.float32)
    return lax.fori_loop(0, n_chunks, body, (zero, zero),
                         unroll=n_chunks <= 8)


def _instance_norm(acc_ref, s, ss, H, W, relu):
    """Normalize the full (H*W, C) f32 conv output using folded statistics."""
    inv_hw = 1.0 / float(H * W)
    mean = s * inv_hw
    var = ss * inv_hw - mean * mean              # biased variance, no affine
    inv_std = lax.rsqrt(var + _EPS)
    y = (acc_ref[...] - mean) * inv_std
    if relu:
        y = jnp.maximum(y, 0.0)
    return y                                     # (H*W, C) f32


def _resnet_block_kernel(x_ref, w1_ref, w2_ref, out_ref, patch_ref, acc_ref,
                         *, H, W, CH):
    C = x_ref.shape[-1]
    # ---- conv1: pad the bf16 input directly (no f32 copy kept live) ----
    _build_dx_patch(_reflect_pad_hw(x_ref[0]), patch_ref, W)
    s, ss = _conv3x3_chunked(patch_ref, w1_ref[...], acc_ref, H, W, C, CH)
    h = _instance_norm(acc_ref, s, ss, H, W, relu=True)
    h = h.reshape(H, W, C).astype(jnp.bfloat16)
    # ---- conv2: reuse patch/acc scratch ----
    _build_dx_patch(_reflect_pad_hw(h), patch_ref, W)
    s, ss = _conv3x3_chunked(patch_ref, w2_ref[...], acc_ref, H, W, C, CH)
    y = _instance_norm(acc_ref, s, ss, H, W, relu=False).reshape(H, W, C)
    # ---- skip connection in f32, re-reading the input block ----
    out_ref[0] = (x_ref[0].astype(jnp.float32) + y).astype(out_ref.dtype)


def _pick_row_chunk(H, W, target_rows=1024):
    """Largest divisor of H whose chunk (CH*W rows) stays <= target_rows."""
    start = min(H, max(1, target_rows // max(W, 1)))
    for ch in range(start, 0, -1):
        if H % ch == 0:
            return ch
    return H


def _pick_vmem_limit():
    """Generation-dependent scoped-VMEM limit (query the chip; keep headroom)."""
    cap = 64 * 1024 * 1024
    try:
        cap = getattr(pltpu.get_tpu_info(), "vmem_capacity_bytes", cap)
    except Exception:
        pass
    if cap >= 128 * 1024 * 1024:
        return 100 * 1024 * 1024      # v5e / v6e: 128 MiB physical
    return 44 * 1024 * 1024           # v7x-class: 64 MiB physical


def resnet_block_nhwc(x, params):
    """x: (N, H, W, C) bf16 NHWC. params: {'w1','w2'}: (3, 3C, C) bf16 each."""
    N, H, W, C = x.shape
    CH = _pick_row_chunk(H, W)
    kernel = functools.partial(_resnet_block_kernel, H=H, W=W, CH=CH)
    return pl.pallas_call(
        kernel,
        out_shape=jax.ShapeDtypeStruct((N, H, W, C), x.dtype),
        grid=(N,),
        in_specs=[
            pl.BlockSpec((1, H, W, C), lambda n: (n, 0, 0, 0)),
            pl.BlockSpec((3, 3 * C, C), lambda n: (0, 0, 0)),
            pl.BlockSpec((3, 3 * C, C), lambda n: (0, 0, 0)),
        ],
        out_specs=pl.BlockSpec((1, H, W, C), lambda n: (n, 0, 0, 0)),
        scratch_shapes=[
            pltpu.VMEM((H + 2, W, 3 * C), jnp.bfloat16),   # dx im2col patch
            pltpu.VMEM((H * W, C), jnp.float32),           # conv accumulator
        ],
        compiler_params=pltpu.CompilerParams(
            dimension_semantics=("parallel",),             # batch across TCs
            vmem_limit_bytes=_pick_vmem_limit(),
        ),
    )(x, params["w1"], params["w2"])


def init_resnet_block_params(key, dim):
    """Deterministic synthetic parameters.

    Weights are generated in the PyTorch (Cout, Cin, 3, 3) layout and packed
    with pack_torch_conv3x3_weight. Conv biases are intentionally omitted: a
    per-channel constant added before a non-affine InstanceNorm2d is exactly
    cancelled by the mean subtraction (variance unchanged)."""
    k1, k2 = jax.random.split(key)
    scale = 1.0 / (dim * 9) ** 0.5   # ~ PyTorch conv default init scale

    def conv_w(k):
        w_oihw = jax.random.uniform(k, (dim, dim, 3, 3), jnp.float32,
                                    -scale, scale)
        return pack_torch_conv3x3_weight(w_oihw)

    return {"w1": conv_w(k1), "w2": conv_w(k2)}


@jax.jit
def resnet_blocks_forward(x_nchw, params_list):
    """Stack of ResnetBlocks. NCHW f32 in/out; bf16 NHWC between blocks
    (single transpose + cast at each model boundary)."""
    x = jnp.transpose(x_nchw, (0, 2, 3, 1)).astype(jnp.bfloat16)
    for p in params_list:
        x = resnet_block_nhwc(x, p)
    return jnp.transpose(x.astype(jnp.float32), (0, 3, 1, 2))


if __name__ == "__main__":
    key = jax.random.PRNGKey(0)
    kx, kp = jax.random.split(key)
    # Small demo shapes (real generator uses C=256, H=W=64 at the block stage,
    # where C is lane-dense; C=4 here only exercises correctness/compilation).
    N, C, H, W = 2, 4, 16, 16
    n_blocks = 2
    x = jax.random.normal(kx, (N, C, H, W), jnp.float32)
    params_list = [init_resnet_block_params(k, C)
                   for k in jax.random.split(kp, n_blocks)]

    out = resnet_blocks_forward(x, params_list)
    jax.block_until_ready(out)
    assert out.shape == (N, C, H, W) and out.dtype == jnp.float32
    assert bool(jnp.all(jnp.isfinite(out)))
    print("KERNEL_OK")
</pallas_src>

<mosaic_0001>
module attributes {stable_mosaic.version = 11 : i64} {
  func.func @_resnet_block_kernel(%arg0: i32, %arg1: memref<1x16x16x4xbf16, #tpu.memory_space<vmem>>, %arg2: memref<3x12x4xbf16, #tpu.memory_space<vmem>>, %arg3: memref<3x12x4xbf16, #tpu.memory_space<vmem>>, %arg4: memref<1x16x16x4xbf16, #tpu.memory_space<vmem>>, %arg5: memref<18x16x12xbf16, #tpu.memory_space<vmem>>, %arg6: memref<256x4xf32, #tpu.memory_space<vmem>>) attributes {dimension_semantics = [#tpu.dimension_semantics<parallel>], iteration_bounds = array<i64: 2>, scalar_prefetch = 0 : i64, scratch_operands = 2 : i64, tpu.core_type = #tpu.core_type<tc>, window_params = [{transform_indices = @transform_0, window_bounds = array<i64: 1, 16, 16, 4>}, {pipeline_mode = #tpu.pipeline_mode<synchronous>, transform_indices = @transform_1, window_bounds = array<i64: 3, 12, 4>}, {pipeline_mode = #tpu.pipeline_mode<synchronous>, transform_indices = @transform_2, window_bounds = array<i64: 3, 12, 4>}, {transform_indices = @transform_3, window_bounds = array<i64: 1, 16, 16, 4>}]} {
    %c0 = arith.constant 0 : index
    %c0_0 = arith.constant 0 : index
    %c0_1 = arith.constant 0 : index
    %c0_2 = arith.constant 0 : index
    %0 = vector.load %arg1[%c0, %c0_0, %c0_1, %c0_2] : memref<1x16x16x4xbf16, #tpu.memory_space<vmem>>, vector<1x16x16x4xbf16>
    %1 = vector.shape_cast %0 : vector<1x16x16x4xbf16> to vector<16x16x4xbf16>
    %2 = vector.extract_strided_slice %1 {offsets = [1, 0, 0], sizes = [1, 16, 4], strides = [1, 1, 1]} : vector<16x16x4xbf16> to vector<1x16x4xbf16>
    %3 = vector.extract_strided_slice %1 {offsets = [14, 0, 0], sizes = [1, 16, 4], strides = [1, 1, 1]} : vector<16x16x4xbf16> to vector<1x16x4xbf16>
    %4 = tpu.concatenate %2, %1, %3 in 0 : vector<1x16x4xbf16>, vector<16x16x4xbf16>, vector<1x16x4xbf16> -> vector<18x16x4xbf16>
    %5 = vector.extract_strided_slice %4 {offsets = [0, 1, 0], sizes = [18, 1, 4], strides = [1, 1, 1]} : vector<18x16x4xbf16> to vector<18x1x4xbf16>
    %6 = vector.extract_strided_slice %4 {offsets = [0, 14, 0], sizes = [18, 1, 4], strides = [1, 1, 1]} : vector<18x16x4xbf16> to vector<18x1x4xbf16>
    %7 = tpu.concatenate %5, %4, %6 in 1 : vector<18x1x4xbf16>, vector<18x16x4xbf16>, vector<18x1x4xbf16> -> vector<18x18x4xbf16>
    %8 = vector.extract_strided_slice %7 {offsets = [0, 0, 0], sizes = [18, 16, 4], strides = [1, 1, 1]} : vector<18x18x4xbf16> to vector<18x16x4xbf16>
    %9 = vector.extract_strided_slice %7 {offsets = [0, 1, 0], sizes = [18, 16, 4], strides = [1, 1, 1]} : vector<18x18x4xbf16> to vector<18x16x4xbf16>
    %10 = vector.extract_strided_slice %7 {offsets = [0, 2, 0], sizes = [18, 16, 4], strides = [1, 1, 1]} : vector<18x18x4xbf16> to vector<18x16x4xbf16>
    %11 = tpu.concatenate %8, %9, %10 in 2 : vector<18x16x4xbf16>, vector<18x16x4xbf16>, vector<18x16x4xbf16> -> vector<18x16x12xbf16>
    %c0_3 = arith.constant 0 : index
    %c0_4 = arith.constant 0 : index
    %c0_5 = arith.constant 0 : index
    %12 = vector.load %arg5[%c0_3, %c0_4, %c0_5] : memref<18x16x12xbf16, #tpu.memory_space<vmem>>, vector<18x16x12xbf16>
    tpu.vector_store %arg5[%c0_3, %c0_4, %c0_5], %11 {strides = array<i32>} : memref<18x16x12xbf16, #tpu.memory_space<vmem>>, vector<18x16x12xbf16>,
    %c0_6 = arith.constant 0 : index
    %c0_7 = arith.constant 0 : index
    %c0_8 = arith.constant 0 : index
    %13 = vector.load %arg2[%c0_6, %c0_7, %c0_8] : memref<3x12x4xbf16, #tpu.memory_space<vmem>>, vector<3x12x4xbf16>
    %cst = arith.constant 0.000000e+00 : f32
    %14 = vector.broadcast %cst : f32 to vector<1x4xf32>
    %c0_i32 = arith.constant 0 : i32
    %c16_i32 = arith.constant 16 : i32
    %15 = arith.muli %c0_i32, %c16_i32 : i32
    %16 = tpu.assume_multiple %15, 16 : i32
    %c256_i32 = arith.constant 256 : i32
    %17 = arith.muli %c0_i32, %c256_i32 : i32
    %18 = tpu.assume_multiple %17, 256 : i32
    %cst_9 = arith.constant 0.000000e+00 : f32
    %19 = vector.broadcast %cst_9 : f32 to vector<256x4xf32>
    %c0_i32_10 = arith.constant 0 : i32
    %20 = arith.addi %16, %c0_i32_10 : i32
    %21 = arith.index_cast %20 : i32 to index
    %c0_11 = arith.constant 0 : index
    %c0_12 = arith.constant 0 : index
    %22 = vector.load %arg5[%21, %c0_11, %c0_12] : memref<18x16x12xbf16, #tpu.memory_space<vmem>>, vector<16x16x12xbf16>
    %23 = vector.shape_cast %22 : vector<16x16x12xbf16> to vector<256x12xbf16>
    %24 = vector.extract_strided_slice %13 {offsets = [0, 0, 0], sizes = [1, 12, 4], strides = [1, 1, 1]} : vector<3x12x4xbf16> to vector<1x12x4xbf16>
    %25 = vector.shape_cast %24 : vector<1x12x4xbf16> to vector<12x4xbf16>
    %cst_13 = arith.constant dense<0.000000e+00> : vector<256x4xf32>
    %26 = tpu.matmul %23, %25, %cst_13 {dimension_numbers = #tpu.dot_dimension_numbers<[1], [0], [0], [1], [0, 0, 1, 1], [], []>} : vector<256x12xbf16>, vector<12x4xbf16>, vector<256x4xf32> -> vector<256x4xf32>
    %27 = arith.addf %19, %26 : vector<256x4xf32>
    %c1_i32 = arith.constant 1 : i32
    %28 = arith.addi %16, %c1_i32 : i32
    %29 = arith.index_cast %28 : i32 to index
    %c0_14 = arith.constant 0 : index
    %c0_15 = arith.constant 0 : index
    %30 = vector.load %arg5[%29, %c0_14, %c0_15] : memref<18x16x12xbf16, #tpu.memory_space<vmem>>, vector<16x16x12xbf16>
    %31 = vector.shape_cast %30 : vector<16x16x12xbf16> to vector<256x12xbf16>
    %32 = vector.extract_strided_slice %13 {offsets = [1, 0, 0], sizes = [1, 12, 4], strides = [1, 1, 1]} : vector<3x12x4xbf16> to vector<1x12x4xbf16>
    %33 = vector.shape_cast %32 : vector<1x12x4xbf16> to vector<12x4xbf16>
    %cst_16 = arith.constant dense<0.000000e+00> : vector<256x4xf32>
    %34 = tpu.matmul %31, %33, %cst_16 {dimension_numbers = #tpu.dot_dimension_numbers<[1], [0], [0], [1], [0, 0, 1, 1], [], []>} : vector<256x12xbf16>, vector<12x4xbf16>, vector<256x4xf32> -> vector<256x4xf32>
    %35 = arith.addf %27, %34 : vector<256x4xf32>
    %c2_i32 = arith.constant 2 : i32
    %36 = arith.addi %16, %c2_i32 : i32
    %37 = arith.index_cast %36 : i32 to index
    %c0_17 = arith.constant 0 : index
    %c0_18 = arith.constant 0 : index
    %38 = vector.load %arg5[%37, %c0_17, %c0_18] : memref<18x16x12xbf16, #tpu.memory_space<vmem>>, vector<16x16x12xbf16>
    %39 = vector.shape_cast %38 : vector<16x16x12xbf16> to vector<256x12xbf16>
    %40 = vector.extract_strided_slice %13 {offsets = [2, 0, 0], sizes = [1, 12, 4], strides = [1, 1, 1]} : vector<3x12x4xbf16> to vector<1x12x4xbf16>
    %41 = vector.shape_cast %40 : vector<1x12x4xbf16> to vector<12x4xbf16>
    %cst_19 = arith.constant dense<0.000000e+00> : vector<256x4xf32>
    %42 = tpu.matmul %39, %41, %cst_19 {dimension_numbers = #tpu.dot_dimension_numbers<[1], [0], [0], [1], [0, 0, 1, 1], [], []>} : vector<256x12xbf16>, vector<12x4xbf16>, vector<256x4xf32> -> vector<256x4xf32>
    %43 = arith.addf %35, %42 : vector<256x4xf32>
    %cst_20 = arith.constant dense<0.000000e+00> : vector<4xf32>
    %44 = vector.multi_reduction <add>, %43, %cst_20 [0] : vector<256x4xf32> to vector<4xf32>
    %45 = vector.shape_cast %44 : vector<4xf32> to vector<1x4xf32>
    %46 = arith.addf %14, %45 : vector<1x4xf32>
    %47 = arith.mulf %43, %43 : vector<256x4xf32>
    %cst_21 = arith.constant dense<0.000000e+00> : vector<4xf32>
    %48 = vector.multi_reduction <add>, %47, %cst_21 [0] : vector<256x4xf32> to vector<4xf32>
    %49 = vector.shape_cast %48 : vector<4xf32> to vector<1x4xf32>
    %50 = arith.addf %14, %49 : vector<1x4xf32>
    %51 = arith.index_cast %18 : i32 to index
    %c0_22 = arith.constant 0 : index
    %52 = vector.load %arg6[%51, %c0_22] : memref<256x4xf32, #tpu.memory_space<vmem>>, vector<256x4xf32>
    tpu.vector_store %arg6[%51, %c0_22], %43 {strides = array<i32>} : memref<256x4xf32, #tpu.memory_space<vmem>>, vector<256x4xf32>,
    %c1_i32_23 = arith.constant 1 : i32
    %cst_24 = arith.constant 3.906250e-03 : f32
    %53 = vector.broadcast %cst_24 : f32 to vector<1x4xf32>
    %54 = arith.mulf %46, %53 : vector<1x4xf32>
    %cst_25 = arith.constant 3.906250e-03 : f32
    %55 = vector.broadcast %cst_25 : f32 to vector<1x4xf32>
    %56 = arith.mulf %50, %55 : vector<1x4xf32>
    %57 = arith.mulf %54, %54 : vector<1x4xf32>
    %58 = arith.subf %56, %57 : vector<1x4xf32>
    %cst_26 = arith.constant 9.99999974E-6 : f32
    %59 = vector.broadcast %cst_26 : f32 to vector<1x4xf32>
    %60 = arith.addf %58, %59 : vector<1x4xf32>
    %61 = math.rsqrt %60 : vector<1x4xf32>
    %c0_27 = arith.constant 0 : index
    %c0_28 = arith.constant 0 : index
    %62 = vector.load %arg6[%c0_27, %c0_28] : memref<256x4xf32, #tpu.memory_space<vmem>>, vector<256x4xf32>
    %63 = vector.broadcast %54 : vector<1x4xf32> to vector<256x4xf32>
    %64 = arith.subf %62, %63 : vector<256x4xf32>
    %65 = vector.broadcast %61 : vector<1x4xf32> to vector<256x4xf32>
    %66 = arith.mulf %64, %65 : vector<256x4xf32>
    %cst_29 = arith.constant 0.000000e+00 : f32
    %67 = vector.broadcast %cst_29 : f32 to vector<256x4xf32>
    %68 = arith.maximumf %66, %67 : vector<256x4xf32>
    %69 = vector.shape_cast %68 : vector<256x4xf32> to vector<16x16x4xf32>
    %70 = arith.truncf %69 : vector<16x16x4xf32> to vector<16x16x4xbf16>
    %71 = vector.extract_strided_slice %70 {offsets = [1, 0, 0], sizes = [1, 16, 4], strides = [1, 1, 1]} : vector<16x16x4xbf16> to vector<1x16x4xbf16>
    %72 = vector.extract_strided_slice %70 {offsets = [14, 0, 0], sizes = [1, 16, 4], strides = [1, 1, 1]} : vector<16x16x4xbf16> to vector<1x16x4xbf16>
    %73 = tpu.concatenate %71, %70, %72 in 0 : vector<1x16x4xbf16>, vector<16x16x4xbf16>, vector<1x16x4xbf16> -> vector<18x16x4xbf16>
    %74 = vector.extract_strided_slice %73 {offsets = [0, 1, 0], sizes = [18, 1, 4], strides = [1, 1, 1]} : vector<18x16x4xbf16> to vector<18x1x4xbf16>
    %75 = vector.extract_strided_slice %73 {offsets = [0, 14, 0], sizes = [18, 1, 4], strides = [1, 1, 1]} : vector<18x16x4xbf16> to vector<18x1x4xbf16>
    %76 = tpu.concatenate %74, %73, %75 in 1 : vector<18x1x4xbf16>, vector<18x16x4xbf16>, vector<18x1x4xbf16> -> vector<18x18x4xbf16>
    %77 = vector.extract_strided_slice %76 {offsets = [0, 0, 0], sizes = [18, 16, 4], strides = [1, 1, 1]} : vector<18x18x4xbf16> to vector<18x16x4xbf16>
    %78 = vector.extract_strided_slice %76 {offsets = [0, 1, 0], sizes = [18, 16, 4], strides = [1, 1, 1]} : vector<18x18x4xbf16> to vector<18x16x4xbf16>
    %79 = vector.extract_strided_slice %76 {offsets = [0, 2, 0], sizes = [18, 16, 4], strides = [1, 1, 1]} : vector<18x18x4xbf16> to vector<18x16x4xbf16>
    %80 = tpu.concatenate %77, %78, %79 in 2 : vector<18x16x4xbf16>, vector<18x16x4xbf16>, vector<18x16x4xbf16> -> vector<18x16x12xbf16>
    %c0_30 = arith.constant 0 : index
    %c0_31 = arith.constant 0 : index
    %c0_32 = arith.constant 0 : index
    %81 = vector.load %arg5[%c0_30, %c0_31, %c0_32] : memref<18x16x12xbf16, #tpu.memory_space<vmem>>, vector<18x16x12xbf16>
    tpu.vector_store %arg5[%c0_30, %c0_31, %c0_32], %80 {strides = array<i32>} : memref<18x16x12xbf16, #tpu.memory_space<vmem>>, vector<18x16x12xbf16>,
    %c0_33 = arith.constant 0 : index
    %c0_34 = arith.constant 0 : index
    %c0_35 = arith.constant 0 : index
    %82 = vector.load %arg3[%c0_33, %c0_34, %c0_35] : memref<3x12x4xbf16, #tpu.memory_space<vmem>>, vector<3x12x4xbf16>
    %cst_36 = arith.constant 0.000000e+00 : f32
    %83 = vector.broadcast %cst_36 : f32 to vector<1x4xf32>
    %c0_i32_37 = arith.constant 0 : i32
    %c16_i32_38 = arith.constant 16 : i32
    %84 = arith.muli %c0_i32_37, %c16_i32_38 : i32
    %85 = tpu.assume_multiple %84, 16 : i32
    %c256_i32_39 = arith.constant 256 : i32
    %86 = arith.muli %c0_i32_37, %c256_i32_39 : i32
    %87 = tpu.assume_multiple %86, 256 : i32
    %cst_40 = arith.constant 0.000000e+00 : f32
    %88 = vector.broadcast %cst_40 : f32 to vector<256x4xf32>
    %c0_i32_41 = arith.constant 0 : i32
    %89 = arith.addi %85, %c0_i32_41 : i32
    %90 = arith.index_cast %89 : i32 to index
    %c0_42 = arith.constant 0 : index
    %c0_43 = arith.constant 0 : index
    %91 = vector.load %arg5[%90, %c0_42, %c0_43] : memref<18x16x12xbf16, #tpu.memory_space<vmem>>, vector<16x16x12xbf16>
    %92 = vector.shape_cast %91 : vector<16x16x12xbf16> to vector<256x12xbf16>
    %93 = vector.extract_strided_slice %82 {offsets = [0, 0, 0], sizes = [1, 12, 4], strides = [1, 1, 1]} : vector<3x12x4xbf16> to vector<1x12x4xbf16>
    %94 = vector.shape_cast %93 : vector<1x12x4xbf16> to vector<12x4xbf16>
    %cst_44 = arith.constant dense<0.000000e+00> : vector<256x4xf32>
    %95 = tpu.matmul %92, %94, %cst_44 {dimension_numbers = #tpu.dot_dimension_numbers<[1], [0], [0], [1], [0, 0, 1, 1], [], []>} : vector<256x12xbf16>, vector<12x4xbf16>, vector<256x4xf32> -> vector<256x4xf32>
    %96 = arith.addf %88, %95 : vector<256x4xf32>
    %c1_i32_45 = arith.constant 1 : i32
    %97 = arith.addi %85, %c1_i32_45 : i32
    %98 = arith.index_cast %97 : i32 to index
    %c0_46 = arith.constant 0 : index
    %c0_47 = arith.constant 0 : index
    %99 = vector.load %arg5[%98, %c0_46, %c0_47] : memref<18x16x12xbf16, #tpu.memory_space<vmem>>, vector<16x16x12xbf16>
    %100 = vector.shape_cast %99 : vector<16x16x12xbf16> to vector<256x12xbf16>
    %101 = vector.extract_strided_slice %82 {offsets = [1, 0, 0], sizes = [1, 12, 4], strides = [1, 1, 1]} : vector<3x12x4xbf16> to vector<1x12x4xbf16>
    %102 = vector.shape_cast %101 : vector<1x12x4xbf16> to vector<12x4xbf16>
    %cst_48 = arith.constant dense<0.000000e+00> : vector<256x4xf32>
    %103 = tpu.matmul %100, %102, %cst_48 {dimension_numbers = #tpu.dot_dimension_numbers<[1], [0], [0], [1], [0, 0, 1, 1], [], []>} : vector<256x12xbf16>, vector<12x4xbf16>, vector<256x4xf32> -> vector<256x4xf32>
    %104 = arith.addf %96, %103 : vector<256x4xf32>
    %c2_i32_49 = arith.constant 2 : i32
    %105 = arith.addi %85, %c2_i32_49 : i32
    %106 = arith.index_cast %105 : i32 to index
    %c0_50 = arith.constant 0 : index
    %c0_51 = arith.constant 0 : index
    %107 = vector.load %arg5[%106, %c0_50, %c0_51] : memref<18x16x12xbf16, #tpu.memory_space<vmem>>, vector<16x16x12xbf16>
    %108 = vector.shape_cast %107 : vector<16x16x12xbf16> to vector<256x12xbf16>
    %109 = vector.extract_strided_slice %82 {offsets = [2, 0, 0], sizes = [1, 12, 4], strides = [1, 1, 1]} : vector<3x12x4xbf16> to vector<1x12x4xbf16>
    %110 = vector.shape_cast %109 : vector<1x12x4xbf16> to vector<12x4xbf16>
    %cst_52 = arith.constant dense<0.000000e+00> : vector<256x4xf32>
    %111 = tpu.matmul %108, %110, %cst_52 {dimension_numbers = #tpu.dot_dimension_numbers<[1], [0], [0], [1], [0, 0, 1, 1], [], []>} : vector<256x12xbf16>, vector<12x4xbf16>, vector<256x4xf32> -> vector<256x4xf32>
    %112 = arith.addf %104, %111 : vector<256x4xf32>
    %cst_53 = arith.constant dense<0.000000e+00> : vector<4xf32>
    %113 = vector.multi_reduction <add>, %112, %cst_53 [0] : vector<256x4xf32> to vector<4xf32>
    %114 = vector.shape_cast %113 : vector<4xf32> to vector<1x4xf32>
    %115 = arith.addf %83, %114 : vector<1x4xf32>
    %116 = arith.mulf %112, %112 : vector<256x4xf32>
    %cst_54 = arith.constant dense<0.000000e+00> : vector<4xf32>
    %117 = vector.multi_reduction <add>, %116, %cst_54 [0] : vector<256x4xf32> to vector<4xf32>
    %118 = vector.shape_cast %117 : vector<4xf32> to vector<1x4xf32>
    %119 = arith.addf %83, %118 : vector<1x4xf32>
    %120 = arith.index_cast %87 : i32 to index
    %c0_55 = arith.constant 0 : index
    %121 = vector.load %arg6[%120, %c0_55] : memref<256x4xf32, #tpu.memory_space<vmem>>, vector<256x4xf32>
    tpu.vector_store %arg6[%120, %c0_55], %112 {strides = array<i32>} : memref<256x4xf32, #tpu.memory_space<vmem>>, vector<256x4xf32>,
    %c1_i32_56 = arith.constant 1 : i32
    %cst_57 = arith.constant 3.906250e-03 : f32
    %122 = vector.broadcast %cst_57 : f32 to vector<1x4xf32>
    %123 = arith.mulf %115, %122 : vector<1x4xf32>
    %cst_58 = arith.constant 3.906250e-03 : f32
    %124 = vector.broadcast %cst_58 : f32 to vector<1x4xf32>
    %125 = arith.mulf %119, %124 : vector<1x4xf32>
    %126 = arith.mulf %123, %123 : vector<1x4xf32>
    %127 = arith.subf %125, %126 : vector<1x4xf32>
    %cst_59 = arith.constant 9.99999974E-6 : f32
    %128 = vector.broadcast %cst_59 : f32 to vector<1x4xf32>
    %129 = arith.addf %127, %128 : vector<1x4xf32>
    %130 = math.rsqrt %129 : vector<1x4xf32>
    %c0_60 = arith.constant 0 : index
    %c0_61 = arith.constant 0 : index
    %131 = vector.load %arg6[%c0_60, %c0_61] : memref<256x4xf32, #tpu.memory_space<vmem>>, vector<256x4xf32>
    %132 = vector.broadcast %123 : vector<1x4xf32> to vector<256x4xf32>
    %133 = arith.subf %131, %132 : vector<256x4xf32>
    %134 = vector.broadcast %130 : vector<1x4xf32> to vector<256x4xf32>
    %135 = arith.mulf %133, %134 : vector<256x4xf32>
    %136 = vector.shape_cast %135 : vector<256x4xf32> to vector<16x16x4xf32>
    %c0_62 = arith.constant 0 : index
    %c0_63 = arith.constant 0 : index
    %c0_64 = arith.constant 0 : index
    %c0_65 = arith.constant 0 : index
    %137 = vector.load %arg1[%c0_62, %c0_63, %c0_64, %c0_65] : memref<1x16x16x4xbf16, #tpu.memory_space<vmem>>, vector<1x16x16x4xbf16>
    %138 = vector.shape_cast %137 : vector<1x16x16x4xbf16> to vector<16x16x4xbf16>
    %139 = arith.extf %138 : vector<16x16x4xbf16> to vector<16x16x4xf32>
    %140 = arith.addf %139, %136 : vector<16x16x4xf32>
    %141 = arith.truncf %140 : vector<16x16x4xf32> to vector<16x16x4xbf16>
    %c0_66 = arith.constant 0 : index
    %c0_67 = arith.constant 0 : index
    %c0_68 = arith.constant 0 : index
    %c0_69 = arith.constant 0 : index
    %142 = vector.load %arg4[%c0_66, %c0_67, %c0_68, %c0_69] : memref<1x16x16x4xbf16, #tpu.memory_space<vmem>>, vector<1x16x16x4xbf16>
    %143 = vector.shape_cast %142 : vector<1x16x16x4xbf16> to vector<16x16x4xbf16>
    %144 = vector.shape_cast %141 : vector<16x16x4xbf16> to vector<1x16x16x4xbf16>
    tpu.vector_store %arg4[%c0_66, %c0_67, %c0_68, %c0_69], %144 {strides = array<i32>} : memref<1x16x16x4xbf16, #tpu.memory_space<vmem>>, vector<1x16x16x4xbf16>,
    return
  }
  func.func @transform_0(%arg0: i32) -> (i32, i32, i32, i32) {
    %c0_i32 = arith.constant 0 : i32
    %c0_i32_0 = arith.constant 0 : i32
    %c0_i32_1 = arith.constant 0 : i32
    %c0_i32_2 = arith.constant 0 : i32
    return %arg0, %c0_i32, %c0_i32_0, %c0_i32_1 : i32, i32, i32, i32
  }
  func.func @transform_1(%arg0: i32) -> (i32, i32, i32) {
    %c0_i32 = arith.constant 0 : i32
    %c0_i32_0 = arith.constant 0 : i32
    %c0_i32_1 = arith.constant 0 : i32
    %c0_i32_2 = arith.constant 0 : i32
    return %c0_i32, %c0_i32_0, %c0_i32_1 : i32, i32, i32
  }
  func.func @transform_2(%arg0: i32) -> (i32, i32, i32) {
    %c0_i32 = arith.constant 0 : i32
    %c0_i32_0 = arith.constant 0 : i32
    %c0_i32_1 = arith.constant 0 : i32
    %c0_i32_2 = arith.constant 0 : i32
    return %c0_i32, %c0_i32_0, %c0_i32_1 : i32, i32, i32
  }
  func.func @transform_3(%arg0: i32) -> (i32, i32, i32, i32) {
    %c0_i32 = arith.constant 0 : i32
    %c0_i32_0 = arith.constant 0 : i32
    %c0_i32_1 = arith.constant 0 : i32
    %c0_i32_2 = arith.constant 0 : i32
    return %arg0, %c0_i32, %c0_i32_0, %c0_i32_1 : i32, i32, i32, i32
  }
}

</mosaic_0001>

<llo_original>
// kernel: resnet_blocks_forward.2
$region0: #{resnet_blocks_forward.2}
  #allocation0 [shape = 'u32[]', space=smem, size = 0x4, offset = 0x4, fixed_abs, tag = 'smem constant byte address 0x4 - core index']
  #allocation1 [shape = 'u32[144,128]{1,0:T(1,128)}', space=vmem, size = 0x12000, scoped, tag = 'internal scratch']
  #allocation2 [shape = 'bf16[18,16,12]{2,1,0:T(8,128)(2,1)}', space=vmem, size = 0x12000, scoped, tag = 'scratch operand']
  #allocation3 [shape = 'f32[256,4]{1,0:T(8,128)}', space=vmem, size = 0x20000, scoped, tag = 'scratch operand']
  %s0 = inlined_call_operand.vmem [shape: bf16[2,16,16,4], index: 0, kind: input, shape index: {}]
  %s1 = inlined_call_operand.vmem [shape: bf16[3,12,4], index: 1, kind: input, shape index: {}]
  %s2 = inlined_call_operand.vmem [shape: bf16[3,12,4], index: 2, kind: input, shape index: {}]
  %s3 = inlined_call_operand.vmem [shape: bf16[2,16,16,4], index: 3, kind: output, shape index: {}]
  %s4 = sld [smem:[#allocation0]]
  $region45: #{resnet_blocks_forward.2} parent=0
    _
  %s6 = ssub.s32 1, %s4
  %s7 = scalar_select 0, %s6, %s4
  loop: start=0, step=1, limit=4
  $region2: #{resnet_blocks_forward.2} parent=0 // loop_pre_header
    _
  $region3: #{resnet_blocks_forward.2} parent=0 // loop_header
    %s9 = sphi 0, %s13
    %p10 = scmp.ge.s32.totalorder %s9, 4
    %s19 = sphi 0, %s21
    %s22 = sphi 0, %s19
    %s23 = sphi 0, %s22
    %s39 = sphi 0, %s23
    %s43 = sphi 0, %s43
    %s45 = sphi 0, %s43
    %s46 = sphi 0, %s45
    %s60 = sphi 0, %s46
    %s64 = sphi 0, %s64
    %s66 = sphi 0, %s64
    %s67 = sphi 0, %s66
    %s81 = sphi 0, %s67
    %s87 = sphi 0, %s89
    %s90 = sphi 0, %s87
    %s91 = sphi 0, %s90
    %s107 = sphi 0, %s91
  $region4: #{resnet_blocks_forward.2} parent=0 // loop_header_branch
    %12 = sbr.rel (%p10) target = $region8
  $region5: #{resnet_blocks_forward.2} parent=0 // loop_body
    %s14 = ssub.s32 %s9, 1
    %s15 = ssub.s32 %s9, 2
    %s16 = sadd.s32 %s9, 1
    %s17 = ssub.s32 %s9, %s16
    %p18 = scmp.eq.s32.totalorder %s17, 0
    %s20 = sadd.s32 %s19, 1
    %s21 = scalar_select %p18, %s19, %s20
    %p24 = pneg %p18
    %p25 = scmp.eq.s32.totalorder %s9, 1
    %p26 = por %p24, %p25
    %p27 = scmp.ne.s32.totalorder %s19, %s22
    %p28 = scmp.eq.s32.totalorder %s9, 0
    %p29 = por %p27, %p28
    %p30 = scmp.ne.s32.totalorder %s19, %s22
    %p31 = scmp.eq.s32.totalorder %s14, 1
    %p32 = por %p30, %p31
    %p33 = scmp.ne.s32.totalorder %s22, %s23
    %p34 = scmp.eq.s32.totalorder %s14, 0
    %p35 = por %p33, %p34
    %p36 = scmp.ne.s32.totalorder %s22, %s23
    %p37 = scmp.eq.s32.totalorder %s15, 1
    %p38 = por %p36, %p37
    %p40 = scmp.ne.s32.totalorder %s23, %s39
    %p41 = scmp.eq.s32.totalorder %s15, 0
    %p42 = por %p40, %p41
    %s44 = sadd.s32 %s43, 1
    %p47 = scmp.eq.s32.totalorder %s9, 1
    %p48 = scmp.ne.s32.totalorder %s43, %s45
    %p49 = scmp.eq.s32.totalorder %s9, 0
    %p50 = por %p48, %p49
    %p51 = scmp.ne.s32.totalorder %s43, %s45
    %p52 = scmp.eq.s32.totalorder %s14, 1
    %p53 = por %p51, %p52
    %p54 = scmp.ne.s32.totalorder %s45, %s46
    %p55 = scmp.eq.s32.totalorder %s14, 0
    %p56 = por %p54, %p55
    %p57 = scmp.ne.s32.totalorder %s45, %s46
    %p58 = scmp.eq.s32.totalorder %s15, 1
    %p59 = por %p57, %p58
    %p61 = scmp.ne.s32.totalorder %s46, %s60
    %p62 = scmp.eq.s32.totalorder %s15, 0
    %p63 = por %p61, %p62
    %s65 = sadd.s32 %s64, 1
    %p68 = scmp.eq.s32.totalorder %s9, 1
    %p69 = scmp.ne.s32.totalorder %s64, %s66
    %p70 = scmp.eq.s32.totalorder %s9, 0
    %p71 = por %p69, %p70
    %p72 = scmp.ne.s32.totalorder %s64, %s66
    %p73 = scmp.eq.s32.totalorder %s14, 1
    %p74 = por %p72, %p73
    %p75 = scmp.ne.s32.totalorder %s66, %s67
    %p76 = scmp.eq.s32.totalorder %s14, 0
    %p77 = por %p75, %p76
    %p78 = scmp.ne.s32.totalorder %s66, %s67
    %p79 = scmp.eq.s32.totalorder %s15, 1
    %p80 = por %p78, %p79
    %p82 = scmp.ne.s32.totalorder %s67, %s81
    %p83 = scmp.eq.s32.totalorder %s15, 0
    %p84 = por %p82, %p83
    %s85 = ssub.s32 %s9, %s16
    %p86 = scmp.eq.s32.totalorder %s85, 0
    %s88 = sadd.s32 %s87, 1
    %s89 = scalar_select %p86, %s87, %s88
    %p92 = pneg %p86
    %p93 = scmp.eq.s32.totalorder %s9, 1
    %p94 = por %p92, %p93
    %p95 = scmp.ne.s32.totalorder %s87, %s90
    %p96 = scmp.eq.s32.totalorder %s9, 0
    %p97 = por %p95, %p96
    %p98 = scmp.ne.s32.totalorder %s87, %s90
    %p99 = scmp.eq.s32.totalorder %s14, 1
    %p100 = por %p98, %p99
    %p101 = scmp.ne.s32.totalorder %s90, %s91
    %p102 = scmp.eq.s32.totalorder %s14, 0
    %p103 = por %p101, %p102
    %p104 = scmp.ne.s32.totalorder %s90, %s91
    %p105 = scmp.eq.s32.totalorder %s15, 1
    %p106 = por %p104, %p105
    %p108 = scmp.ne.s32.totalorder %s91, %s107
    %p109 = scmp.eq.s32.totalorder %s15, 0
    %p110 = por %p108, %p109
    %p111 = scmp.le.s32.totalorder 1, %s9
    %p112 = scmp.lt.s32.totalorder %s9, 3
    %p113 = pnand %p111, %p112
    %p114 = pneg %p113
    // Predicated region
    $region9: #{resnet_blocks_forward.2} parent=5 // pred_check
      _
    $region10: #{resnet_blocks_forward.2} parent=5 // pred_check_branch
      %116 = sbr.rel (%p113) target = $region12
    $region11: #{resnet_blocks_forward.2} parent=5 // pred_region
      %s117 = ssub.s32 %s9, 1
      // Predicated region
      $region13: #{resnet_blocks_forward.2} parent=11 // pred_check
        %p118 = pneg %p56
      $region14: #{resnet_blocks_forward.2} parent=11 // pred_check_branch
        %120 = sbr.rel (%p118) target = $region16
      $region15: #{resnet_blocks_forward.2} parent=11 // pred_region
        _
      $region16: #{resnet_blocks_forward.2} parent=11 // pred_fallthru
        _
      // Predicated region
      $region17: #{resnet_blocks_forward.2} parent=11 // pred_check
        %p121 = pneg %p77
      $region18: #{resnet_blocks_forward.2} parent=11 // pred_check_branch
        %123 = sbr.rel (%p121) target = $region20
      $region19: #{resnet_blocks_forward.2} parent=11 // pred_region
        _
      $region20: #{resnet_blocks_forward.2} parent=11 // pred_fallthru
        _
    $region12: #{resnet_blocks_forward.2} parent=5 // pred_fallthru
      _
    %p124 = scmp.lt.s32.totalorder %s9, 2
    // Predicated region
    $region21: #{resnet_blocks_forward.2} parent=5 // pred_check
      %p125 = pneg %p124
    $region22: #{resnet_blocks_forward.2} parent=5 // pred_check_branch
      %127 = sbr.rel (%p125) target = $region24
    $region23: #{resnet_blocks_forward.2} parent=5 // pred_region
      // Predicated region
      $region25: #{resnet_blocks_forward.2} parent=23 // pred_check
        %p128 = pneg %p29
      $region26: #{resnet_blocks_forward.2} parent=23 // pred_check_branch
        %130 = sbr.rel (%p128) target = $region28
      $region27: #{resnet_blocks_forward.2} parent=23 // pred_region
        %p131 = scmp.lt.s32.totalorder %s9, 1
        %s132 = scalar_select %p131, %s9, 1
        %s133 = smul.addr %s132, 32
        %s134 = smul.addr %s133, 4
        %s135 = scalar_lea.vmem %s0, %s134
      $region28: #{resnet_blocks_forward.2} parent=23 // pred_fallthru
        _
    $region24: #{resnet_blocks_forward.2} parent=5 // pred_fallthru
      _
    %p136 = scmp.le.s32.totalorder 1, %s9
    %p137 = scmp.lt.s32.totalorder %s9, 3
    %p138 = pnand %p136, %p137
    %p139 = pneg %p138
    // Predicated region
    $region29: #{resnet_blocks_forward.2} parent=5 // pred_check
      _
    $region30: #{resnet_blocks_forward.2} parent=5 // pred_check_branch
      %141 = sbr.rel (%p138) target = $region32
    $region31: #{resnet_blocks_forward.2} parent=5 // pred_region
      %s142 = ssub.s32 %s9, 1
      %p143 = scmp.lt.s32.totalorder %s14, 1
      %s144 = scalar_select %p143, %s14, 1
      %s145 = smul.addr %s144, 32
      %s146 = smul.addr %s145, 4
      %s147 = scalar_lea.vmem %s0, %s146
      %p148 = pneg %p35
      %p149 = pneg %p32
      %p150 = pneg %p56
      %p151 = pneg %p53
      %p152 = pneg %p77
      %p153 = pneg %p74
      %p154 = pneg %p103
      %p155 = pneg %p100
      %p156 = scmp.lt.s32.totalorder %s14, 1
      %s157 = scalar_select %p156, %s14, 1
      %s158 = smul.addr %s157, 32
      %s159 = smul.addr %s158, 4
      %s160 = scalar_lea.vmem %s3, %s159
      %p161 = scmp.lt.s32.totalorder %s14, 1
      %s162 = scalar_select %p161, %s14, 1
      %s163 = smul.addr %s162, 32
      %s164 = smul.addr %s163, 4
      %s165 = scalar_lea.vmem %s0, %s164
      %p166 = scmp.lt.s32.totalorder %s14, 1
      %s167 = scalar_select %p166, %s14, 1
      %s168 = smul.addr %s167, 32
      %s169 = smul.addr %s168, 4
      %s170 = scalar_lea.vmem %s3, %s169
      %v172 = vld [vmem:[%s165] sm:$0xf]
      %v173 = vld [vmem:[%s165 + $0x4] sm:$0xf]
      %v174 = vld [vmem:[%s165 + $0x8] sm:$0xf]
      %v175 = vld [vmem:[%s165 + $0xc] sm:$0xf]
      %v176 = vld [vmem:[%s165 + $0x10] sm:$0xf]
      %v177 = vld [vmem:[%s165 + $0x14] sm:$0xf]
      %v178 = vld [vmem:[%s165 + $0x18] sm:$0xf]
      %v179 = vld [vmem:[%s165 + $0x1c] sm:$0xf]
      %v180 = vld [vmem:[%s165 + $0x20] sm:$0xf]
      %v181 = vld [vmem:[%s165 + $0x24] sm:$0xf]
      %v182 = vld [vmem:[%s165 + $0x28] sm:$0xf]
      %v183 = vld [vmem:[%s165 + $0x2c] sm:$0xf]
      %v184 = vld [vmem:[%s165 + $0x30] sm:$0xf]
      %v185 = vld [vmem:[%s165 + $0x34] sm:$0xf]
      %v186 = vld [vmem:[%s165 + $0x38] sm:$0xf]
      %v187 = vld [vmem:[%s165 + $0x3c] sm:$0xf]
      %v188 = vld [vmem:[%s165 + $0x40] sm:$0xf]
      %v189 = vld [vmem:[%s165 + $0x44] sm:$0xf]
      %v190 = vld [vmem:[%s165 + $0x48] sm:$0xf]
      %v191 = vld [vmem:[%s165 + $0x4c] sm:$0xf]
      %v192 = vld [vmem:[%s165 + $0x50] sm:$0xf]
      %v193 = vld [vmem:[%s165 + $0x54] sm:$0xf]
      %v194 = vld [vmem:[%s165 + $0x58] sm:$0xf]
      %v195 = vld [vmem:[%s165 + $0x5c] sm:$0xf]
      %v196 = vld [vmem:[%s165 + $0x60] sm:$0xf]
      %v197 = vld [vmem:[%s165 + $0x64] sm:$0xf]
      %v198 = vld [vmem:[%s165 + $0x68] sm:$0xf]
      %v199 = vld [vmem:[%s165 + $0x6c] sm:$0xf]
      %v200 = vld [vmem:[%s165 + $0x70] sm:$0xf]
      %v201 = vld [vmem:[%s165 + $0x74] sm:$0xf]
      %v202 = vld [vmem:[%s165 + $0x78] sm:$0xf]
      %v203 = vld [vmem:[%s165 + $0x7c] sm:$0xf]
      %v220 = vunpack.c.l.b16 %v174
      %v221 = vunpack.c.l.b16 %v172
      %v222 = vunpack.c.l.b16 %v176
      %v223 = vunpack.c.l.b16 %v178
      %v224 = vunpack.c.l.b16 %v180
      %v225 = vunpack.c.l.b16 %v182
      %v226 = vunpack.c.l.b16 %v184
      %v227 = vunpack.c.l.b16 %v186
      %v228 = vunpack.c.l.b16 %v188
      %v229 = vunpack.c.l.b16 %v190
      %v230 = vunpack.c.l.b16 %v192
      %v231 = vunpack.c.l.b16 %v194
      %v232 = vunpack.c.l.b16 %v196
      %v233 = vunpack.c.l.b16 %v198
      %v234 = vunpack.c.l.b16 %v200
      %v235 = vunpack.c.l.b16 %v202
      %v236 = vpack.c.b16 %v220, %v220
      %v237 = vpack.c.b16 %v221, %v221
      %v238 = vpack.c.b16 %v222, %v222
      %v239 = vpack.c.b16 %v223, %v223
      %v240 = vpack.c.b16 %v224, %v224
      %v241 = vpack.c.b16 %v225, %v225
      %v242 = vpack.c.b16 %v226, %v226
      %v243 = vpack.c.b16 %v227, %v227
      %v244 = vpack.c.b16 %v228, %v228
      %v245 = vpack.c.b16 %v229, %v229
      %v246 = vpack.c.b16 %v230, %v230
      %v247 = vpack.c.b16 %v231, %v231
      %v248 = vpack.c.b16 %v232, %v232
      %v249 = vpack.c.b16 %v233, %v233
      %v250 = vpack.c.b16 %v234, %v234
      %v251 = vpack.c.b16 %v235, %v235
      %v253 = vshrl.u32 %v236, 16
      %v256 = vshrl.u32 %v237, 16
      %v259 = vshrl.u32 %v238, 16
      %v262 = vshrl.u32 %v239, 16
      %v265 = vshrl.u32 %v240, 16
      %v268 = vshrl.u32 %v241, 16
      %v271 = vshrl.u32 %v242, 16
      %v274 = vshrl.u32 %v243, 16
      %v277 = vshrl.u32 %v244, 16
      %v280 = vshrl.u32 %v245, 16
      %v283 = vshrl.u32 %v246, 16
      %v286 = vshrl.u32 %v247, 16
      %v289 = vshrl.u32 %v248, 16
      %v292 = vshrl.u32 %v249, 16
      %v295 = vshrl.u32 %v250, 16
      %v298 = vshrl.u32 %v251, 16
      %v332 = vunpack.c.l.b16 %v175
      %v333 = vunpack.c.l.b16 %v173
      %v334 = vunpack.c.l.b16 %v177
      %v335 = vunpack.c.l.b16 %v179
      %v336 = vunpack.c.l.b16 %v181
      %v337 = vunpack.c.l.b16 %v183
      %v338 = vunpack.c.l.b16 %v185
      %v339 = vunpack.c.l.b16 %v187
      %v340 = vunpack.c.l.b16 %v189
      %v341 = vunpack.c.l.b16 %v191
      %v342 = vunpack.c.l.b16 %v193
      %v343 = vunpack.c.l.b16 %v195
      %v344 = vunpack.c.l.b16 %v197
      %v345 = vunpack.c.l.b16 %v199
      %v346 = vunpack.c.l.b16 %v201
      %v347 = vunpack.c.l.b16 %v203
      %v348 = vpack.c.b16 %v332, %v220
      %v349 = vpack.c.b16 %v333, %v221
      %v350 = vpack.c.b16 %v334, %v222
      %v351 = vpack.c.b16 %v335, %v223
      %v352 = vpack.c.b16 %v336, %v224
      %v353 = vpack.c.b16 %v337, %v225
      %v354 = vpack.c.b16 %v338, %v226
      %v355 = vpack.c.b16 %v339, %v227
      %v356 = vpack.c.b16 %v340, %v228
      %v357 = vpack.c.b16 %v341, %v229
      %v358 = vpack.c.b16 %v342, %v230
      %v359 = vpack.c.b16 %v343, %v231
      %v360 = vpack.c.b16 %v344, %v232
      %v361 = vpack.c.b16 %v345, %v233
      %v362 = vpack.c.b16 %v346, %v234
      %v363 = vpack.c.b16 %v347, %v235
      %v365 = vshrl.u32 %v348, 16
      %v367 = vrot.slane %v365, 7
      %v368 = vshll.u32 %v348, 16
      %v370 = vor.u32 %v367, %v368
      %v372 = vshrl.u32 %v349, 16
      %v374 = vrot.slane %v372, 7
      %v375 = vshll.u32 %v349, 16
      %v377 = vor.u32 %v374, %v375
      %v379 = vshrl.u32 %v350, 16
      %v381 = vrot.slane %v379, 7
      %v382 = vshll.u32 %v350, 16
      %v384 = vor.u32 %v381, %v382
      %v386 = vshrl.u32 %v351, 16
      %v388 = vrot.slane %v386, 7
      %v389 = vshll.u32 %v351, 16
      %v391 = vor.u32 %v388, %v389
      %v393 = vshrl.u32 %v352, 16
      %v395 = vrot.slane %v393, 7
      %v396 = vshll.u32 %v352, 16
      %v398 = vor.u32 %v395, %v396
      %v400 = vshrl.u32 %v353, 16
      %v402 = vrot.slane %v400, 7
      %v403 = vshll.u32 %v353, 16
      %v405 = vor.u32 %v402, %v403
      %v407 = vshrl.u32 %v354, 16
      %v409 = vrot.slane %v407, 7
      %v410 = vshll.u32 %v354, 16
      %v412 = vor.u32 %v409, %v410
      %v414 = vshrl.u32 %v355, 16
      %v416 = vrot.slane %v414, 7
      %v417 = vshll.u32 %v355, 16
      %v419 = vor.u32 %v416, %v417
      %v421 = vshrl.u32 %v356, 16
      %v423 = vrot.slane %v421, 7
      %v424 = vshll.u32 %v356, 16
      %v426 = vor.u32 %v423, %v424
      %v428 = vshrl.u32 %v357, 16
      %v430 = vrot.slane %v428, 7
      %v431 = vshll.u32 %v357, 16
      %v433 = vor.u32 %v430, %v431
      %v435 = vshrl.u32 %v358, 16
      %v437 = vrot.slane %v435, 7
      %v438 = vshll.u32 %v358, 16
      %v440 = vor.u32 %v437, %v438
      %v442 = vshrl.u32 %v359, 16
      %v444 = vrot.slane %v442, 7
      %v445 = vshll.u32 %v359, 16
      %v447 = vor.u32 %v444, %v445
      %v449 = vshrl.u32 %v360, 16
      %v451 = vrot.slane %v449, 7
      %v452 = vshll.u32 %v360, 16
      %v454 = vor.u32 %v451, %v452
      %v456 = vshrl.u32 %v361, 16
      %v458 = vrot.slane %v456, 7
      %v459 = vshll.u32 %v361, 16
      %v461 = vor.u32 %v458, %v459
      %v463 = vshrl.u32 %v362, 16
      %v465 = vrot.slane %v463, 7
      %v466 = vshll.u32 %v362, 16
      %v468 = vor.u32 %v465, %v466
      %v470 = vshrl.u32 %v363, 16
      %v472 = vrot.slane %v470, 7
      %v473 = vshll.u32 %v363, 16
      %v475 = vor.u32 %v472, %v473
      %v508 = vpack.c.b16 %v332, %v332
      %v509 = vpack.c.b16 %v333, %v333
      %v510 = vpack.c.b16 %v334, %v334
      %v511 = vpack.c.b16 %v335, %v335
      %v512 = vpack.c.b16 %v336, %v336
      %v513 = vpack.c.b16 %v337, %v337
      %v514 = vpack.c.b16 %v338, %v338
      %v515 = vpack.c.b16 %v339, %v339
      %v516 = vpack.c.b16 %v340, %v340
      %v517 = vpack.c.b16 %v341, %v341
      %v518 = vpack.c.b16 %v342, %v342
      %v519 = vpack.c.b16 %v343, %v343
      %v520 = vpack.c.b16 %v344, %v344
      %v521 = vpack.c.b16 %v345, %v345
      %v522 = vpack.c.b16 %v346, %v346
      %v523 = vpack.c.b16 %v347, %v347
      %v525 = vshll.u32 %v508, 16
      %v527 = vrot.slane %v525, 3
      %v529 = vshll.u32 %v509, 16
      %v531 = vrot.slane %v529, 3
      %v533 = vshll.u32 %v510, 16
      %v535 = vrot.slane %v533, 3
      %v537 = vshll.u32 %v511, 16
      %v539 = vrot.slane %v537, 3
      %v541 = vshll.u32 %v512, 16
      %v543 = vrot.slane %v541, 3
      %v545 = vshll.u32 %v513, 16
      %v547 = vrot.slane %v545, 3
      %v549 = vshll.u32 %v514, 16
      %v551 = vrot.slane %v549, 3
      %v553 = vshll.u32 %v515, 16
      %v555 = vrot.slane %v553, 3
      %v557 = vshll.u32 %v516, 16
      %v559 = vrot.slane %v557, 3
      %v561 = vshll.u32 %v517, 16
      %v563 = vrot.slane %v561, 3
      %v565 = vshll.u32 %v518, 16
      %v567 = vrot.slane %v565, 3
      %v569 = vshll.u32 %v519, 16
      %v571 = vrot.slane %v569, 3
      %v573 = vshll.u32 %v520, 16
      %v575 = vrot.slane %v573, 3
      %v577 = vshll.u32 %v521, 16
      %v579 = vrot.slane %v577, 3
      %v581 = vshll.u32 %v522, 16
      %v583 = vrot.slane %v581, 3
      %v585 = vshll.u32 %v523, 16
      %v587 = vrot.slane %v585, 3
      %vm604 = vcmask 1040384
      %vm605 = vsmask.f32 256
      %vm606 = vmand %vm604, %vm605
      %v607 = vsel %vm606, %v253, %v370
      %v608 = vsel %vm606, %v256, %v377
      %v609 = vsel %vm606, %v259, %v384
      %v610 = vsel %vm606, %v262, %v391
      %v611 = vsel %vm606, %v265, %v398
      %v612 = vsel %vm606, %v268, %v405
      %v613 = vsel %vm606, %v271, %v412
      %v614 = vsel %vm606, %v274, %v419
      %v615 = vsel %vm606, %v277, %v426
      %v616 = vsel %vm606, %v280, %v433
      %v617 = vsel %vm606, %v283, %v440
      %v618 = vsel %vm606, %v286, %v447
      %v619 = vsel %vm606, %v289, %v454
      %v620 = vsel %vm606, %v292, %v461
      %v621 = vsel %vm606, %v295, %v468
      %v622 = vsel %vm606, %v298, %v475
      %v623 = vsel %vm606, %v367, %v527
      %v624 = vsel %vm606, %v374, %v531
      %v625 = vsel %vm606, %v381, %v535
      %v626 = vsel %vm606, %v388, %v539
      %v627 = vsel %vm606, %v395, %v543
      %v628 = vsel %vm606, %v402, %v547
      %v629 = vsel %vm606, %v409, %v551
      %v630 = vsel %vm606, %v416, %v555
      %v631 = vsel %vm606, %v423, %v559
      %v632 = vsel %vm606, %v430, %v563
      %v633 = vsel %vm606, %v437, %v567
      %v634 = vsel %vm606, %v444, %v571
      %v635 = vsel %vm606, %v451, %v575
      %v636 = vsel %vm606, %v458, %v579
      %v637 = vsel %vm606, %v465, %v583
      %v638 = vsel %vm606, %v472, %v587
      %vm639 = vsmask.f32 7424
      %v641 = vshrl.u32 %v607, 16
      %v643 = vshll.u32 %v607, 16
      %v645 = vrot.slane %v643, 1
      %v646 = vor.u32 %v641, %v645
      %v648 = vshll.u32 %v623, 16
      %v650 = vrot.slane %v648, 1
      %v651 = vsel %vm639, %v646, %v650
      %v653 = vshrl.u32 %v608, 16
      %v655 = vshll.u32 %v608, 16
      %v657 = vrot.slane %v655, 1
      %v658 = vor.u32 %v653, %v657
      %v660 = vshll.u32 %v624, 16
      %v662 = vrot.slane %v660, 1
      %v663 = vsel %vm639, %v658, %v662
      %v665 = vshrl.u32 %v609, 16
      %v667 = vshll.u32 %v609, 16
      %v669 = vrot.slane %v667, 1
      %v670 = vor.u32 %v665, %v669
      %v672 = vshll.u32 %v625, 16
      %v674 = vrot.slane %v672, 1
      %v675 = vsel %vm639, %v670, %v674
      %v677 = vshrl.u32 %v610, 16
      %v679 = vshll.u32 %v610, 16
      %v681 = vrot.slane %v679, 1
      %v682 = vor.u32 %v677, %v681
      %v684 = vshll.u32 %v626, 16
      %v686 = vrot.slane %v684, 1
      %v687 = vsel %vm639, %v682, %v686
      %v689 = vshrl.u32 %v611, 16
      %v691 = vshll.u32 %v611, 16
      %v693 = vrot.slane %v691, 1
      %v694 = vor.u32 %v689, %v693
      %v696 = vshll.u32 %v627, 16
      %v698 = vrot.slane %v696, 1
      %v699 = vsel %vm639, %v694, %v698
      %v701 = vshrl.u32 %v612, 16
      %v703 = vshll.u32 %v612, 16
      %v705 = vrot.slane %v703, 1
      %v706 = vor.u32 %v701, %v705
      %v708 = vshll.u32 %v628, 16
      %v710 = vrot.slane %v708, 1
      %v711 = vsel %vm639, %v706, %v710
      %v713 = vshrl.u32 %v613, 16
      %v715 = vshll.u32 %v613, 16
      %v717 = vrot.slane %v715, 1
      %v718 = vor.u32 %v713, %v717
      %v720 = vshll.u32 %v629, 16
      %v722 = vrot.slane %v720, 1
      %v723 = vsel %vm639, %v718, %v722
      %v725 = vshrl.u32 %v614, 16
      %v727 = vshll.u32 %v614, 16
      %v729 = vrot.slane %v727, 1
      %v730 = vor.u32 %v725, %v729
      %v732 = vshll.u32 %v630, 16
      %v734 = vrot.slane %v732, 1
      %v735 = vsel %vm639, %v730, %v734
      %v737 = vshrl.u32 %v615, 16
      %v739 = vshll.u32 %v615, 16
      %v741 = vrot.slane %v739, 1
      %v742 = vor.u32 %v737, %v741
      %v744 = vshll.u32 %v631, 16
      %v746 = vrot.slane %v744, 1
      %v747 = vsel %vm639, %v742, %v746
      %v749 = vshrl.u32 %v616, 16
      %v751 = vshll.u32 %v616, 16
      %v753 = vrot.slane %v751, 1
      %v754 = vor.u32 %v749, %v753
      %v756 = vshll.u32 %v632, 16
      %v758 = vrot.slane %v756, 1
      %v759 = vsel %vm639, %v754, %v758
      %v761 = vshrl.u32 %v617, 16
      %v763 = vshll.u32 %v617, 16
      %v765 = vrot.slane %v763, 1
      %v766 = vor.u32 %v761, %v765
      %v768 = vshll.u32 %v633, 16
      %v770 = vrot.slane %v768, 1
      %v771 = vsel %vm639, %v766, %v770
      %v773 = vshrl.u32 %v618, 16
      %v775 = vshll.u32 %v618, 16
      %v777 = vrot.slane %v775, 1
      %v778 = vor.u32 %v773, %v777
      %v780 = vshll.u32 %v634, 16
      %v782 = vrot.slane %v780, 1
      %v783 = vsel %vm639, %v778, %v782
      %v785 = vshrl.u32 %v619, 16
      %v787 = vshll.u32 %v619, 16
      %v789 = vrot.slane %v787, 1
      %v790 = vor.u32 %v785, %v789
      %v792 = vshll.u32 %v635, 16
      %v794 = vrot.slane %v792, 1
      %v795 = vsel %vm639, %v790, %v794
      %v797 = vshrl.u32 %v620, 16
      %v799 = vshll.u32 %v620, 16
      %v801 = vrot.slane %v799, 1
      %v802 = vor.u32 %v797, %v801
      %v804 = vshll.u32 %v636, 16
      %v806 = vrot.slane %v804, 1
      %v807 = vsel %vm639, %v802, %v806
      %v809 = vshrl.u32 %v621, 16
      %v811 = vshll.u32 %v621, 16
      %v813 = vrot.slane %v811, 1
      %v814 = vor.u32 %v809, %v813
      %v816 = vshll.u32 %v637, 16
      %v818 = vrot.slane %v816, 1
      %v819 = vsel %vm639, %v814, %v818
      %v821 = vshrl.u32 %v622, 16
      %v823 = vshll.u32 %v622, 16
      %v825 = vrot.slane %v823, 1
      %v826 = vor.u32 %v821, %v825
      %v828 = vshll.u32 %v638, 16
      %v830 = vrot.slane %v828, 1
      %v831 = vsel %vm639, %v826, %v830
      %832 = vrot.lane.b32.xlu0 %v651, 4
      %v833 = vpop.permute.xlu0 %832
      %834 = vrot.lane.b32.xlu0 %v663, 4
      %v835 = vpop.permute.xlu0 %834
      %836 = vrot.lane.b32.xlu0 %v675, 4
      %v837 = vpop.permute.xlu0 %836
      %838 = vrot.lane.b32.xlu0 %v687, 4
      %v839 = vpop.permute.xlu0 %838
      %840 = vrot.lane.b32.xlu0 %v699, 4
      %v841 = vpop.permute.xlu0 %840
      %842 = vrot.lane.b32.xlu0 %v711, 4
      %v843 = vpop.permute.xlu0 %842
      %844 = vrot.lane.b32.xlu0 %v723, 4
      %v845 = vpop.permute.xlu0 %844
      %846 = vrot.lane.b32.xlu0 %v735, 4
      %v847 = vpop.permute.xlu0 %846
      %848 = vrot.lane.b32.xlu0 %v747, 4
      %v849 = vpop.permute.xlu0 %848
      %850 = vrot.lane.b32.xlu0 %v759, 4
      %v851 = vpop.permute.xlu0 %850
      %852 = vrot.lane.b32.xlu0 %v771, 4
      %v853 = vpop.permute.xlu0 %852
      %854 = vrot.lane.b32.xlu0 %v783, 4
      %v855 = vpop.permute.xlu0 %854
      %856 = vrot.lane.b32.xlu0 %v795, 4
      %v857 = vpop.permute.xlu0 %856
      %858 = vrot.lane.b32.xlu0 %v807, 4
      %v859 = vpop.permute.xlu0 %858
      %860 = vrot.lane.b32.xlu0 %v819, 4
      %v861 = vpop.permute.xlu0 %860
      %862 = vrot.lane.b32.xlu0 %v831, 4
      %v863 = vpop.permute.xlu0 %862
      %vm896 = vcmask 1046528
      %v897 = vrot.slane %v607, 1
      %v898 = vrot.slane %v623, 1
      %v899 = vsel %vm896, %v897, %v898
      %v900 = vrot.slane %v608, 1
      %v901 = vrot.slane %v624, 1
      %v902 = vsel %vm896, %v900, %v901
      %v903 = vrot.slane %v609, 1
      %v904 = vrot.slane %v625, 1
      %v905 = vsel %vm896, %v903, %v904
      %v906 = vrot.slane %v610, 1
      %v907 = vrot.slane %v626, 1
      %v908 = vsel %vm896, %v906, %v907
      %v909 = vrot.slane %v611, 1
      %v910 = vrot.slane %v627, 1
      %v911 = vsel %vm896, %v909, %v910
      %v912 = vrot.slane %v612, 1
      %v913 = vrot.slane %v628, 1
      %v914 = vsel %vm896, %v912, %v913
      %v915 = vrot.slane %v613, 1
      %v916 = vrot.slane %v629, 1
      %v917 = vsel %vm896, %v915, %v916
      %v918 = vrot.slane %v614, 1
      %v919 = vrot.slane %v630, 1
      %v920 = vsel %vm896, %v918, %v919
      %v921 = vrot.slane %v615, 1
      %v922 = vrot.slane %v631, 1
      %v923 = vsel %vm896, %v921, %v922
      %v924 = vrot.slane %v616, 1
      %v925 = vrot.slane %v632, 1
      %v926 = vsel %vm896, %v924, %v925
      %v927 = vrot.slane %v617, 1
      %v928 = vrot.slane %v633, 1
      %v929 = vsel %vm896, %v927, %v928
      %v930 = vrot.slane %v618, 1
      %v931 = vrot.slane %v634, 1
      %v932 = vsel %vm896, %v930, %v931
      %v933 = vrot.slane %v619, 1
      %v934 = vrot.slane %v635, 1
      %v935 = vsel %vm896, %v933, %v934
      %v936 = vrot.slane %v620, 1
      %v937 = vrot.slane %v636, 1
      %v938 = vsel %vm896, %v936, %v937
      %v939 = vrot.slane %v621, 1
      %v940 = vrot.slane %v637, 1
      %v941 = vsel %vm896, %v939, %v940
      %v942 = vrot.slane %v622, 1
      %v943 = vrot.slane %v638, 1
      %v944 = vsel %vm896, %v942, %v943
      %945 = vrot.lane.b32.xlu0 %v899, 8
      %v946 = vpop.permute.xlu0 %945
      %947 = vrot.lane.b32.xlu0 %v902, 8
      %v948 = vpop.permute.xlu0 %947
      %949 = vrot.lane.b32.xlu0 %v905, 8
      %v950 = vpop.permute.xlu0 %949
      %951 = vrot.lane.b32.xlu0 %v908, 8
      %v952 = vpop.permute.xlu0 %951
      %953 = vrot.lane.b32.xlu0 %v911, 8
      %v954 = vpop.permute.xlu0 %953
      %955 = vrot.lane.b32.xlu0 %v914, 8
      %v956 = vpop.permute.xlu0 %955
      %957 = vrot.lane.b32.xlu0 %v917, 8
      %v958 = vpop.permute.xlu0 %957
      %959 = vrot.lane.b32.xlu0 %v920, 8
      %v960 = vpop.permute.xlu0 %959
      %961 = vrot.lane.b32.xlu0 %v923, 8
      %v962 = vpop.permute.xlu0 %961
      %963 = vrot.lane.b32.xlu0 %v926, 8
      %v964 = vpop.permute.xlu0 %963
      %965 = vrot.lane.b32.xlu0 %v929, 8
      %v966 = vpop.permute.xlu0 %965
      %967 = vrot.lane.b32.xlu0 %v932, 8
      %v968 = vpop.permute.xlu0 %967
      %969 = vrot.lane.b32.xlu0 %v935, 8
      %v970 = vpop.permute.xlu0 %969
      %971 = vrot.lane.b32.xlu0 %v938, 8
      %v972 = vpop.permute.xlu0 %971
      %973 = vrot.lane.b32.xlu0 %v941, 8
      %v974 = vpop.permute.xlu0 %973
      %975 = vrot.lane.b32.xlu0 %v944, 8
      %v976 = vpop.permute.xlu0 %975
      %vm977 = vcmask 31744
      %v979 = vsel %vm977, %v607, %v833
      %v981 = vsel %vm977, %v608, %v835
      %v983 = vsel %vm977, %v609, %v837
      %v985 = vsel %vm977, %v610, %v839
      %v987 = vsel %vm977, %v611, %v841
      %v989 = vsel %vm977, %v612, %v843
      %v991 = vsel %vm977, %v613, %v845
      %v993 = vsel %vm977, %v614, %v847
      %v995 = vsel %vm977, %v615, %v849
      %v997 = vsel %vm977, %v616, %v851
      %v999 = vsel %vm977, %v617, %v853
      %v1001 = vsel %vm977, %v618, %v855
      %v1003 = vsel %vm977, %v619, %v857
      %v1005 = vsel %vm977, %v620, %v859
      %v1007 = vsel %vm977, %v621, %v861
      %v1009 = vsel %vm977, %v622, %v863
      %vm1010 = vcmask 64512
      %v1012 = vsel %vm1010, %v979, %v946
      %v1014 = vsel %vm1010, %v981, %v948
      %v1016 = vsel %vm1010, %v983, %v950
      %v1018 = vsel %vm1010, %v985, %v952
      %v1020 = vsel %vm1010, %v987, %v954
      %v1022 = vsel %vm1010, %v989, %v956
      %v1024 = vsel %vm1010, %v991, %v958
      %v1026 = vsel %vm1010, %v993, %v960
      %v1028 = vsel %vm1010, %v995, %v962
      %v1030 = vsel %vm1010, %v997, %v964
      %v1032 = vsel %vm1010, %v999, %v966
      %v1034 = vsel %vm1010, %v1001, %v968
      %v1036 = vsel %vm1010, %v1003, %v970
      %v1038 = vsel %vm1010, %v1005, %v972
      %v1040 = vsel %vm1010, %v1007, %v974
      %v1042 = vsel %vm1010, %v1009, %v976
      %v1059 = vunpack.c.l.b16 %v1012
      %v1060 = vunpack.c.h.b16 %v1012
      %v1061 = vunpack.c.l.b16 %v1014
      %v1062 = vunpack.c.h.b16 %v1014
      %v1063 = vunpack.c.l.b16 %v1016
      %v1064 = vunpack.c.h.b16 %v1016
      %v1065 = vunpack.c.l.b16 %v1018
      %v1066 = vunpack.c.h.b16 %v1018
      %v1067 = vunpack.c.l.b16 %v1020
      %v1068 = vunpack.c.h.b16 %v1020
      %v1069 = vunpack.c.l.b16 %v1022
      %v1070 = vunpack.c.h.b16 %v1022
      %v1071 = vunpack.c.l.b16 %v1024
      %v1072 = vunpack.c.h.b16 %v1024
      %v1073 = vunpack.c.l.b16 %v1026
      %v1074 = vunpack.c.h.b16 %v1026
      %v1075 = vunpack.c.l.b16 %v1028
      %v1076 = vunpack.c.h.b16 %v1028
      %v1077 = vunpack.c.l.b16 %v1030
      %v1078 = vunpack.c.h.b16 %v1030
      %v1079 = vunpack.c.l.b16 %v1032
      %v1080 = vunpack.c.h.b16 %v1032
      %v1081 = vunpack.c.l.b16 %v1034
      %v1082 = vunpack.c.h.b16 %v1034
      %v1083 = vunpack.c.l.b16 %v1036
      %v1084 = vunpack.c.h.b16 %v1036
      %v1085 = vunpack.c.l.b16 %v1038
      %v1086 = vunpack.c.h.b16 %v1038
      %v1087 = vunpack.c.l.b16 %v1040
      %v1088 = vunpack.c.h.b16 %v1040
      %v1089 = vunpack.c.l.b16 %v1042
      %v1090 = vunpack.c.h.b16 %v1042
      %v1091 = vpack.c.b16 %v1059, %v1059
      %v1092 = vpack.c.b16 %v1060, %v1060
      %v1093 = vpack.c.b16 %v1061, %v1061
      %v1094 = vpack.c.b16 %v1062, %v1062
      %v1095 = vpack.c.b16 %v1063, %v1063
      %v1096 = vpack.c.b16 %v1064, %v1064
      %v1097 = vpack.c.b16 %v1065, %v1065
      %v1098 = vpack.c.b16 %v1066, %v1066
      %v1099 = vpack.c.b16 %v1067, %v1067
      %v1100 = vpack.c.b16 %v1068, %v1068
      %v1101 = vpack.c.b16 %v1069, %v1069
      %v1102 = vpack.c.b16 %v1070, %v1070
      %v1103 = vpack.c.b16 %v1071, %v1071
      %v1104 = vpack.c.b16 %v1072, %v1072
      %v1105 = vpack.c.b16 %v1073, %v1073
      %v1106 = vpack.c.b16 %v1074, %v1074
      %v1107 = vpack.c.b16 %v1075, %v1075
      %v1108 = vpack.c.b16 %v1076, %v1076
      %v1109 = vpack.c.b16 %v1077, %v1077
      %v1110 = vpack.c.b16 %v1078, %v1078
      %v1111 = vpack.c.b16 %v1079, %v1079
      %v1112 = vpack.c.b16 %v1080, %v1080
      %v1113 = vpack.c.b16 %v1081, %v1081
      %v1114 = vpack.c.b16 %v1082, %v1082
      %v1115 = vpack.c.b16 %v1083, %v1083
      %v1116 = vpack.c.b16 %v1084, %v1084
      %v1117 = vpack.c.b16 %v1085, %v1085
      %v1118 = vpack.c.b16 %v1086, %v1086
      %v1119 = vpack.c.b16 %v1087, %v1087
      %v1120 = vpack.c.b16 %v1088, %v1088
      %v1121 = vpack.c.b16 %v1089, %v1089
      %v1122 = vpack.c.b16 %v1090, %v1090
      %vm1155 = vcmask 93184
      %1156 = vst.msk [vmem:[#allocation2] sm:$0xf] %vm1155, %v1091
      %1157 = vst.msk [vmem:[#allocation2 + $0x4] sm:$0xf] %vm1155, %v1092
      %1158 = vst.msk [vmem:[#allocation2 + $0x8] sm:$0xf] %vm1155, %v1093
      %1159 = vst.msk [vmem:[#allocation2 + $0xc] sm:$0xf] %vm1155, %v1094
      %1160 = vst.msk [vmem:[#allocation2 + $0x10] sm:$0xf] %vm1155, %v1091
      %1161 = vst.msk [vmem:[#allocation2 + $0x14] sm:$0xf] %vm1155, %v1092
      %1162 = vst.msk [vmem:[#allocation2 + $0x18] sm:$0xf] %vm1155, %v1095
      %1163 = vst.msk [vmem:[#allocation2 + $0x1c] sm:$0xf] %vm1155, %v1096
      %1164 = vst.msk [vmem:[#allocation2 + $0x20] sm:$0xf] %vm1155, %v1097
      %1165 = vst.msk [vmem:[#allocation2 + $0x24] sm:$0xf] %vm1155, %v1098
      %1166 = vst.msk [vmem:[#allocation2 + $0x28] sm:$0xf] %vm1155, %v1099
      %1167 = vst.msk [vmem:[#allocation2 + $0x2c] sm:$0xf] %vm1155, %v1100
      %1168 = vst.msk [vmem:[#allocation2 + $0x30] sm:$0xf] %vm1155, %v1101
      %1169 = vst.msk [vmem:[#allocation2 + $0x34] sm:$0xf] %vm1155, %v1102
      %1170 = vst.msk [vmem:[#allocation2 + $0x38] sm:$0xf] %vm1155, %v1103
      %1171 = vst.msk [vmem:[#allocation2 + $0x3c] sm:$0xf] %vm1155, %v1104
      %1172 = vst.msk [vmem:[#allocation2 + $0x40] sm:$0xf] %vm1155, %v1105
      %1173 = vst.msk [vmem:[#allocation2 + $0x44] sm:$0xf] %vm1155, %v1106
      %1174 = vst.msk [vmem:[#allocation2 + $0x48] sm:$0xf] %vm1155, %v1107
      %1175 = vst.msk [vmem:[#allocation2 + $0x4c] sm:$0xf] %vm1155, %v1108
      %1176 = vst.msk [vmem:[#allocation2 + $0x50] sm:$0xf] %vm1155, %v1109
      %1177 = vst.msk [vmem:[#allocation2 + $0x54] sm:$0xf] %vm1155, %v1110
      %1178 = vst.msk [vmem:[#allocation2 + $0x58] sm:$0xf] %vm1155, %v1111
      %1179 = vst.msk [vmem:[#allocation2 + $0x5c] sm:$0xf] %vm1155, %v1112
      %1180 = vst.msk [vmem:[#allocation2 + $0x60] sm:$0xf] %vm1155, %v1113
      %1181 = vst.msk [vmem:[#allocation2 + $0x64] sm:$0xf] %vm1155, %v1114
      %1182 = vst.msk [vmem:[#allocation2 + $0x68] sm:$0xf] %vm1155, %v1115
      %1183 = vst.msk [vmem:[#allocation2 + $0x6c] sm:$0xf] %vm1155, %v1116
      %1184 = vst.msk [vmem:[#allocation2 + $0x70] sm:$0xf] %vm1155, %v1117
      %1185 = vst.msk [vmem:[#allocation2 + $0x74] sm:$0xf] %vm1155, %v1118
      %1186 = vst.msk [vmem:[#allocation2 + $0x78] sm:$0xf] %vm1155, %v1119
      %1187 = vst.msk [vmem:[#allocation2 + $0x7c] sm:$0xf] %vm1155, %v1120
      %1188 = vst.msk [vmem:[#allocation2 + $0x80] sm:$0xf] %vm1155, %v1121
      %1189 = vst.msk [vmem:[#allocation2 + $0x84] sm:$0xf] %vm1155, %v1122
      %1190 = vst.msk [vmem:[#allocation2 + $0x88] sm:$0xf] %vm1155, %v1119
      %1191 = vst.msk [vmem:[#allocation2 + $0x8c] sm:$0xf] %vm1155, %v1120
      %v1192 = vld [vmem:[%s1] sm:$0xf]
      %v1193 = vld [vmem:[%s1 + $0x4] sm:$0x3]
      %v1194 = vld [vmem:[%s1 + $0x8] sm:$0xf]
      %v1195 = vld [vmem:[%s1 + $0xc] sm:$0x3]
      %v1196 = vld [vmem:[%s1 + $0x10] sm:$0xf]
      %v1197 = vld [vmem:[%s1 + $0x14] sm:$0x3]
      %s1198 = smul.u32 0, 2
      %s1199 = smul.addr %s1198, 4
      %s1200 = scalar_lea.vmem [#allocation2], %s1199
      %v1201 = vld [vmem:[%s1200] sm:$0xf]
      %v1202 = vld [vmem:[%s1200 + $0x4] sm:$0xf]
      %v1203 = vld [vmem:[%s1200 + $0x8] sm:$0xf]
      %v1204 = vld [vmem:[%s1200 + $0xc] sm:$0xf]
      %v1205 = vld [vmem:[%s1200 + $0x10] sm:$0xf]
      %v1206 = vld [vmem:[%s1200 + $0x14] sm:$0xf]
      %v1207 = vld [vmem:[%s1200 + $0x18] sm:$0xf]
      %v1208 = vld [vmem:[%s1200 + $0x1c] sm:$0xf]
      %v1209 = vld [vmem:[%s1200 + $0x20] sm:$0xf]
      %v1210 = vld [vmem:[%s1200 + $0x24] sm:$0xf]
      %v1211 = vld [vmem:[%s1200 + $0x28] sm:$0xf]
      %v1212 = vld [vmem:[%s1200 + $0x2c] sm:$0xf]
      %v1213 = vld [vmem:[%s1200 + $0x30] sm:$0xf]
      %v1214 = vld [vmem:[%s1200 + $0x34] sm:$0xf]
      %v1215 = vld [vmem:[%s1200 + $0x38] sm:$0xf]
      %v1216 = vld [vmem:[%s1200 + $0x3c] sm:$0xf]
      %v1217 = vld [vmem:[%s1200 + $0x40] sm:$0xf]
      %v1218 = vld [vmem:[%s1200 + $0x44] sm:$0xf]
      %v1219 = vld [vmem:[%s1200 + $0x48] sm:$0xf]
      %v1220 = vld [vmem:[%s1200 + $0x4c] sm:$0xf]
      %v1221 = vld [vmem:[%s1200 + $0x50] sm:$0xf]
      %v1222 = vld [vmem:[%s1200 + $0x54] sm:$0xf]
      %v1223 = vld [vmem:[%s1200 + $0x58] sm:$0xf]
      %v1224 = vld [vmem:[%s1200 + $0x5c] sm:$0xf]
      %v1225 = vld [vmem:[%s1200 + $0x60] sm:$0xf]
      %v1226 = vld [vmem:[%s1200 + $0x64] sm:$0xf]
      %v1227 = vld [vmem:[%s1200 + $0x68] sm:$0xf]
      %v1228 = vld [vmem:[%s1200 + $0x6c] sm:$0xf]
      %v1229 = vld [vmem:[%s1200 + $0x70] sm:$0xf]
      %v1230 = vld [vmem:[%s1200 + $0x74] sm:$0xf]
      %v1231 = vld [vmem:[%s1200 + $0x78] sm:$0xf]
      %v1232 = vld [vmem:[%s1200 + $0x7c] sm:$0xf]
      %s1233 = sadd.s32 0, 1
      %s1234 = smul.u32 %s1233, 2
      %s1235 = smul.addr %s1234, 4
      %s1236 = scalar_lea.vmem [#allocation2], %s1235
      %v1237 = vld [vmem:[%s1236] sm:$0xf]
      %v1238 = vld [vmem:[%s1236 + $0x4] sm:$0xf]
      %v1239 = vld [vmem:[%s1236 + $0x8] sm:$0xf]
      %v1240 = vld [vmem:[%s1236 + $0xc] sm:$0xf]
      %v1241 = vld [vmem:[%s1236 + $0x10] sm:$0xf]
      %v1242 = vld [vmem:[%s1236 + $0x14] sm:$0xf]
      %v1243 = vld [vmem:[%s1236 + $0x18] sm:$0xf]
      %v1244 = vld [vmem:[%s1236 + $0x1c] sm:$0xf]
      %v1245 = vld [vmem:[%s1236 + $0x20] sm:$0xf]
      %v1246 = vld [vmem:[%s1236 + $0x24] sm:$0xf]
      %v1247 = vld [vmem:[%s1236 + $0x28] sm:$0xf]
      %v1248 = vld [vmem:[%s1236 + $0x2c] sm:$0xf]
      %v1249 = vld [vmem:[%s1236 + $0x30] sm:$0xf]
      %v1250 = vld [vmem:[%s1236 + $0x34] sm:$0xf]
      %v1251 = vld [vmem:[%s1236 + $0x38] sm:$0xf]
      %v1252 = vld [vmem:[%s1236 + $0x3c] sm:$0xf]
      %v1253 = vld [vmem:[%s1236 + $0x40] sm:$0xf]
      %v1254 = vld [vmem:[%s1236 + $0x44] sm:$0xf]
      %v1255 = vld [vmem:[%s1236 + $0x48] sm:$0xf]
      %v1256 = vld [vmem:[%s1236 + $0x4c] sm:$0xf]
      %v1257 = vld [vmem:[%s1236 + $0x50] sm:$0xf]
      %v1258 = vld [vmem:[%s1236 + $0x54] sm:$0xf]
      %v1259 = vld [vmem:[%s1236 + $0x58] sm:$0xf]
      %v1260 = vld [vmem:[%s1236 + $0x5c] sm:$0xf]
      %v1261 = vld [vmem:[%s1236 + $0x60] sm:$0xf]
      %v1262 = vld [vmem:[%s1236 + $0x64] sm:$0xf]
      %v1263 = vld [vmem:[%s1236 + $0x68] sm:$0xf]
      %v1264 = vld [vmem:[%s1236 + $0x6c] sm:$0xf]
      %v1265 = vld [vmem:[%s1236 + $0x70] sm:$0xf]
      %v1266 = vld [vmem:[%s1236 + $0x74] sm:$0xf]
      %v1267 = vld [vmem:[%s1236 + $0x78] sm:$0xf]
      %v1268 = vld [vmem:[%s1236 + $0x7c] sm:$0xf]
      %v1301 = vunpack.c.l.b16 %v1237
      %v1302 = vunpack.c.l.b16 %v1238
      %v1303 = vunpack.c.l.b16 %v1239
      %v1304 = vunpack.c.l.b16 %v1240
      %v1305 = vunpack.c.l.b16 %v1241
      %v1306 = vunpack.c.l.b16 %v1242
      %v1307 = vunpack.c.l.b16 %v1243
      %v1308 = vunpack.c.l.b16 %v1244
      %v1309 = vunpack.c.l.b16 %v1245
      %v1310 = vunpack.c.l.b16 %v1246
      %v1311 = vunpack.c.l.b16 %v1247
      %v1312 = vunpack.c.l.b16 %v1248
      %v1313 = vunpack.c.l.b16 %v1249
      %v1314 = vunpack.c.l.b16 %v1250
      %v1315 = vunpack.c.l.b16 %v1251
      %v1316 = vunpack.c.l.b16 %v1252
      %v1317 = vunpack.c.l.b16 %v1253
      %v1318 = vunpack.c.l.b16 %v1254
      %v1319 = vunpack.c.l.b16 %v1255
      %v1320 = vunpack.c.l.b16 %v1256
      %v1321 = vunpack.c.l.b16 %v1257
      %v1322 = vunpack.c.l.b16 %v1258
      %v1323 = vunpack.c.l.b16 %v1259
      %v1324 = vunpack.c.l.b16 %v1260
      %v1325 = vunpack.c.l.b16 %v1261
      %v1326 = vunpack.c.l.b16 %v1262
      %v1327 = vunpack.c.l.b16 %v1263
      %v1328 = vunpack.c.l.b16 %v1264
      %v1329 = vunpack.c.l.b16 %v1265
      %v1330 = vunpack.c.l.b16 %v1266
      %v1331 = vunpack.c.l.b16 %v1267
      %v1332 = vunpack.c.l.b16 %v1268
      %v1333 = vpack.c.b16 %v1302, %v1301
      %v1334 = vpack.c.b16 %v1304, %v1303
      %v1335 = vpack.c.b16 %v1306, %v1305
      %v1336 = vpack.c.b16 %v1308, %v1307
      %v1337 = vpack.c.b16 %v1310, %v1309
      %v1338 = vpack.c.b16 %v1312, %v1311
      %v1339 = vpack.c.b16 %v1314, %v1313
      %v1340 = vpack.c.b16 %v1316, %v1315
      %v1341 = vpack.c.b16 %v1318, %v1317
      %v1342 = vpack.c.b16 %v1320, %v1319
      %v1343 = vpack.c.b16 %v1322, %v1321
      %v1344 = vpack.c.b16 %v1324, %v1323
      %v1345 = vpack.c.b16 %v1326, %v1325
      %v1346 = vpack.c.b16 %v1328, %v1327
      %v1347 = vpack.c.b16 %v1330, %v1329
      %v1348 = vpack.c.b16 %v1332, %v1331
      %v1351 = vunpack.c.l.b16 %v1194
      %v1352 = vunpack.c.l.b16 %v1195
      %v1353 = vpack.c.b16 %v1352, %v1351
      %vm1354 = vcmask 97280
      %v1356 = vsel %vm1354, %v1333, 0
      %v1359 = vsel %vm1354, %v1334, 0
      %v1362 = vsel %vm1354, %v1335, 0
      %v1365 = vsel %vm1354, %v1336, 0
      %v1368 = vsel %vm1354, %v1337, 0
      %v1371 = vsel %vm1354, %v1338, 0
      %v1374 = vsel %vm1354, %v1339, 0
      %v1377 = vsel %vm1354, %v1340, 0
      %v1380 = vsel %vm1354, %v1341, 0
      %v1383 = vsel %vm1354, %v1342, 0
      %v1386 = vsel %vm1354, %v1343, 0
      %v1389 = vsel %vm1354, %v1344, 0
      %v1392 = vsel %vm1354, %v1345, 0
      %v1395 = vsel %vm1354, %v1346, 0
      %v1398 = vsel %vm1354, %v1347, 0
      %v1401 = vsel %vm1354, %v1348, 0
      %vm1403 = vcmask 1045504
      %v1405 = vsel %vm1403, %v1353, 0
      %1407 = vmatprep.subr.bf16.mxu0 0
      %1408 = vmatpush1.bf16.msra.mxu0 0
      %1409 = vmatprep.subr.bf16.mxu0 0
      %1410 = vmatpush1.bf16.msra.mxu0 0
      %1411 = vmatprep.subr.bf16.mxu0 0
      %1412 = vmatpush1.bf16.msra.mxu0 0
      %1413 = vmatprep.subr.bf16.mxu0 0
      %1414 = vmatpush1.bf16.msra.mxu0 0
      %1415 = vmatprep.subr.bf16.mxu0 0
      %1416 = vmatpush1.bf16.msra.mxu0 0
      %1417 = vmatprep.subr.bf16.mxu0 0
      %1418 = vmatpush1.bf16.msra.mxu0 0
      %1419 = vmatprep.subr.bf16.mxu0 0
      %1420 = vmatpush1.bf16.msra.mxu0 0
      %1421 = vmatprep.subr.bf16.mxu0 0
      %1422 = vmatpush1.bf16.msra.mxu0 %v1405
      %1423 = vmatprep.subr.bf16.mxu0 0
      %1424 = vmatpush2.bf16.msra.mxu0 0
      %1425 = vmatprep.subr.bf16.mxu0 0
      %1426 = vmatpush2.bf16.msra.mxu0 0
      %1427 = vmatprep.subr.bf16.mxu0 0
      %1428 = vmatpush2.bf16.msra.mxu0 0
      %1429 = vmatprep.subr.bf16.mxu0 0
      %1430 = vmatpush2.bf16.msra.mxu0 0
      %1431 = vmatprep.subr.bf16.mxu0 0
      %1432 = vmatpush2.bf16.msra.mxu0 0
      %1433 = vmatprep.subr.bf16.mxu0 0
      %1434 = vmatpush2.bf16.msra.mxu0 0
      %1435 = vmatprep.subr.bf16.mxu0 0
      %1436 = vmatpush2.bf16.msra.mxu0 0
      %1437 = vmatprep.subr.bf16.mxu0 0
      %1438 = vmatpush2.bf16.msra.mxu0 0
      %1439 = vmatprep.mubr.bf16.mxu0 0
      %1440 = vmatmul.mubr.bf16.gmra.mxu0 %v1356
      %v1441 = vpop.f32.mrf.mxu0
      %v1442 = vadd.f32 0.0, %v1441
      %v1443 = vpop.f32.mrf.mxu0
      %v1444 = vpop.f32.mrf.mxu0
      %v1445 = vadd.f32 0.0, %v1444
      %v1446 = vpop.f32.mrf.mxu0
      %1447 = vmatprep.mubr.bf16.mxu0 0
      %1448 = vmatmul.mubr.bf16.gmra.mxu0 %v1359
      %v1449 = vpop.f32.mrf.mxu0
      %v1450 = vadd.f32 0.0, %v1449
      %v1451 = vpop.f32.mrf.mxu0
      %v1452 = vpop.f32.mrf.mxu0
      %v1453 = vadd.f32 0.0, %v1452
      %v1454 = vpop.f32.mrf.mxu0
      %1455 = vmatprep.mubr.bf16.mxu0 0
      %1456 = vmatmul.mubr.bf16.gmra.mxu0 %v1362
      %v1457 = vpop.f32.mrf.mxu0
      %v1458 = vadd.f32 0.0, %v1457
      %v1459 = vpop.f32.mrf.mxu0
      %v1460 = vpop.f32.mrf.mxu0
      %v1461 = vadd.f32 0.0, %v1460
      %v1462 = vpop.f32.mrf.mxu0
      %1463 = vmatprep.mubr.bf16.mxu0 0
      %1464 = vmatmul.mubr.bf16.gmra.mxu0 %v1365
      %v1465 = vpop.f32.mrf.mxu0
      %v1466 = vadd.f32 0.0, %v1465
      %v1467 = vpop.f32.mrf.mxu0
      %v1468 = vpop.f32.mrf.mxu0
      %v1469 = vadd.f32 0.0, %v1468
      %v1470 = vpop.f32.mrf.mxu0
      %1471 = vmatprep.mubr.bf16.mxu0 0
      %1472 = vmatmul.mubr.bf16.gmra.mxu0 %v1368
      %v1473 = vpop.f32.mrf.mxu0
      %v1474 = vadd.f32 0.0, %v1473
      %v1475 = vpop.f32.mrf.mxu0
      %v1476 = vpop.f32.mrf.mxu0
      %v1477 = vadd.f32 0.0, %v1476
      %v1478 = vpop.f32.mrf.mxu0
      %1479 = vmatprep.mubr.bf16.mxu0 0
      %1480 = vmatmul.mubr.bf16.gmra.mxu0 %v1371
      %v1481 = vpop.f32.mrf.mxu0
      %v1482 = vadd.f32 0.0, %v1481
      %v1483 = vpop.f32.mrf.mxu0
      %v1484 = vpop.f32.mrf.mxu0
      %v1485 = vadd.f32 0.0, %v1484
      %v1486 = vpop.f32.mrf.mxu0
      %1487 = vmatprep.mubr.bf16.mxu0 0
      %1488 = vmatmul.mubr.bf16.gmra.mxu0 %v1374
      %v1489 = vpop.f32.mrf.mxu0
      %v1490 = vadd.f32 0.0, %v1489
      %v1491 = vpop.f32.mrf.mxu0
      %v1492 = vpop.f32.mrf.mxu0
      %v1493 = vadd.f32 0.0, %v1492
      %v1494 = vpop.f32.mrf.mxu0
      %1495 = vmatprep.mubr.bf16.mxu0 0
      %1496 = vmatmul.mubr.bf16.gmra.mxu0 %v1377
      %v1497 = vpop.f32.mrf.mxu0
      %v1498 = vadd.f32 0.0, %v1497
      %v1499 = vpop.f32.mrf.mxu0
      %v1500 = vpop.f32.mrf.mxu0
      %v1501 = vadd.f32 0.0, %v1500
      %v1502 = vpop.f32.mrf.mxu0
      %1503 = vmatprep.mubr.bf16.mxu0 0
      %1504 = vmatmul.mubr.bf16.gmra.mxu0 %v1380
      %v1505 = vpop.f32.mrf.mxu0
      %v1506 = vadd.f32 0.0, %v1505
      %v1507 = vpop.f32.mrf.mxu0
      %v1508 = vpop.f32.mrf.mxu0
      %v1509 = vadd.f32 0.0, %v1508
      %v1510 = vpop.f32.mrf.mxu0
      %1511 = vmatprep.mubr.bf16.mxu0 0
      %1512 = vmatmul.mubr.bf16.gmra.mxu0 %v1383
      %v1513 = vpop.f32.mrf.mxu0
      %v1514 = vadd.f32 0.0, %v1513
      %v1515 = vpop.f32.mrf.mxu0
      %v1516 = vpop.f32.mrf.mxu0
      %v1517 = vadd.f32 0.0, %v1516
      %v1518 = vpop.f32.mrf.mxu0
      %1519 = vmatprep.mubr.bf16.mxu0 0
      %1520 = vmatmul.mubr.bf16.gmra.mxu0 %v1386
      %v1521 = vpop.f32.mrf.mxu0
      %v1522 = vadd.f32 0.0, %v1521
      %v1523 = vpop.f32.mrf.mxu0
      %v1524 = vpop.f32.mrf.mxu0
      %v1525 = vadd.f32 0.0, %v1524
      %v1526 = vpop.f32.mrf.mxu0
      %1527 = vmatprep.mubr.bf16.mxu0 0
      %1528 = vmatmul.mubr.bf16.gmra.mxu0 %v1389
      %v1529 = vpop.f32.mrf.mxu0
      %v1530 = vadd.f32 0.0, %v1529
      %v1531 = vpop.f32.mrf.mxu0
      %v1532 = vpop.f32.mrf.mxu0
      %v1533 = vadd.f32 0.0, %v1532
      %v1534 = vpop.f32.mrf.mxu0
      %1535 = vmatprep.mubr.bf16.mxu0 0
      %1536 = vmatmul.mubr.bf16.gmra.mxu0 %v1392
      %v1537 = vpop.f32.mrf.mxu0
      %v1538 = vadd.f32 0.0, %v1537
      %v1539 = vpop.f32.mrf.mxu0
      %v1540 = vpop.f32.mrf.mxu0
      %v1541 = vadd.f32 0.0, %v1540
      %v1542 = vpop.f32.mrf.mxu0
      %1543 = vmatprep.mubr.bf16.mxu0 0
      %1544 = vmatmul.mubr.bf16.gmra.mxu0 %v1395
      %v1545 = vpop.f32.mrf.mxu0
      %v1546 = vadd.f32 0.0, %v1545
      %v1547 = vpop.f32.mrf.mxu0
      %v1548 = vpop.f32.mrf.mxu0
      %v1549 = vadd.f32 0.0, %v1548
      %v1550 = vpop.f32.mrf.mxu0
      %1551 = vmatprep.mubr.bf16.mxu0 0
      %1552 = vmatmul.mubr.bf16.gmra.mxu0 %v1398
      %v1553 = vpop.f32.mrf.mxu0
      %v1554 = vadd.f32 0.0, %v1553
      %v1555 = vpop.f32.mrf.mxu0
      %v1556 = vpop.f32.mrf.mxu0
      %v1557 = vadd.f32 0.0, %v1556
      %v1558 = vpop.f32.mrf.mxu0
      %1559 = vmatprep.mubr.bf16.mxu0 0
      %1560 = vmatmul.mubr.bf16.gmra.mxu0 %v1401
      %v1561 = vpop.f32.mrf.mxu0
      %v1562 = vadd.f32 0.0, %v1561
      %v1563 = vpop.f32.mrf.mxu0
      %v1564 = vpop.f32.mrf.mxu0
      %v1565 = vadd.f32 0.0, %v1564
      %v1566 = vpop.f32.mrf.mxu0
      %1567 = vdwg.mxu0
      %v1600 = vunpack.c.l.b16 %v1201
      %v1601 = vunpack.c.l.b16 %v1202
      %v1602 = vunpack.c.l.b16 %v1203
      %v1603 = vunpack.c.l.b16 %v1204
      %v1604 = vunpack.c.l.b16 %v1205
      %v1605 = vunpack.c.l.b16 %v1206
      %v1606 = vunpack.c.l.b16 %v1207
      %v1607 = vunpack.c.l.b16 %v1208
      %v1608 = vunpack.c.l.b16 %v1209
      %v1609 = vunpack.c.l.b16 %v1210
      %v1610 = vunpack.c.l.b16 %v1211
      %v1611 = vunpack.c.l.b16 %v1212
      %v1612 = vunpack.c.l.b16 %v1213
      %v1613 = vunpack.c.l.b16 %v1214
      %v1614 = vunpack.c.l.b16 %v1215
      %v1615 = vunpack.c.l.b16 %v1216
      %v1616 = vunpack.c.l.b16 %v1217
      %v1617 = vunpack.c.l.b16 %v1218
      %v1618 = vunpack.c.l.b16 %v1219
      %v1619 = vunpack.c.l.b16 %v1220
      %v1620 = vunpack.c.l.b16 %v1221
      %v1621 = vunpack.c.l.b16 %v1222
      %v1622 = vunpack.c.l.b16 %v1223
      %v1623 = vunpack.c.l.b16 %v1224
      %v1624 = vunpack.c.l.b16 %v1225
      %v1625 = vunpack.c.l.b16 %v1226
      %v1626 = vunpack.c.l.b16 %v1227
      %v1627 = vunpack.c.l.b16 %v1228
      %v1628 = vunpack.c.l.b16 %v1229
      %v1629 = vunpack.c.l.b16 %v1230
      %v1630 = vunpack.c.l.b16 %v1231
      %v1631 = vunpack.c.l.b16 %v1232
      %v1632 = vpack.c.b16 %v1601, %v1600
      %v1633 = vpack.c.b16 %v1603, %v1602
      %v1634 = vpack.c.b16 %v1605, %v1604
      %v1635 = vpack.c.b16 %v1607, %v1606
      %v1636 = vpack.c.b16 %v1609, %v1608
      %v1637 = vpack.c.b16 %v1611, %v1610
      %v1638 = vpack.c.b16 %v1613, %v1612
      %v1639 = vpack.c.b16 %v1615, %v1614
      %v1640 = vpack.c.b16 %v1617, %v1616
      %v1641 = vpack.c.b16 %v1619, %v1618
      %v1642 = vpack.c.b16 %v1621, %v1620
      %v1643 = vpack.c.b16 %v1623, %v1622
      %v1644 = vpack.c.b16 %v1625, %v1624
      %v1645 = vpack.c.b16 %v1627, %v1626
      %v1646 = vpack.c.b16 %v1629, %v1628
      %v1647 = vpack.c.b16 %v1631, %v1630
      %v1650 = vunpack.c.l.b16 %v1192
      %v1651 = vunpack.c.l.b16 %v1193
      %v1652 = vpack.c.b16 %v1651, %v1650
      %v1654 = vsel %vm1354, %v1632, 0
      %v1657 = vsel %vm1354, %v1633, 0
      %v1660 = vsel %vm1354, %v1634, 0
      %v1663 = vsel %vm1354, %v1635, 0
      %v1666 = vsel %vm1354, %v1636, 0
      %v1669 = vsel %vm1354, %v1637, 0
      %v1672 = vsel %vm1354, %v1638, 0
      %v1675 = vsel %vm1354, %v1639, 0
      %v1678 = vsel %vm1354, %v1640, 0
      %v1681 = vsel %vm1354, %v1641, 0
      %v1684 = vsel %vm1354, %v1642, 0
      %v1687 = vsel %vm1354, %v1643, 0
      %v1690 = vsel %vm1354, %v1644, 0
      %v1693 = vsel %vm1354, %v1645, 0
      %v1696 = vsel %vm1354, %v1646, 0
      %v1699 = vsel %vm1354, %v1647, 0
      %v1702 = vsel %vm1403, %v1652, 0
      %1704 = vmatprep.subr.bf16.mxu0 0
      %1705 = vmatpush1.bf16.msra.mxu0 0
      %1706 = vmatprep.subr.bf16.mxu0 0
      %1707 = vmatpush1.bf16.msra.mxu0 0
      %1708 = vmatprep.subr.bf16.mxu0 0
      %1709 = vmatpush1.bf16.msra.mxu0 0
      %1710 = vmatprep.subr.bf16.mxu0 0
      %1711 = vmatpush1.bf16.msra.mxu0 0
      %1712 = vmatprep.subr.bf16.mxu0 0
      %1713 = vmatpush1.bf16.msra.mxu0 0
      %1714 = vmatprep.subr.bf16.mxu0 0
      %1715 = vmatpush1.bf16.msra.mxu0 0
      %1716 = vmatprep.subr.bf16.mxu0 0
      %1717 = vmatpush1.bf16.msra.mxu0 0
      %1718 = vmatprep.subr.bf16.mxu0 0
      %1719 = vmatpush1.bf16.msra.mxu0 %v1702
      %1720 = vmatprep.subr.bf16.mxu0 0
      %1721 = vmatpush2.bf16.msra.mxu0 0
      %1722 = vmatprep.subr.bf16.mxu0 0
      %1723 = vmatpush2.bf16.msra.mxu0 0
      %1724 = vmatprep.subr.bf16.mxu0 0
      %1725 = vmatpush2.bf16.msra.mxu0 0
      %1726 = vmatprep.subr.bf16.mxu0 0
      %1727 = vmatpush2.bf16.msra.mxu0 0
      %1728 = vmatprep.subr.bf16.mxu0 0
      %1729 = vmatpush2.bf16.msra.mxu0 0
      %1730 = vmatprep.subr.bf16.mxu0 0
      %1731 = vmatpush2.bf16.msra.mxu0 0
      %1732 = vmatprep.subr.bf16.mxu0 0
      %1733 = vmatpush2.bf16.msra.mxu0 0
      %1734 = vmatprep.subr.bf16.mxu0 0
      %1735 = vmatpush2.bf16.msra.mxu0 0
      %1736 = vmatprep.mubr.bf16.mxu0 0
      %1737 = vmatmul.mubr.bf16.gmra.mxu0 %v1654
      %v1738 = vpop.f32.mrf.mxu0
      %v1739 = vadd.f32 %v1442, %v1738
      %v1740 = vpop.f32.mrf.mxu0
      %v1741 = vpop.f32.mrf.mxu0
      %v1742 = vadd.f32 %v1445, %v1741
      %v1743 = vpop.f32.mrf.mxu0
      %1744 = vmatprep.mubr.bf16.mxu0 0
      %1745 = vmatmul.mubr.bf16.gmra.mxu0 %v1657
      %v1746 = vpop.f32.mrf.mxu0
      %v1747 = vadd.f32 %v1450, %v1746
      %v1748 = vpop.f32.mrf.mxu0
      %v1749 = vpop.f32.mrf.mxu0
      %v1750 = vadd.f32 %v1453, %v1749
      %v1751 = vpop.f32.mrf.mxu0
      %1752 = vmatprep.mubr.bf16.mxu0 0
      %1753 = vmatmul.mubr.bf16.gmra.mxu0 %v1660
      %v1754 = vpop.f32.mrf.mxu0
      %v1755 = vadd.f32 %v1458, %v1754
      %v1756 = vpop.f32.mrf.mxu0
      %v1757 = vpop.f32.mrf.mxu0
      %v1758 = vadd.f32 %v1461, %v1757
      %v1759 = vpop.f32.mrf.mxu0
      %1760 = vmatprep.mubr.bf16.mxu0 0
      %1761 = vmatmul.mubr.bf16.gmra.mxu0 %v1663
      %v1762 = vpop.f32.mrf.mxu0
      %v1763 = vadd.f32 %v1466, %v1762
      %v1764 = vpop.f32.mrf.mxu0
      %v1765 = vpop.f32.mrf.mxu0
      %v1766 = vadd.f32 %v1469, %v1765
      %v1767 = vpop.f32.mrf.mxu0
      %1768 = vmatprep.mubr.bf16.mxu0 0
      %1769 = vmatmul.mubr.bf16.gmra.mxu0 %v1666
      %v1770 = vpop.f32.mrf.mxu0
      %v1771 = vadd.f32 %v1474, %v1770
      %v1772 = vpop.f32.mrf.mxu0
      %v1773 = vpop.f32.mrf.mxu0
      %v1774 = vadd.f32 %v1477, %v1773
      %v1775 = vpop.f32.mrf.mxu0
      %1776 = vmatprep.mubr.bf16.mxu0 0
      %1777 = vmatmul.mubr.bf16.gmra.mxu0 %v1669
      %v1778 = vpop.f32.mrf.mxu0
      %v1779 = vadd.f32 %v1482, %v1778
      %v1780 = vpop.f32.mrf.mxu0
      %v1781 = vpop.f32.mrf.mxu0
      %v1782 = vadd.f32 %v1485, %v1781
      %v1783 = vpop.f32.mrf.mxu0
      %1784 = vmatprep.mubr.bf16.mxu0 0
      %1785 = vmatmul.mubr.bf16.gmra.mxu0 %v1672
      %v1786 = vpop.f32.mrf.mxu0
      %v1787 = vadd.f32 %v1490, %v1786
      %v1788 = vpop.f32.mrf.mxu0
      %v1789 = vpop.f32.mrf.mxu0
      %v1790 = vadd.f32 %v1493, %v1789
      %v1791 = vpop.f32.mrf.mxu0
      %1792 = vmatprep.mubr.bf16.mxu0 0
      %1793 = vmatmul.mubr.bf16.gmra.mxu0 %v1675
      %v1794 = vpop.f32.mrf.mxu0
      %v1795 = vadd.f32 %v1498, %v1794
      %v1796 = vpop.f32.mrf.mxu0
      %v1797 = vpop.f32.mrf.mxu0
      %v1798 = vadd.f32 %v1501, %v1797
      %v1799 = vpop.f32.mrf.mxu0
      %1800 = vmatprep.mubr.bf16.mxu0 0
      %1801 = vmatmul.mubr.bf16.gmra.mxu0 %v1678
      %v1802 = vpop.f32.mrf.mxu0
      %v1803 = vadd.f32 %v1506, %v1802
      %v1804 = vpop.f32.mrf.mxu0
      %v1805 = vpop.f32.mrf.mxu0
      %v1806 = vadd.f32 %v1509, %v1805
      %v1807 = vpop.f32.mrf.mxu0
      %1808 = vmatprep.mubr.bf16.mxu0 0
      %1809 = vmatmul.mubr.bf16.gmra.mxu0 %v1681
      %v1810 = vpop.f32.mrf.mxu0
      %v1811 = vadd.f32 %v1514, %v1810
      %v1812 = vpop.f32.mrf.mxu0
      %v1813 = vpop.f32.mrf.mxu0
      %v1814 = vadd.f32 %v1517, %v1813
      %v1815 = vpop.f32.mrf.mxu0
      %1816 = vmatprep.mubr.bf16.mxu0 0
      %1817 = vmatmul.mubr.bf16.gmra.mxu0 %v1684
      %v1818 = vpop.f32.mrf.mxu0
      %v1819 = vadd.f32 %v1522, %v1818
      %v1820 = vpop.f32.mrf.mxu0
      %v1821 = vpop.f32.mrf.mxu0
      %v1822 = vadd.f32 %v1525, %v1821
      %v1823 = vpop.f32.mrf.mxu0
      %1824 = vmatprep.mubr.bf16.mxu0 0
      %1825 = vmatmul.mubr.bf16.gmra.mxu0 %v1687
      %v1826 = vpop.f32.mrf.mxu0
      %v1827 = vadd.f32 %v1530, %v1826
      %v1828 = vpop.f32.mrf.mxu0
      %v1829 = vpop.f32.mrf.mxu0
      %v1830 = vadd.f32 %v1533, %v1829
      %v1831 = vpop.f32.mrf.mxu0
      %1832 = vmatprep.mubr.bf16.mxu0 0
      %1833 = vmatmul.mubr.bf16.gmra.mxu0 %v1690
      %v1834 = vpop.f32.mrf.mxu0
      %v1835 = vadd.f32 %v1538, %v1834
      %v1836 = vpop.f32.mrf.mxu0
      %v1837 = vpop.f32.mrf.mxu0
      %v1838 = vadd.f32 %v1541, %v1837
      %v1839 = vpop.f32.mrf.mxu0
      %1840 = vmatprep.mubr.bf16.mxu0 0
      %1841 = vmatmul.mubr.bf16.gmra.mxu0 %v1693
      %v1842 = vpop.f32.mrf.mxu0
      %v1843 = vadd.f32 %v1546, %v1842
      %v1844 = vpop.f32.mrf.mxu0
      %v1845 = vpop.f32.mrf.mxu0
      %v1846 = vadd.f32 %v1549, %v1845
      %v1847 = vpop.f32.mrf.mxu0
      %1848 = vmatprep.mubr.bf16.mxu0 0
      %1849 = vmatmul.mubr.bf16.gmra.mxu0 %v1696
      %v1850 = vpop.f32.mrf.mxu0
      %v1851 = vadd.f32 %v1554, %v1850
      %v1852 = vpop.f32.mrf.mxu0
      %v1853 = vpop.f32.mrf.mxu0
      %v1854 = vadd.f32 %v1557, %v1853
      %v1855 = vpop.f32.mrf.mxu0
      %1856 = vmatprep.mubr.bf16.mxu0 0
      %1857 = vmatmul.mubr.bf16.gmra.mxu0 %v1699
      %v1858 = vpop.f32.mrf.mxu0
      %v1859 = vadd.f32 %v1562, %v1858
      %v1860 = vpop.f32.mrf.mxu0
      %v1861 = vpop.f32.mrf.mxu0
      %v1862 = vadd.f32 %v1565, %v1861
      %v1863 = vpop.f32.mrf.mxu0
      %1864 = vdwg.mxu0
      %s1865 = sadd.s32 0, 2
      %s1866 = smul.u32 %s1865, 2
      %s1867 = smul.addr %s1866, 4
      %s1868 = scalar_lea.vmem [#allocation2], %s1867
      %v1869 = vld [vmem:[%s1868] sm:$0xf]
      %v1870 = vld [vmem:[%s1868 + $0x4] sm:$0xf]
      %v1871 = vld [vmem:[%s1868 + $0x8] sm:$0xf]
      %v1872 = vld [vmem:[%s1868 + $0xc] sm:$0xf]
      %v1873 = vld [vmem:[%s1868 + $0x10] sm:$0xf]
      %v1874 = vld [vmem:[%s1868 + $0x14] sm:$0xf]
      %v1875 = vld [vmem:[%s1868 + $0x18] sm:$0xf]
      %v1876 = vld [vmem:[%s1868 + $0x1c] sm:$0xf]
      %v1877 = vld [vmem:[%s1868 + $0x20] sm:$0xf]
      %v1878 = vld [vmem:[%s1868 + $0x24] sm:$0xf]
      %v1879 = vld [vmem:[%s1868 + $0x28] sm:$0xf]
      %v1880 = vld [vmem:[%s1868 + $0x2c] sm:$0xf]
      %v1881 = vld [vmem:[%s1868 + $0x30] sm:$0xf]
      %v1882 = vld [vmem:[%s1868 + $0x34] sm:$0xf]
      %v1883 = vld [vmem:[%s1868 + $0x38] sm:$0xf]
      %v1884 = vld [vmem:[%s1868 + $0x3c] sm:$0xf]
      %v1885 = vld [vmem:[%s1868 + $0x40] sm:$0xf]
      %v1886 = vld [vmem:[%s1868 + $0x44] sm:$0xf]
      %v1887 = vld [vmem:[%s1868 + $0x48] sm:$0xf]
      %v1888 = vld [vmem:[%s1868 + $0x4c] sm:$0xf]
      %v1889 = vld [vmem:[%s1868 + $0x50] sm:$0xf]
      %v1890 = vld [vmem:[%s1868 + $0x54] sm:$0xf]
      %v1891 = vld [vmem:[%s1868 + $0x58] sm:$0xf]
      %v1892 = vld [vmem:[%s1868 + $0x5c] sm:$0xf]
      %v1893 = vld [vmem:[%s1868 + $0x60] sm:$0xf]
      %v1894 = vld [vmem:[%s1868 + $0x64] sm:$0xf]
      %v1895 = vld [vmem:[%s1868 + $0x68] sm:$0xf]
      %v1896 = vld [vmem:[%s1868 + $0x6c] sm:$0xf]
      %v1897 = vld [vmem:[%s1868 + $0x70] sm:$0xf]
      %v1898 = vld [vmem:[%s1868 + $0x74] sm:$0xf]
      %v1899 = vld [vmem:[%s1868 + $0x78] sm:$0xf]
      %v1900 = vld [vmem:[%s1868 + $0x7c] sm:$0xf]
      %v1933 = vunpack.c.l.b16 %v1869
      %v1934 = vunpack.c.l.b16 %v1870
      %v1935 = vunpack.c.l.b16 %v1871
      %v1936 = vunpack.c.l.b16 %v1872
      %v1937 = vunpack.c.l.b16 %v1873
      %v1938 = vunpack.c.l.b16 %v1874
      %v1939 = vunpack.c.l.b16 %v1875
      %v1940 = vunpack.c.l.b16 %v1876
      %v1941 = vunpack.c.l.b16 %v1877
      %v1942 = vunpack.c.l.b16 %v1878
      %v1943 = vunpack.c.l.b16 %v1879
      %v1944 = vunpack.c.l.b16 %v1880
      %v1945 = vunpack.c.l.b16 %v1881
      %v1946 = vunpack.c.l.b16 %v1882
      %v1947 = vunpack.c.l.b16 %v1883
      %v1948 = vunpack.c.l.b16 %v1884
      %v1949 = vunpack.c.l.b16 %v1885
      %v1950 = vunpack.c.l.b16 %v1886
      %v1951 = vunpack.c.l.b16 %v1887
      %v1952 = vunpack.c.l.b16 %v1888
      %v1953 = vunpack.c.l.b16 %v1889
      %v1954 = vunpack.c.l.b16 %v1890
      %v1955 = vunpack.c.l.b16 %v1891
      %v1956 = vunpack.c.l.b16 %v1892
      %v1957 = vunpack.c.l.b16 %v1893
      %v1958 = vunpack.c.l.b16 %v1894
      %v1959 = vunpack.c.l.b16 %v1895
      %v1960 = vunpack.c.l.b16 %v1896
      %v1961 = vunpack.c.l.b16 %v1897
      %v1962 = vunpack.c.l.b16 %v1898
      %v1963 = vunpack.c.l.b16 %v1899
      %v1964 = vunpack.c.l.b16 %v1900
      %v1965 = vpack.c.b16 %v1934, %v1933
      %v1966 = vpack.c.b16 %v1936, %v1935
      %v1967 = vpack.c.b16 %v1938, %v1937
      %v1968 = vpack.c.b16 %v1940, %v1939
      %v1969 = vpack.c.b16 %v1942, %v1941
      %v1970 = vpack.c.b16 %v1944, %v1943
      %v1971 = vpack.c.b16 %v1946, %v1945
      %v1972 = vpack.c.b16 %v1948, %v1947
      %v1973 = vpack.c.b16 %v1950, %v1949
      %v1974 = vpack.c.b16 %v1952, %v1951
      %v1975 = vpack.c.b16 %v1954, %v1953
      %v1976 = vpack.c.b16 %v1956, %v1955
      %v1977 = vpack.c.b16 %v1958, %v1957
      %v1978 = vpack.c.b16 %v1960, %v1959
      %v1979 = vpack.c.b16 %v1962, %v1961
      %v1980 = vpack.c.b16 %v1964, %v1963
      %v1983 = vunpack.c.l.b16 %v1196
      %v1984 = vunpack.c.l.b16 %v1197
      %v1985 = vpack.c.b16 %v1984, %v1983
      %v1987 = vsel %vm1354, %v1965, 0
      %v1990 = vsel %vm1354, %v1966, 0
      %v1993 = vsel %vm1354, %v1967, 0
      %v1996 = vsel %vm1354, %v1968, 0
      %v1999 = vsel %vm1354, %v1969, 0
      %v2002 = vsel %vm1354, %v1970, 0
      %v2005 = vsel %vm1354, %v1971, 0
      %v2008 = vsel %vm1354, %v1972, 0
      %v2011 = vsel %vm1354, %v1973, 0
      %v2014 = vsel %vm1354, %v1974, 0
      %v2017 = vsel %vm1354, %v1975, 0
      %v2020 = vsel %vm1354, %v1976, 0
      %v2023 = vsel %vm1354, %v1977, 0
      %v2026 = vsel %vm1354, %v1978, 0
      %v2029 = vsel %vm1354, %v1979, 0
      %v2032 = vsel %vm1354, %v1980, 0
      %v2035 = vsel %vm1403, %v1985, 0
      %2037 = vmatprep.subr.bf16.mxu0 0
      %2038 = vmatpush1.bf16.msra.mxu0 0
      %2039 = vmatprep.subr.bf16.mxu0 0
      %2040 = vmatpush1.bf16.msra.mxu0 0
      %2041 = vmatprep.subr.bf16.mxu0 0
      %2042 = vmatpush1.bf16.msra.mxu0 0
      %2043 = vmatprep.subr.bf16.mxu0 0
      %2044 = vmatpush1.bf16.msra.mxu0 0
      %2045 = vmatprep.subr.bf16.mxu0 0
      %2046 = vmatpush1.bf16.msra.mxu0 0
      %2047 = vmatprep.subr.bf16.mxu0 0
      %2048 = vmatpush1.bf16.msra.mxu0 0
      %2049 = vmatprep.subr.bf16.mxu0 0
      %2050 = vmatpush1.bf16.msra.mxu0 0
      %2051 = vmatprep.subr.bf16.mxu0 0
      %2052 = vmatpush1.bf16.msra.mxu0 %v2035
      %2053 = vmatprep.subr.bf16.mxu0 0
      %2054 = vmatpush2.bf16.msra.mxu0 0
      %2055 = vmatprep.subr.bf16.mxu0 0
      %2056 = vmatpush2.bf16.msra.mxu0 0
      %2057 = vmatprep.subr.bf16.mxu0 0
      %2058 = vmatpush2.bf16.msra.mxu0 0
      %2059 = vmatprep.subr.bf16.mxu0 0
      %2060 = vmatpush2.bf16.msra.mxu0 0
      %2061 = vmatprep.subr.bf16.mxu0 0
      %2062 = vmatpush2.bf16.msra.mxu0 0
      %2063 = vmatprep.subr.bf16.mxu0 0
      %2064 = vmatpush2.bf16.msra.mxu0 0
      %2065 = vmatprep.subr.bf16.mxu0 0
      %2066 = vmatpush2.bf16.msra.mxu0 0
      %2067 = vmatprep.subr.bf16.mxu0 0
      %2068 = vmatpush2.bf16.msra.mxu0 0
      %2069 = vmatprep.mubr.bf16.mxu0 0
      %2070 = vmatmul.mubr.bf16.gmra.mxu0 %v1987
      %v2071 = vpop.f32.mrf.mxu0
      %v2072 = vadd.f32 0.0, %v2071
      %v2073 = vpop.f32.mrf.mxu0
      %v2074 = vpop.f32.mrf.mxu0
      %v2075 = vadd.f32 0.0, %v2074
      %v2076 = vpop.f32.mrf.mxu0
      %2077 = vmatprep.mubr.bf16.mxu0 0
      %2078 = vmatmul.mubr.bf16.gmra.mxu0 %v1990
      %v2079 = vpop.f32.mrf.mxu0
      %v2080 = vadd.f32 0.0, %v2079
      %v2081 = vpop.f32.mrf.mxu0
      %v2082 = vpop.f32.mrf.mxu0
      %v2083 = vadd.f32 0.0, %v2082
      %v2084 = vpop.f32.mrf.mxu0
      %2085 = vmatprep.mubr.bf16.mxu0 0
      %2086 = vmatmul.mubr.bf16.gmra.mxu0 %v1993
      %v2087 = vpop.f32.mrf.mxu0
      %v2088 = vadd.f32 0.0, %v2087
      %v2089 = vpop.f32.mrf.mxu0
      %v2090 = vpop.f32.mrf.mxu0
      %v2091 = vadd.f32 0.0, %v2090
      %v2092 = vpop.f32.mrf.mxu0
      %2093 = vmatprep.mubr.bf16.mxu0 0
      %2094 = vmatmul.mubr.bf16.gmra.mxu0 %v1996
      %v2095 = vpop.f32.mrf.mxu0
      %v2096 = vadd.f32 0.0, %v2095
      %v2097 = vpop.f32.mrf.mxu0
      %v2098 = vpop.f32.mrf.mxu0
      %v2099 = vadd.f32 0.0, %v2098
      %v2100 = vpop.f32.mrf.mxu0
      %2101 = vmatprep.mubr.bf16.mxu0 0
      %2102 = vmatmul.mubr.bf16.gmra.mxu0 %v1999
      %v2103 = vpop.f32.mrf.mxu0
      %v2104 = vadd.f32 0.0, %v2103
      %v2105 = vpop.f32.mrf.mxu0
      %v2106 = vpop.f32.mrf.mxu0
      %v2107 = vadd.f32 0.0, %v2106
      %v2108 = vpop.f32.mrf.mxu0
      %2109 = vmatprep.mubr.bf16.mxu0 0
      %2110 = vmatmul.mubr.bf16.gmra.mxu0 %v2002
      %v2111 = vpop.f32.mrf.mxu0
      %v2112 = vadd.f32 0.0, %v2111
      %v2113 = vpop.f32.mrf.mxu0
      %v2114 = vpop.f32.mrf.mxu0
      %v2115 = vadd.f32 0.0, %v2114
      %v2116 = vpop.f32.mrf.mxu0
      %2117 = vmatprep.mubr.bf16.mxu0 0
      %2118 = vmatmul.mubr.bf16.gmra.mxu0 %v2005
      %v2119 = vpop.f32.mrf.mxu0
      %v2120 = vadd.f32 0.0, %v2119
      %v2121 = vpop.f32.mrf.mxu0
      %v2122 = vpop.f32.mrf.mxu0
      %v2123 = vadd.f32 0.0, %v2122
      %v2124 = vpop.f32.mrf.mxu0
      %2125 = vmatprep.mubr.bf16.mxu0 0
      %2126 = vmatmul.mubr.bf16.gmra.mxu0 %v2008
      %v2127 = vpop.f32.mrf.mxu0
      %v2128 = vadd.f32 0.0, %v2127
      %v2129 = vpop.f32.mrf.mxu0
      %v2130 = vpop.f32.mrf.mxu0
      %v2131 = vadd.f32 0.0, %v2130
      %v2132 = vpop.f32.mrf.mxu0
      %2133 = vmatprep.mubr.bf16.mxu0 0
      %2134 = vmatmul.mubr.bf16.gmra.mxu0 %v2011
      %v2135 = vpop.f32.mrf.mxu0
      %v2136 = vadd.f32 0.0, %v2135
      %v2137 = vpop.f32.mrf.mxu0
      %v2138 = vpop.f32.mrf.mxu0
      %v2139 = vadd.f32 0.0, %v2138
      %v2140 = vpop.f32.mrf.mxu0
      %2141 = vmatprep.mubr.bf16.mxu0 0
      %2142 = vmatmul.mubr.bf16.gmra.mxu0 %v2014
      %v2143 = vpop.f32.mrf.mxu0
      %v2144 = vadd.f32 0.0, %v2143
      %v2145 = vpop.f32.mrf.mxu0
      %v2146 = vpop.f32.mrf.mxu0
      %v2147 = vadd.f32 0.0, %v2146
      %v2148 = vpop.f32.mrf.mxu0
      %2149 = vmatprep.mubr.bf16.mxu0 0
      %2150 = vmatmul.mubr.bf16.gmra.mxu0 %v2017
      %v2151 = vpop.f32.mrf.mxu0
      %v2152 = vadd.f32 0.0, %v2151
      %v2153 = vpop.f32.mrf.mxu0
      %v2154 = vpop.f32.mrf.mxu0
      %v2155 = vadd.f32 0.0, %v2154
      %v2156 = vpop.f32.mrf.mxu0
      %2157 = vmatprep.mubr.bf16.mxu0 0
      %2158 = vmatmul.mubr.bf16.gmra.mxu0 %v2020
      %v2159 = vpop.f32.mrf.mxu0
      %v2160 = vadd.f32 0.0, %v2159
      %v2161 = vpop.f32.mrf.mxu0
      %v2162 = vpop.f32.mrf.mxu0
      %v2163 = vadd.f32 0.0, %v2162
      %v2164 = vpop.f32.mrf.mxu0
      %2165 = vmatprep.mubr.bf16.mxu0 0
      %2166 = vmatmul.mubr.bf16.gmra.mxu0 %v2023
      %v2167 = vpop.f32.mrf.mxu0
      %v2168 = vadd.f32 0.0, %v2167
      %v2169 = vpop.f32.mrf.mxu0
      %v2170 = vpop.f32.mrf.mxu0
      %v2171 = vadd.f32 0.0, %v2170
      %v2172 = vpop.f32.mrf.mxu0
      %2173 = vmatprep.mubr.bf16.mxu0 0
      %2174 = vmatmul.mubr.bf16.gmra.mxu0 %v2026
      %v2175 = vpop.f32.mrf.mxu0
      %v2176 = vadd.f32 0.0, %v2175
      %v2177 = vpop.f32.mrf.mxu0
      %v2178 = vpop.f32.mrf.mxu0
      %v2179 = vadd.f32 0.0, %v2178
      %v2180 = vpop.f32.mrf.mxu0
      %2181 = vmatprep.mubr.bf16.mxu0 0
      %2182 = vmatmul.mubr.bf16.gmra.mxu0 %v2029
      %v2183 = vpop.f32.mrf.mxu0
      %v2184 = vadd.f32 0.0, %v2183
      %v2185 = vpop.f32.mrf.mxu0
      %v2186 = vpop.f32.mrf.mxu0
      %v2187 = vadd.f32 0.0, %v2186
      %v2188 = vpop.f32.mrf.mxu0
      %2189 = vmatprep.mubr.bf16.mxu0 0
      %2190 = vmatmul.mubr.bf16.gmra.mxu0 %v2032
      %v2191 = vpop.f32.mrf.mxu0
      %v2192 = vadd.f32 0.0, %v2191
      %v2193 = vpop.f32.mrf.mxu0
      %v2194 = vpop.f32.mrf.mxu0
      %v2195 = vadd.f32 0.0, %v2194
      %v2196 = vpop.f32.mrf.mxu0
      %2197 = vdwg.mxu0
      %v2198 = vadd.f32 %v1739, %v2072
      %v2199 = vadd.f32 %v1742, %v2075
      %v2200 = vadd.f32 %v1747, %v2080
      %v2201 = vadd.f32 %v1750, %v2083
      %v2202 = vadd.f32 %v1755, %v2088
      %v2203 = vadd.f32 %v1758, %v2091
      %v2204 = vadd.f32 %v1763, %v2096
      %v2205 = vadd.f32 %v1766, %v2099
      %v2206 = vadd.f32 %v1771, %v2104
      %v2207 = vadd.f32 %v1774, %v2107
      %v2208 = vadd.f32 %v1779, %v2112
      %v2209 = vadd.f32 %v1782, %v2115
      %v2210 = vadd.f32 %v1787, %v2120
      %v2211 = vadd.f32 %v1790, %v2123
      %v2212 = vadd.f32 %v1795, %v2128
      %v2213 = vadd.f32 %v1798, %v2131
      %v2214 = vadd.f32 %v1803, %v2136
      %v2215 = vadd.f32 %v1806, %v2139
      %v2216 = vadd.f32 %v1811, %v2144
      %v2217 = vadd.f32 %v1814, %v2147
      %v2218 = vadd.f32 %v1819, %v2152
      %v2219 = vadd.f32 %v1822, %v2155
      %v2220 = vadd.f32 %v1827, %v2160
      %v2221 = vadd.f32 %v1830, %v2163
      %v2222 = vadd.f32 %v1835, %v2168
      %v2223 = vadd.f32 %v1838, %v2171
      %v2224 = vadd.f32 %v1843, %v2176
      %v2225 = vadd.f32 %v1846, %v2179
      %v2226 = vadd.f32 %v1851, %v2184
      %v2227 = vadd.f32 %v1854, %v2187
      %v2228 = vadd.f32 %v1859, %v2192
      %v2229 = vadd.f32 %v1862, %v2195
      %v2230 = vsel %vm977, %v2198, 0.0
      %v2231 = vsel %vm977, %v2199, 0.0
      %v2232 = vadd.f32 %v2230, %v2231
      %v2233 = vsel %vm977, %v2200, 0.0
      %v2234 = vadd.f32 %v2232, %v2233
      %v2235 = vsel %vm977, %v2201, 0.0
      %v2236 = vadd.f32 %v2234, %v2235
      %v2237 = vsel %vm977, %v2202, 0.0
      %v2238 = vadd.f32 %v2236, %v2237
      %v2239 = vsel %vm977, %v2203, 0.0
      %v2240 = vadd.f32 %v2238, %v2239
      %v2241 = vsel %vm977, %v2204, 0.0
      %v2242 = vadd.f32 %v2240, %v2241
      %v2243 = vsel %vm977, %v2205, 0.0
      %v2244 = vadd.f32 %v2242, %v2243
      %v2245 = vsel %vm977, %v2206, 0.0
      %v2246 = vadd.f32 %v2244, %v2245
      %v2247 = vsel %vm977, %v2207, 0.0
      %v2248 = vadd.f32 %v2246, %v2247
      %v2249 = vsel %vm977, %v2208, 0.0
      %v2250 = vadd.f32 %v2248, %v2249
      %v2251 = vsel %vm977, %v2209, 0.0
      %v2252 = vadd.f32 %v2250, %v2251
      %v2253 = vsel %vm977, %v2210, 0.0
      %v2254 = vadd.f32 %v2252, %v2253
      %v2255 = vsel %vm977, %v2211, 0.0
      %v2256 = vadd.f32 %v2254, %v2255
      %v2257 = vsel %vm977, %v2212, 0.0
      %v2258 = vadd.f32 %v2256, %v2257
      %v2259 = vsel %vm977, %v2213, 0.0
      %v2260 = vadd.f32 %v2258, %v2259
      %v2261 = vsel %vm977, %v2214, 0.0
      %v2262 = vadd.f32 %v2260, %v2261
      %v2263 = vsel %vm977, %v2215, 0.0
      %v2264 = vadd.f32 %v2262, %v2263
      %v2265 = vsel %vm977, %v2216, 0.0
      %v2266 = vadd.f32 %v2264, %v2265
      %v2267 = vsel %vm977, %v2217, 0.0
      %v2268 = vadd.f32 %v2266, %v2267
      %v2269 = vsel %vm977, %v2218, 0.0
      %v2270 = vadd.f32 %v2268, %v2269
      %v2271 = vsel %vm977, %v2219, 0.0
      %v2272 = vadd.f32 %v2270, %v2271
      %v2273 = vsel %vm977, %v2220, 0.0
      %v2274 = vadd.f32 %v2272, %v2273
      %v2275 = vsel %vm977, %v2221, 0.0
      %v2276 = vadd.f32 %v2274, %v2275
      %v2277 = vsel %vm977, %v2222, 0.0
      %v2278 = vadd.f32 %v2276, %v2277
      %v2279 = vsel %vm977, %v2223, 0.0
      %v2280 = vadd.f32 %v2278, %v2279
      %v2281 = vsel %vm977, %v2224, 0.0
      %v2282 = vadd.f32 %v2280, %v2281
      %v2283 = vsel %vm977, %v2225, 0.0
      %v2284 = vadd.f32 %v2282, %v2283
      %v2285 = vsel %vm977, %v2226, 0.0
      %v2286 = vadd.f32 %v2284, %v2285
      %v2287 = vsel %vm977, %v2227, 0.0
      %v2288 = vadd.f32 %v2286, %v2287
      %v2289 = vsel %vm977, %v2228, 0.0
      %v2290 = vadd.f32 %v2288, %v2289
      %v2291 = vsel %vm977, %v2229, 0.0
      %v2292 = vadd.f32 %v2290, %v2291
      %v2293 = vrot.slane %v2292, 4
      %v2294 = vadd.f32 %v2292, %v2293
      %v2295 = vrot.slane %v2294, 2
      %v2296 = vadd.f32 %v2294, %v2295
      %v2297 = vrot.slane %v2296, 1
      %v2298 = vadd.f32 %v2296, %v2297
      %v2299 = vadd.f32 %v2298, 0.0
      %v2300 = vmul.f32 %v2198, %v2198
      %v2301 = vmul.f32 %v2199, %v2199
      %v2302 = vmul.f32 %v2200, %v2200
      %v2303 = vmul.f32 %v2201, %v2201
      %v2304 = vmul.f32 %v2202, %v2202
      %v2305 = vmul.f32 %v2203, %v2203
      %v2306 = vmul.f32 %v2204, %v2204
      %v2307 = vmul.f32 %v2205, %v2205
      %v2308 = vmul.f32 %v2206, %v2206
      %v2309 = vmul.f32 %v2207, %v2207
      %v2310 = vmul.f32 %v2208, %v2208
      %v2311 = vmul.f32 %v2209, %v2209
      %v2312 = vmul.f32 %v2210, %v2210
      %v2313 = vmul.f32 %v2211, %v2211
      %v2314 = vmul.f32 %v2212, %v2212
      %v2315 = vmul.f32 %v2213, %v2213
      %v2316 = vmul.f32 %v2214, %v2214
      %v2317 = vmul.f32 %v2215, %v2215
      %v2318 = vmul.f32 %v2216, %v2216
      %v2319 = vmul.f32 %v2217, %v2217
      %v2320 = vmul.f32 %v2218, %v2218
      %v2321 = vmul.f32 %v2219, %v2219
      %v2322 = vmul.f32 %v2220, %v2220
      %v2323 = vmul.f32 %v2221, %v2221
      %v2324 = vmul.f32 %v2222, %v2222
      %v2325 = vmul.f32 %v2223, %v2223
      %v2326 = vmul.f32 %v2224, %v2224
      %v2327 = vmul.f32 %v2225, %v2225
      %v2328 = vmul.f32 %v2226, %v2226
      %v2329 = vmul.f32 %v2227, %v2227
      %v2330 = vmul.f32 %v2228, %v2228
      %v2331 = vmul.f32 %v2229, %v2229
      %v2332 = vsel %vm977, %v2300, 0.0
      %v2333 = vsel %vm977, %v2301, 0.0
      %v2334 = vadd.f32 %v2332, %v2333
      %v2335 = vsel %vm977, %v2302, 0.0
      %v2336 = vadd.f32 %v2334, %v2335
      %v2337 = vsel %vm977, %v2303, 0.0
      %v2338 = vadd.f32 %v2336, %v2337
      %v2339 = vsel %vm977, %v2304, 0.0
      %v2340 = vadd.f32 %v2338, %v2339
      %v2341 = vsel %vm977, %v2305, 0.0
      %v2342 = vadd.f32 %v2340, %v2341
      %v2343 = vsel %vm977, %v2306, 0.0
      %v2344 = vadd.f32 %v2342, %v2343
      %v2345 = vsel %vm977, %v2307, 0.0
      %v2346 = vadd.f32 %v2344, %v2345
      %v2347 = vsel %vm977, %v2308, 0.0
      %v2348 = vadd.f32 %v2346, %v2347
      %v2349 = vsel %vm977, %v2309, 0.0
      %v2350 = vadd.f32 %v2348, %v2349
      %v2351 = vsel %vm977, %v2310, 0.0
      %v2352 = vadd.f32 %v2350, %v2351
      %v2353 = vsel %vm977, %v2311, 0.0
      %v2354 = vadd.f32 %v2352, %v2353
      %v2355 = vsel %vm977, %v2312, 0.0
      %v2356 = vadd.f32 %v2354, %v2355
      %v2357 = vsel %vm977, %v2313, 0.0
      %v2358 = vadd.f32 %v2356, %v2357
      %v2359 = vsel %vm977, %v2314, 0.0
      %v2360 = vadd.f32 %v2358, %v2359
      %v2361 = vsel %vm977, %v2315, 0.0
      %v2362 = vadd.f32 %v2360, %v2361
      %v2363 = vsel %vm977, %v2316, 0.0
      %v2364 = vadd.f32 %v2362, %v2363
      %v2365 = vsel %vm977, %v2317, 0.0
      %v2366 = vadd.f32 %v2364, %v2365
      %v2367 = vsel %vm977, %v2318, 0.0
      %v2368 = vadd.f32 %v2366, %v2367
      %v2369 = vsel %vm977, %v2319, 0.0
      %v2370 = vadd.f32 %v2368, %v2369
      %v2371 = vsel %vm977, %v2320, 0.0
      %v2372 = vadd.f32 %v2370, %v2371
      %v2373 = vsel %vm977, %v2321, 0.0
      %v2374 = vadd.f32 %v2372, %v2373
      %v2375 = vsel %vm977, %v2322, 0.0
      %v2376 = vadd.f32 %v2374, %v2375
      %v2377 = vsel %vm977, %v2323, 0.0
      %v2378 = vadd.f32 %v2376, %v2377
      %v2379 = vsel %vm977, %v2324, 0.0
      %v2380 = vadd.f32 %v2378, %v2379
      %v2381 = vsel %vm977, %v2325, 0.0
      %v2382 = vadd.f32 %v2380, %v2381
      %v2383 = vsel %vm977, %v2326, 0.0
      %v2384 = vadd.f32 %v2382, %v2383
      %v2385 = vsel %vm977, %v2327, 0.0
      %v2386 = vadd.f32 %v2384, %v2385
      %v2387 = vsel %vm977, %v2328, 0.0
      %v2388 = vadd.f32 %v2386, %v2387
      %v2389 = vsel %vm977, %v2329, 0.0
      %v2390 = vadd.f32 %v2388, %v2389
      %v2391 = vsel %vm977, %v2330, 0.0
      %v2392 = vadd.f32 %v2390, %v2391
      %v2393 = vsel %vm977, %v2331, 0.0
      %v2394 = vadd.f32 %v2392, %v2393
      %v2395 = vrot.slane %v2394, 4
      %v2396 = vadd.f32 %v2394, %v2395
      %v2397 = vrot.slane %v2396, 2
      %v2398 = vadd.f32 %v2396, %v2397
      %v2399 = vrot.slane %v2398, 1
      %v2400 = vadd.f32 %v2398, %v2399
      %v2401 = vadd.f32 %v2400, 0.0
      %2402 = vst.msk [vmem:[#allocation3] sm:$0xff] %vm977, %v2198
      %2403 = vst.msk [vmem:[#allocation3 + $0x8] sm:$0xff] %vm977, %v2199
      %2404 = vst.msk [vmem:[#allocation3 + $0x10] sm:$0xff] %vm977, %v2200
      %2405 = vst.msk [vmem:[#allocation3 + $0x18] sm:$0xff] %vm977, %v2201
      %2406 = vst.msk [vmem:[#allocation3 + $0x20] sm:$0xff] %vm977, %v2202
      %2407 = vst.msk [vmem:[#allocation3 + $0x28] sm:$0xff] %vm977, %v2203
      %2408 = vst.msk [vmem:[#allocation3 + $0x30] sm:$0xff] %vm977, %v2204
      %2409 = vst.msk [vmem:[#allocation3 + $0x38] sm:$0xff] %vm977, %v2205
      %2410 = vst.msk [vmem:[#allocation3 + $0x40] sm:$0xff] %vm977, %v2206
      %2411 = vst.msk [vmem:[#allocation3 + $0x48] sm:$0xff] %vm977, %v2207
      %2412 = vst.msk [vmem:[#allocation3 + $0x50] sm:$0xff] %vm977, %v2208
      %2413 = vst.msk [vmem:[#allocation3 + $0x58] sm:$0xff] %vm977, %v2209
      %2414 = vst.msk [vmem:[#allocation3 + $0x60] sm:$0xff] %vm977, %v2210
      %2415 = vst.msk [vmem:[#allocation3 + $0x68] sm:$0xff] %vm977, %v2211
      %2416 = vst.msk [vmem:[#allocation3 + $0x70] sm:$0xff] %vm977, %v2212
      %2417 = vst.msk [vmem:[#allocation3 + $0x78] sm:$0xff] %vm977, %v2213
      %2418 = vst.msk [vmem:[#allocation3 + $0x80] sm:$0xff] %vm977, %v2214
      %2419 = vst.msk [vmem:[#allocation3 + $0x88] sm:$0xff] %vm977, %v2215
      %2420 = vst.msk [vmem:[#allocation3 + $0x90] sm:$0xff] %vm977, %v2216
      %2421 = vst.msk [vmem:[#allocation3 + $0x98] sm:$0xff] %vm977, %v2217
      %2422 = vst.msk [vmem:[#allocation3 + $0xa0] sm:$0xff] %vm977, %v2218
      %2423 = vst.msk [vmem:[#allocation3 + $0xa8] sm:$0xff] %vm977, %v2219
      %2424 = vst.msk [vmem:[#allocation3 + $0xb0] sm:$0xff] %vm977, %v2220
      %2425 = vst.msk [vmem:[#allocation3 + $0xb8] sm:$0xff] %vm977, %v2221
      %2426 = vst.msk [vmem:[#allocation3 + $0xc0] sm:$0xff] %vm977, %v2222
      %2427 = vst.msk [vmem:[#allocation3 + $0xc8] sm:$0xff] %vm977, %v2223
      %2428 = vst.msk [vmem:[#allocation3 + $0xd0] sm:$0xff] %vm977, %v2224
      %2429 = vst.msk [vmem:[#allocation3 + $0xd8] sm:$0xff] %vm977, %v2225
      %2430 = vst.msk [vmem:[#allocation3 + $0xe0] sm:$0xff] %vm977, %v2226
      %2431 = vst.msk [vmem:[#allocation3 + $0xe8] sm:$0xff] %vm977, %v2227
      %2432 = vst.msk [vmem:[#allocation3 + $0xf0] sm:$0xff] %vm977, %v2228
      %2433 = vst.msk [vmem:[#allocation3 + $0xf8] sm:$0xff] %vm977, %v2229
      %v2434 = vmul.f32 %v2299, 0.00390625
      %v2435 = vmul.f32 %v2401, 0.00390625
      %v2436 = vmul.f32 %v2434, %v2434
      %v2437 = vsub.f32 %v2435, %v2436
      %v2438 = vadd.f32 %v2437, 1e-05
      %v2439 = vrsqrt.pop %v2438
      %v2440 = vld [vmem:[#allocation3] sm:$0xff]
      %v2441 = vld [vmem:[#allocation3 + $0x8] sm:$0xff]
      %v2442 = vld [vmem:[#allocation3 + $0x10] sm:$0xff]
      %v2443 = vld [vmem:[#allocation3 + $0x18] sm:$0xff]
      %v2444 = vld [vmem:[#allocation3 + $0x20] sm:$0xff]
      %v2445 = vld [vmem:[#allocation3 + $0x28] sm:$0xff]
      %v2446 = vld [vmem:[#allocation3 + $0x30] sm:$0xff]
      %v2447 = vld [vmem:[#allocation3 + $0x38] sm:$0xff]
      %v2448 = vld [vmem:[#allocation3 + $0x40] sm:$0xff]
      %v2449 = vld [vmem:[#allocation3 + $0x48] sm:$0xff]
      %v2450 = vld [vmem:[#allocation3 + $0x50] sm:$0xff]
      %v2451 = vld [vmem:[#allocation3 + $0x58] sm:$0xff]
      %v2452 = vld [vmem:[#allocation3 + $0x60] sm:$0xff]
      %v2453 = vld [vmem:[#allocation3 + $0x68] sm:$0xff]
      %v2454 = vld [vmem:[#allocation3 + $0x70] sm:$0xff]
      %v2455 = vld [vmem:[#allocation3 + $0x78] sm:$0xff]
      %v2456 = vld [vmem:[#allocation3 + $0x80] sm:$0xff]
      %v2457 = vld [vmem:[#allocation3 + $0x88] sm:$0xff]
      %v2458 = vld [vmem:[#allocation3 + $0x90] sm:$0xff]
      %v2459 = vld [vmem:[#allocation3 + $0x98] sm:$0xff]
      %v2460 = vld [vmem:[#allocation3 + $0xa0] sm:$0xff]
      %v2461 = vld [vmem:[#allocation3 + $0xa8] sm:$0xff]
      %v2462 = vld [vmem:[#allocation3 + $0xb0] sm:$0xff]
      %v2463 = vld [vmem:[#allocation3 + $0xb8] sm:$0xff]
      %v2464 = vld [vmem:[#allocation3 + $0xc0] sm:$0xff]
      %v2465 = vld [vmem:[#allocation3 + $0xc8] sm:$0xff]
      %v2466 = vld [vmem:[#allocation3 + $0xd0] sm:$0xff]
      %v2467 = vld [vmem:[#allocation3 + $0xd8] sm:$0xff]
      %v2468 = vld [vmem:[#allocation3 + $0xe0] sm:$0xff]
      %v2469 = vld [vmem:[#allocation3 + $0xe8] sm:$0xff]
      %v2470 = vld [vmem:[#allocation3 + $0xf0] sm:$0xff]
      %v2471 = vld [vmem:[#allocation3 + $0xf8] sm:$0xff]
      %v2472 = vsub.f32 %v2440, %v2434
      %v2473 = vsub.f32 %v2441, %v2434
      %v2474 = vsub.f32 %v2442, %v2434
      %v2475 = vsub.f32 %v2443, %v2434
      %v2476 = vsub.f32 %v2444, %v2434
      %v2477 = vsub.f32 %v2445, %v2434
      %v2478 = vsub.f32 %v2446, %v2434
      %v2479 = vsub.f32 %v2447, %v2434
      %v2480 = vsub.f32 %v2448, %v2434
      %v2481 = vsub.f32 %v2449, %v2434
      %v2482 = vsub.f32 %v2450, %v2434
      %v2483 = vsub.f32 %v2451, %v2434
      %v2484 = vsub.f32 %v2452, %v2434
      %v2485 = vsub.f32 %v2453, %v2434
      %v2486 = vsub.f32 %v2454, %v2434
      %v2487 = vsub.f32 %v2455, %v2434
      %v2488 = vsub.f32 %v2456, %v2434
      %v2489 = vsub.f32 %v2457, %v2434
      %v2490 = vsub.f32 %v2458, %v2434
      %v2491 = vsub.f32 %v2459, %v2434
      %v2492 = vsub.f32 %v2460, %v2434
      %v2493 = vsub.f32 %v2461, %v2434
      %v2494 = vsub.f32 %v2462, %v2434
      %v2495 = vsub.f32 %v2463, %v2434
      %v2496 = vsub.f32 %v2464, %v2434
      %v2497 = vsub.f32 %v2465, %v2434
      %v2498 = vsub.f32 %v2466, %v2434
      %v2499 = vsub.f32 %v2467, %v2434
      %v2500 = vsub.f32 %v2468, %v2434
      %v2501 = vsub.f32 %v2469, %v2434
      %v2502 = vsub.f32 %v2470, %v2434
      %v2503 = vsub.f32 %v2471, %v2434
      %v2504 = vmul.f32 %v2472, %v2439
      %v2505 = vmul.f32 %v2473, %v2439
      %v2506 = vmul.f32 %v2474, %v2439
      %v2507 = vmul.f32 %v2475, %v2439
      %v2508 = vmul.f32 %v2476, %v2439
      %v2509 = vmul.f32 %v2477, %v2439
      %v2510 = vmul.f32 %v2478, %v2439
      %v2511 = vmul.f32 %v2479, %v2439
      %v2512 = vmul.f32 %v2480, %v2439
      %v2513 = vmul.f32 %v2481, %v2439
      %v2514 = vmul.f32 %v2482, %v2439
      %v2515 = vmul.f32 %v2483, %v2439
      %v2516 = vmul.f32 %v2484, %v2439
      %v2517 = vmul.f32 %v2485, %v2439
      %v2518 = vmul.f32 %v2486, %v2439
      %v2519 = vmul.f32 %v2487, %v2439
      %v2520 = vmul.f32 %v2488, %v2439
      %v2521 = vmul.f32 %v2489, %v2439
      %v2522 = vmul.f32 %v2490, %v2439
      %v2523 = vmul.f32 %v2491, %v2439
      %v2524 = vmul.f32 %v2492, %v2439
      %v2525 = vmul.f32 %v2493, %v2439
      %v2526 = vmul.f32 %v2494, %v2439
      %v2527 = vmul.f32 %v2495, %v2439
      %v2528 = vmul.f32 %v2496, %v2439
      %v2529 = vmul.f32 %v2497, %v2439
      %v2530 = vmul.f32 %v2498, %v2439
      %v2531 = vmul.f32 %v2499, %v2439
      %v2532 = vmul.f32 %v2500, %v2439
      %v2533 = vmul.f32 %v2501, %v2439
      %v2534 = vmul.f32 %v2502, %v2439
      %v2535 = vmul.f32 %v2503, %v2439
      %v2536 = vmax.f32 %v2504, 0.0
      %v2537 = vmax.f32 %v2505, 0.0
      %v2538 = vmax.f32 %v2506, 0.0
      %v2539 = vmax.f32 %v2507, 0.0
      %v2540 = vmax.f32 %v2508, 0.0
      %v2541 = vmax.f32 %v2509, 0.0
      %v2542 = vmax.f32 %v2510, 0.0
      %v2543 = vmax.f32 %v2511, 0.0
      %v2544 = vmax.f32 %v2512, 0.0
      %v2545 = vmax.f32 %v2513, 0.0
      %v2546 = vmax.f32 %v2514, 0.0
      %v2547 = vmax.f32 %v2515, 0.0
      %v2548 = vmax.f32 %v2516, 0.0
      %v2549 = vmax.f32 %v2517, 0.0
      %v2550 = vmax.f32 %v2518, 0.0
      %v2551 = vmax.f32 %v2519, 0.0
      %v2552 = vmax.f32 %v2520, 0.0
      %v2553 = vmax.f32 %v2521, 0.0
      %v2554 = vmax.f32 %v2522, 0.0
      %v2555 = vmax.f32 %v2523, 0.0
      %v2556 = vmax.f32 %v2524, 0.0
      %v2557 = vmax.f32 %v2525, 0.0
      %v2558 = vmax.f32 %v2526, 0.0
      %v2559 = vmax.f32 %v2527, 0.0
      %v2560 = vmax.f32 %v2528, 0.0
      %v2561 = vmax.f32 %v2529, 0.0
      %v2562 = vmax.f32 %v2530, 0.0
      %v2563 = vmax.f32 %v2531, 0.0
      %v2564 = vmax.f32 %v2532, 0.0
      %v2565 = vmax.f32 %v2533, 0.0
      %v2566 = vmax.f32 %v2534, 0.0
      %v2567 = vmax.f32 %v2535, 0.0
      %v2568 = vpack.c.bf16 %v2537, %v2536
      %v2569 = vpack.c.bf16 %v2539, %v2538
      %v2570 = vpack.c.bf16 %v2541, %v2540
      %v2571 = vpack.c.bf16 %v2543, %v2542
      %v2572 = vpack.c.bf16 %v2545, %v2544
      %v2573 = vpack.c.bf16 %v2547, %v2546
      %v2574 = vpack.c.bf16 %v2549, %v2548
      %v2575 = vpack.c.bf16 %v2551, %v2550
      %v2576 = vpack.c.bf16 %v2553, %v2552
      %v2577 = vpack.c.bf16 %v2555, %v2554
      %v2578 = vpack.c.bf16 %v2557, %v2556
      %v2579 = vpack.c.bf16 %v2559, %v2558
      %v2580 = vpack.c.bf16 %v2561, %v2560
      %v2581 = vpack.c.bf16 %v2563, %v2562
      %v2582 = vpack.c.bf16 %v2565, %v2564
      %v2583 = vpack.c.bf16 %v2567, %v2566
      %v2585 = vshrl.u32 %v2569, 16
      %v2588 = vshrl.u32 %v2568, 16
      %v2591 = vshrl.u32 %v2570, 16
      %v2594 = vshrl.u32 %v2571, 16
      %v2597 = vshrl.u32 %v2572, 16
      %v2600 = vshrl.u32 %v2573, 16
      %v2603 = vshrl.u32 %v2574, 16
      %v2606 = vshrl.u32 %v2575, 16
      %v2609 = vshrl.u32 %v2576, 16
      %v2612 = vshrl.u32 %v2577, 16
      %v2615 = vshrl.u32 %v2578, 16
      %v2618 = vshrl.u32 %v2579, 16
      %v2621 = vshrl.u32 %v2580, 16
      %v2624 = vshrl.u32 %v2581, 16
      %v2627 = vshrl.u32 %v2582, 16
      %v2630 = vshrl.u32 %v2583, 16
      %v2648 = vrot.slane %v2585, 7
      %v2649 = vshll.u32 %v2569, 16
      %v2651 = vor.u32 %v2648, %v2649
      %v2652 = vrot.slane %v2588, 7
      %v2653 = vshll.u32 %v2568, 16
      %v2655 = vor.u32 %v2652, %v2653
      %v2656 = vrot.slane %v2591, 7
      %v2657 = vshll.u32 %v2570, 16
      %v2659 = vor.u32 %v2656, %v2657
      %v2660 = vrot.slane %v2594, 7
      %v2661 = vshll.u32 %v2571, 16
      %v2663 = vor.u32 %v2660, %v2661
      %v2664 = vrot.slane %v2597, 7
      %v2665 = vshll.u32 %v2572, 16
      %v2667 = vor.u32 %v2664, %v2665
      %v2668 = vrot.slane %v2600, 7
      %v2669 = vshll.u32 %v2573, 16
      %v2671 = vor.u32 %v2668, %v2669
      %v2672 = vrot.slane %v2603, 7
      %v2673 = vshll.u32 %v2574, 16
      %v2675 = vor.u32 %v2672, %v2673
      %v2676 = vrot.slane %v2606, 7
      %v2677 = vshll.u32 %v2575, 16
      %v2679 = vor.u32 %v2676, %v2677
      %v2680 = vrot.slane %v2609, 7
      %v2681 = vshll.u32 %v2576, 16
      %v2683 = vor.u32 %v2680, %v2681
      %v2684 = vrot.slane %v2612, 7
      %v2685 = vshll.u32 %v2577, 16
      %v2687 = vor.u32 %v2684, %v2685
      %v2688 = vrot.slane %v2615, 7
      %v2689 = vshll.u32 %v2578, 16
      %v2691 = vor.u32 %v2688, %v2689
      %v2692 = vrot.slane %v2618, 7
      %v2693 = vshll.u32 %v2579, 16
      %v2695 = vor.u32 %v2692, %v2693
      %v2696 = vrot.slane %v2621, 7
      %v2697 = vshll.u32 %v2580, 16
      %v2699 = vor.u32 %v2696, %v2697
      %v2700 = vrot.slane %v2624, 7
      %v2701 = vshll.u32 %v2581, 16
      %v2703 = vor.u32 %v2700, %v2701
      %v2704 = vrot.slane %v2627, 7
      %v2705 = vshll.u32 %v2582, 16
      %v2707 = vor.u32 %v2704, %v2705
      %v2708 = vrot.slane %v2630, 7
      %v2709 = vshll.u32 %v2583, 16
      %v2711 = vor.u32 %v2708, %v2709
      %v2744 = vrot.slane %v2649, 7
      %v2745 = vrot.slane %v2653, 7
      %v2746 = vrot.slane %v2657, 7
      %v2747 = vrot.slane %v2661, 7
      %v2748 = vrot.slane %v2665, 7
      %v2749 = vrot.slane %v2669, 7
      %v2750 = vrot.slane %v2673, 7
      %v2751 = vrot.slane %v2677, 7
      %v2752 = vrot.slane %v2681, 7
      %v2753 = vrot.slane %v2685, 7
      %v2754 = vrot.slane %v2689, 7
      %v2755 = vrot.slane %v2693, 7
      %v2756 = vrot.slane %v2697, 7
      %v2757 = vrot.slane %v2701, 7
      %v2758 = vrot.slane %v2705, 7
      %v2759 = vrot.slane %v2709, 7
      %v2776 = vsel %vm606, %v2585, %v2651
      %v2777 = vsel %vm606, %v2588, %v2655
      %v2778 = vsel %vm606, %v2591, %v2659
      %v2779 = vsel %vm606, %v2594, %v2663
      %v2780 = vsel %vm606, %v2597, %v2667
      %v2781 = vsel %vm606, %v2600, %v2671
      %v2782 = vsel %vm606, %v2603, %v2675
      %v2783 = vsel %vm606, %v2606, %v2679
      %v2784 = vsel %vm606, %v2609, %v2683
      %v2785 = vsel %vm606, %v2612, %v2687
      %v2786 = vsel %vm606, %v2615, %v2691
      %v2787 = vsel %vm606, %v2618, %v2695
      %v2788 = vsel %vm606, %v2621, %v2699
      %v2789 = vsel %vm606, %v2624, %v2703
      %v2790 = vsel %vm606, %v2627, %v2707
      %v2791 = vsel %vm606, %v2630, %v2711
      %v2792 = vsel %vm606, %v2648, %v2744
      %v2793 = vsel %vm606, %v2652, %v2745
      %v2794 = vsel %vm606, %v2656, %v2746
      %v2795 = vsel %vm606, %v2660, %v2747
      %v2796 = vsel %vm606, %v2664, %v2748
      %v2797 = vsel %vm606, %v2668, %v2749
      %v2798 = vsel %vm606, %v2672, %v2750
      %v2799 = vsel %vm606, %v2676, %v2751
      %v2800 = vsel %vm606, %v2680, %v2752
      %v2801 = vsel %vm606, %v2684, %v2753
      %v2802 = vsel %vm606, %v2688, %v2754
      %v2803 = vsel %vm606, %v2692, %v2755
      %v2804 = vsel %vm606, %v2696, %v2756
      %v2805 = vsel %vm606, %v2700, %v2757
      %v2806 = vsel %vm606, %v2704, %v2758
      %v2807 = vsel %vm606, %v2708, %v2759
      %v2809 = vshrl.u32 %v2776, 16
      %v2811 = vshll.u32 %v2776, 16
      %v2813 = vrot.slane %v2811, 1
      %v2814 = vor.u32 %v2809, %v2813
      %v2816 = vshll.u32 %v2792, 16
      %v2818 = vrot.slane %v2816, 1
      %v2819 = vsel %vm639, %v2814, %v2818
      %v2821 = vshrl.u32 %v2777, 16
      %v2823 = vshll.u32 %v2777, 16
      %v2825 = vrot.slane %v2823, 1
      %v2826 = vor.u32 %v2821, %v2825
      %v2828 = vshll.u32 %v2793, 16
      %v2830 = vrot.slane %v2828, 1
      %v2831 = vsel %vm639, %v2826, %v2830
      %v2833 = vshrl.u32 %v2778, 16
      %v2835 = vshll.u32 %v2778, 16
      %v2837 = vrot.slane %v2835, 1
      %v2838 = vor.u32 %v2833, %v2837
      %v2840 = vshll.u32 %v2794, 16
      %v2842 = vrot.slane %v2840, 1
      %v2843 = vsel %vm639, %v2838, %v2842
      %v2845 = vshrl.u32 %v2779, 16
      %v2847 = vshll.u32 %v2779, 16
      %v2849 = vrot.slane %v2847, 1
      %v2850 = vor.u32 %v2845, %v2849
      %v2852 = vshll.u32 %v2795, 16
      %v2854 = vrot.slane %v2852, 1
      %v2855 = vsel %vm639, %v2850, %v2854
      %v2857 = vshrl.u32 %v2780, 16
      %v2859 = vshll.u32 %v2780, 16
      %v2861 = vrot.slane %v2859, 1
      %v2862 = vor.u32 %v2857, %v2861
      %v2864 = vshll.u32 %v2796, 16
      %v2866 = vrot.slane %v2864, 1
      %v2867 = vsel %vm639, %v2862, %v2866
      %v2869 = vshrl.u32 %v2781, 16
      %v2871 = vshll.u32 %v2781, 16
      %v2873 = vrot.slane %v2871, 1
      %v2874 = vor.u32 %v2869, %v2873
      %v2876 = vshll.u32 %v2797, 16
      %v2878 = vrot.slane %v2876, 1
      %v2879 = vsel %vm639, %v2874, %v2878
      %v2881 = vshrl.u32 %v2782, 16
      %v2883 = vshll.u32 %v2782, 16
      %v2885 = vrot.slane %v2883, 1
      %v2886 = vor.u32 %v2881, %v2885
      %v2888 = vshll.u32 %v2798, 16
      %v2890 = vrot.slane %v2888, 1
      %v2891 = vsel %vm639, %v2886, %v2890
      %v2893 = vshrl.u32 %v2783, 16
      %v2895 = vshll.u32 %v2783, 16
      %v2897 = vrot.slane %v2895, 1
      %v2898 = vor.u32 %v2893, %v2897
      %v2900 = vshll.u32 %v2799, 16
      %v2902 = vrot.slane %v2900, 1
      %v2903 = vsel %vm639, %v2898, %v2902
      %v2905 = vshrl.u32 %v2784, 16
      %v2907 = vshll.u32 %v2784, 16
      %v2909 = vrot.slane %v2907, 1
      %v2910 = vor.u32 %v2905, %v2909
      %v2912 = vshll.u32 %v2800, 16
      %v2914 = vrot.slane %v2912, 1
      %v2915 = vsel %vm639, %v2910, %v2914
      %v2917 = vshrl.u32 %v2785, 16
      %v2919 = vshll.u32 %v2785, 16
      %v2921 = vrot.slane %v2919, 1
      %v2922 = vor.u32 %v2917, %v2921
      %v2924 = vshll.u32 %v2801, 16
      %v2926 = vrot.slane %v2924, 1
      %v2927 = vsel %vm639, %v2922, %v2926
      %v2929 = vshrl.u32 %v2786, 16
      %v2931 = vshll.u32 %v2786, 16
      %v2933 = vrot.slane %v2931, 1
      %v2934 = vor.u32 %v2929, %v2933
      %v2936 = vshll.u32 %v2802, 16
      %v2938 = vrot.slane %v2936, 1
      %v2939 = vsel %vm639, %v2934, %v2938
      %v2941 = vshrl.u32 %v2787, 16
      %v2943 = vshll.u32 %v2787, 16
      %v2945 = vrot.slane %v2943, 1
      %v2946 = vor.u32 %v2941, %v2945
      %v2948 = vshll.u32 %v2803, 16
      %v2950 = vrot.slane %v2948, 1
      %v2951 = vsel %vm639, %v2946, %v2950
      %v2953 = vshrl.u32 %v2788, 16
      %v2955 = vshll.u32 %v2788, 16
      %v2957 = vrot.slane %v2955, 1
      %v2958 = vor.u32 %v2953, %v2957
      %v2960 = vshll.u32 %v2804, 16
      %v2962 = vrot.slane %v2960, 1
      %v2963 = vsel %vm639, %v2958, %v2962
      %v2965 = vshrl.u32 %v2789, 16
      %v2967 = vshll.u32 %v2789, 16
      %v2969 = vrot.slane %v2967, 1
      %v2970 = vor.u32 %v2965, %v2969
      %v2972 = vshll.u32 %v2805, 16
      %v2974 = vrot.slane %v2972, 1
      %v2975 = vsel %vm639, %v2970, %v2974
      %v2977 = vshrl.u32 %v2790, 16
      %v2979 = vshll.u32 %v2790, 16
      %v2981 = vrot.slane %v2979, 1
      %v2982 = vor.u32 %v2977, %v2981
      %v2984 = vshll.u32 %v2806, 16
      %v2986 = vrot.slane %v2984, 1
      %v2987 = vsel %vm639, %v2982, %v2986
      %v2989 = vshrl.u32 %v2791, 16
      %v2991 = vshll.u32 %v2791, 16
      %v2993 = vrot.slane %v2991, 1
      %v2994 = vor.u32 %v2989, %v2993
      %v2996 = vshll.u32 %v2807, 16
      %v2998 = vrot.slane %v2996, 1
      %v2999 = vsel %vm639, %v2994, %v2998
      %3000 = vrot.lane.b32.xlu0 %v2819, 4
      %v3001 = vpop.permute.xlu0 %3000
      %3002 = vrot.lane.b32.xlu0 %v2831, 4
      %v3003 = vpop.permute.xlu0 %3002
      %3004 = vrot.lane.b32.xlu0 %v2843, 4
      %v3005 = vpop.permute.xlu0 %3004
      %3006 = vrot.lane.b32.xlu0 %v2855, 4
      %v3007 = vpop.permute.xlu0 %3006
      %3008 = vrot.lane.b32.xlu0 %v2867, 4
      %v3009 = vpop.permute.xlu0 %3008
      %3010 = vrot.lane.b32.xlu0 %v2879, 4
      %v3011 = vpop.permute.xlu0 %3010
      %3012 = vrot.lane.b32.xlu0 %v2891, 4
      %v3013 = vpop.permute.xlu0 %3012
      %3014 = vrot.lane.b32.xlu0 %v2903, 4
      %v3015 = vpop.permute.xlu0 %3014
      %3016 = vrot.lane.b32.xlu0 %v2915, 4
      %v3017 = vpop.permute.xlu0 %3016
      %3018 = vrot.lane.b32.xlu0 %v2927, 4
      %v3019 = vpop.permute.xlu0 %3018
      %3020 = vrot.lane.b32.xlu0 %v2939, 4
      %v3021 = vpop.permute.xlu0 %3020
      %3022 = vrot.lane.b32.xlu0 %v2951, 4
      %v3023 = vpop.permute.xlu0 %3022
      %3024 = vrot.lane.b32.xlu0 %v2963, 4
      %v3025 = vpop.permute.xlu0 %3024
      %3026 = vrot.lane.b32.xlu0 %v2975, 4
      %v3027 = vpop.permute.xlu0 %3026
      %3028 = vrot.lane.b32.xlu0 %v2987, 4
      %v3029 = vpop.permute.xlu0 %3028
      %3030 = vrot.lane.b32.xlu0 %v2999, 4
      %v3031 = vpop.permute.xlu0 %3030
      %v3064 = vrot.slane %v2776, 1
      %v3065 = vrot.slane %v2792, 1
      %v3066 = vsel %vm896, %v3064, %v3065
      %v3067 = vrot.slane %v2777, 1
      %v3068 = vrot.slane %v2793, 1
      %v3069 = vsel %vm896, %v3067, %v3068
      %v3070 = vrot.slane %v2778, 1
      %v3071 = vrot.slane %v2794, 1
      %v3072 = vsel %vm896, %v3070, %v3071
      %v3073 = vrot.slane %v2779, 1
      %v3074 = vrot.slane %v2795, 1
      %v3075 = vsel %vm896, %v3073, %v3074
      %v3076 = vrot.slane %v2780, 1
      %v3077 = vrot.slane %v2796, 1
      %v3078 = vsel %vm896, %v3076, %v3077
      %v3079 = vrot.slane %v2781, 1
      %v3080 = vrot.slane %v2797, 1
      %v3081 = vsel %vm896, %v3079, %v3080
      %v3082 = vrot.slane %v2782, 1
      %v3083 = vrot.slane %v2798, 1
      %v3084 = vsel %vm896, %v3082, %v3083
      %v3085 = vrot.slane %v2783, 1
      %v3086 = vrot.slane %v2799, 1
      %v3087 = vsel %vm896, %v3085, %v3086
      %v3088 = vrot.slane %v2784, 1
      %v3089 = vrot.slane %v2800, 1
      %v3090 = vsel %vm896, %v3088, %v3089
      %v3091 = vrot.slane %v2785, 1
      %v3092 = vrot.slane %v2801, 1
      %v3093 = vsel %vm896, %v3091, %v3092
      %v3094 = vrot.slane %v2786, 1
      %v3095 = vrot.slane %v2802, 1
      %v3096 = vsel %vm896, %v3094, %v3095
      %v3097 = vrot.slane %v2787, 1
      %v3098 = vrot.slane %v2803, 1
      %v3099 = vsel %vm896, %v3097, %v3098
      %v3100 = vrot.slane %v2788, 1
      %v3101 = vrot.slane %v2804, 1
      %v3102 = vsel %vm896, %v3100, %v3101
      %v3103 = vrot.slane %v2789, 1
      %v3104 = vrot.slane %v2805, 1
      %v3105 = vsel %vm896, %v3103, %v3104
      %v3106 = vrot.slane %v2790, 1
      %v3107 = vrot.slane %v2806, 1
      %v3108 = vsel %vm896, %v3106, %v3107
      %v3109 = vrot.slane %v2791, 1
      %v3110 = vrot.slane %v2807, 1
      %v3111 = vsel %vm896, %v3109, %v3110
      %3112 = vrot.lane.b32.xlu0 %v3066, 8
      %v3113 = vpop.permute.xlu0 %3112
      %3114 = vrot.lane.b32.xlu0 %v3069, 8
      %v3115 = vpop.permute.xlu0 %3114
      %3116 = vrot.lane.b32.xlu0 %v3072, 8
      %v3117 = vpop.permute.xlu0 %3116
      %3118 = vrot.lane.b32.xlu0 %v3075, 8
      %v3119 = vpop.permute.xlu0 %3118
      %3120 = vrot.lane.b32.xlu0 %v3078, 8
      %v3121 = vpop.permute.xlu0 %3120
      %3122 = vrot.lane.b32.xlu0 %v3081, 8
      %v3123 = vpop.permute.xlu0 %3122
      %3124 = vrot.lane.b32.xlu0 %v3084, 8
      %v3125 = vpop.permute.xlu0 %3124
      %3126 = vrot.lane.b32.xlu0 %v3087, 8
      %v3127 = vpop.permute.xlu0 %3126
      %3128 = vrot.lane.b32.xlu0 %v3090, 8
      %v3129 = vpop.permute.xlu0 %3128
      %3130 = vrot.lane.b32.xlu0 %v3093, 8
      %v3131 = vpop.permute.xlu0 %3130
      %3132 = vrot.lane.b32.xlu0 %v3096, 8
      %v3133 = vpop.permute.xlu0 %3132
      %3134 = vrot.lane.b32.xlu0 %v3099, 8
      %v3135 = vpop.permute.xlu0 %3134
      %3136 = vrot.lane.b32.xlu0 %v3102, 8
      %v3137 = vpop.permute.xlu0 %3136
      %3138 = vrot.lane.b32.xlu0 %v3105, 8
      %v3139 = vpop.permute.xlu0 %3138
      %3140 = vrot.lane.b32.xlu0 %v3108, 8
      %v3141 = vpop.permute.xlu0 %3140
      %3142 = vrot.lane.b32.xlu0 %v3111, 8
      %v3143 = vpop.permute.xlu0 %3142
      %v3145 = vsel %vm977, %v2776, %v3001
      %v3147 = vsel %vm977, %v2777, %v3003
      %v3149 = vsel %vm977, %v2778, %v3005
      %v3151 = vsel %vm977, %v2779, %v3007
      %v3153 = vsel %vm977, %v2780, %v3009
      %v3155 = vsel %vm977, %v2781, %v3011
      %v3157 = vsel %vm977, %v2782, %v3013
      %v3159 = vsel %vm977, %v2783, %v3015
      %v3161 = vsel %vm977, %v2784, %v3017
      %v3163 = vsel %vm977, %v2785, %v3019
      %v3165 = vsel %vm977, %v2786, %v3021
      %v3167 = vsel %vm977, %v2787, %v3023
      %v3169 = vsel %vm977, %v2788, %v3025
      %v3171 = vsel %vm977, %v2789, %v3027
      %v3173 = vsel %vm977, %v2790, %v3029
      %v3175 = vsel %vm977, %v2791, %v3031
      %v3177 = vsel %vm1010, %v3145, %v3113
      %v3179 = vsel %vm1010, %v3147, %v3115
      %v3181 = vsel %vm1010, %v3149, %v3117
      %v3183 = vsel %vm1010, %v3151, %v3119
      %v3185 = vsel %vm1010, %v3153, %v3121
      %v3187 = vsel %vm1010, %v3155, %v3123
      %v3189 = vsel %vm1010, %v3157, %v3125
      %v3191 = vsel %vm1010, %v3159, %v3127
      %v3193 = vsel %vm1010, %v3161, %v3129
      %v3195 = vsel %vm1010, %v3163, %v3131
      %v3197 = vsel %vm1010, %v3165, %v3133
      %v3199 = vsel %vm1010, %v3167, %v3135
      %v3201 = vsel %vm1010, %v3169, %v3137
      %v3203 = vsel %vm1010, %v3171, %v3139
      %v3205 = vsel %vm1010, %v3173, %v3141
      %v3207 = vsel %vm1010, %v3175, %v3143
      %v3224 = vunpack.c.l.b16 %v3177
      %v3225 = vunpack.c.h.b16 %v3177
      %v3226 = vunpack.c.l.b16 %v3179
      %v3227 = vunpack.c.h.b16 %v3179
      %v3228 = vunpack.c.l.b16 %v3181
      %v3229 = vunpack.c.h.b16 %v3181
      %v3230 = vunpack.c.l.b16 %v3183
      %v3231 = vunpack.c.h.b16 %v3183
      %v3232 = vunpack.c.l.b16 %v3185
      %v3233 = vunpack.c.h.b16 %v3185
      %v3234 = vunpack.c.l.b16 %v3187
      %v3235 = vunpack.c.h.b16 %v3187
      %v3236 = vunpack.c.l.b16 %v3189
      %v3237 = vunpack.c.h.b16 %v3189
      %v3238 = vunpack.c.l.b16 %v3191
      %v3239 = vunpack.c.h.b16 %v3191
      %v3240 = vunpack.c.l.b16 %v3193
      %v3241 = vunpack.c.h.b16 %v3193
      %v3242 = vunpack.c.l.b16 %v3195
      %v3243 = vunpack.c.h.b16 %v3195
      %v3244 = vunpack.c.l.b16 %v3197
      %v3245 = vunpack.c.h.b16 %v3197
      %v3246 = vunpack.c.l.b16 %v3199
      %v3247 = vunpack.c.h.b16 %v3199
      %v3248 = vunpack.c.l.b16 %v3201
      %v3249 = vunpack.c.h.b16 %v3201
      %v3250 = vunpack.c.l.b16 %v3203
      %v3251 = vunpack.c.h.b16 %v3203
      %v3252 = vunpack.c.l.b16 %v3205
      %v3253 = vunpack.c.h.b16 %v3205
      %v3254 = vunpack.c.l.b16 %v3207
      %v3255 = vunpack.c.h.b16 %v3207
      %v3256 = vpack.c.b16 %v3224, %v3224
      %v3257 = vpack.c.b16 %v3225, %v3225
      %v3258 = vpack.c.b16 %v3226, %v3226
      %v3259 = vpack.c.b16 %v3227, %v3227
      %v3260 = vpack.c.b16 %v3228, %v3228
      %v3261 = vpack.c.b16 %v3229, %v3229
      %v3262 = vpack.c.b16 %v3230, %v3230
      %v3263 = vpack.c.b16 %v3231, %v3231
      %v3264 = vpack.c.b16 %v3232, %v3232
      %v3265 = vpack.c.b16 %v3233, %v3233
      %v3266 = vpack.c.b16 %v3234, %v3234
      %v3267 = vpack.c.b16 %v3235, %v3235
      %v3268 = vpack.c.b16 %v3236, %v3236
      %v3269 = vpack.c.b16 %v3237, %v3237
      %v3270 = vpack.c.b16 %v3238, %v3238
      %v3271 = vpack.c.b16 %v3239, %v3239
      %v3272 = vpack.c.b16 %v3240, %v3240
      %v3273 = vpack.c.b16 %v3241, %v3241
      %v3274 = vpack.c.b16 %v3242, %v3242
      %v3275 = vpack.c.b16 %v3243, %v3243
      %v3276 = vpack.c.b16 %v3244, %v3244
      %v3277 = vpack.c.b16 %v3245, %v3245
      %v3278 = vpack.c.b16 %v3246, %v3246
      %v3279 = vpack.c.b16 %v3247, %v3247
      %v3280 = vpack.c.b16 %v3248, %v3248
      %v3281 = vpack.c.b16 %v3249, %v3249
      %v3282 = vpack.c.b16 %v3250, %v3250
      %v3283 = vpack.c.b16 %v3251, %v3251
      %v3284 = vpack.c.b16 %v3252, %v3252
      %v3285 = vpack.c.b16 %v3253, %v3253
      %v3286 = vpack.c.b16 %v3254, %v3254
      %v3287 = vpack.c.b16 %v3255, %v3255
      %3320 = vst.msk [vmem:[#allocation2] sm:$0xf] %vm1155, %v3256
      %3321 = vst.msk [vmem:[#allocation2 + $0x4] sm:$0xf] %vm1155, %v3257
      %3322 = vst.msk [vmem:[#allocation2 + $0x8] sm:$0xf] %vm1155, %v3258
      %3323 = vst.msk [vmem:[#allocation2 + $0xc] sm:$0xf] %vm1155, %v3259
      %3324 = vst.msk [vmem:[#allocation2 + $0x10] sm:$0xf] %vm1155, %v3256
      %3325 = vst.msk [vmem:[#allocation2 + $0x14] sm:$0xf] %vm1155, %v3257
      %3326 = vst.msk [vmem:[#allocation2 + $0x18] sm:$0xf] %vm1155, %v3260
      %3327 = vst.msk [vmem:[#allocation2 + $0x1c] sm:$0xf] %vm1155, %v3261
      %3328 = vst.msk [vmem:[#allocation2 + $0x20] sm:$0xf] %vm1155, %v3262
      %3329 = vst.msk [vmem:[#allocation2 + $0x24] sm:$0xf] %vm1155, %v3263
      %3330 = vst.msk [vmem:[#allocation2 + $0x28] sm:$0xf] %vm1155, %v3264
      %3331 = vst.msk [vmem:[#allocation2 + $0x2c] sm:$0xf] %vm1155, %v3265
      %3332 = vst.msk [vmem:[#allocation2 + $0x30] sm:$0xf] %vm1155, %v3266
      %3333 = vst.msk [vmem:[#allocation2 + $0x34] sm:$0xf] %vm1155, %v3267
      %3334 = vst.msk [vmem:[#allocation2 + $0x38] sm:$0xf] %vm1155, %v3268
      %3335 = vst.msk [vmem:[#allocation2 + $0x3c] sm:$0xf] %vm1155, %v3269
      %3336 = vst.msk [vmem:[#allocation2 + $0x40] sm:$0xf] %vm1155, %v3270
      %3337 = vst.msk [vmem:[#allocation2 + $0x44] sm:$0xf] %vm1155, %v3271
      %3338 = vst.msk [vmem:[#allocation2 + $0x48] sm:$0xf] %vm1155, %v3272
      %3339 = vst.msk [vmem:[#allocation2 + $0x4c] sm:$0xf] %vm1155, %v3273
      %3340 = vst.msk [vmem:[#allocation2 + $0x50] sm:$0xf] %vm1155, %v3274
      %3341 = vst.msk [vmem:[#allocation2 + $0x54] sm:$0xf] %vm1155, %v3275
      %3342 = vst.msk [vmem:[#allocation2 + $0x58] sm:$0xf] %vm1155, %v3276
      %3343 = vst.msk [vmem:[#allocation2 + $0x5c] sm:$0xf] %vm1155, %v3277
      %3344 = vst.msk [vmem:[#allocation2 + $0x60] sm:$0xf] %vm1155, %v3278
      %3345 = vst.msk [vmem:[#allocation2 + $0x64] sm:$0xf] %vm1155, %v3279
      %3346 = vst.msk [vmem:[#allocation2 + $0x68] sm:$0xf] %vm1155, %v3280
      %3347 = vst.msk [vmem:[#allocation2 + $0x6c] sm:$0xf] %vm1155, %v3281
      %3348 = vst.msk [vmem:[#allocation2 + $0x70] sm:$0xf] %vm1155, %v3282
      %3349 = vst.msk [vmem:[#allocation2 + $0x74] sm:$0xf] %vm1155, %v3283
      %3350 = vst.msk [vmem:[#allocation2 + $0x78] sm:$0xf] %vm1155, %v3284
      %3351 = vst.msk [vmem:[#allocation2 + $0x7c] sm:$0xf] %vm1155, %v3285
      %3352 = vst.msk [vmem:[#allocation2 + $0x80] sm:$0xf] %vm1155, %v3286
      %3353 = vst.msk [vmem:[#allocation2 + $0x84] sm:$0xf] %vm1155, %v3287
      %3354 = vst.msk [vmem:[#allocation2 + $0x88] sm:$0xf] %vm1155, %v3284
      %3355 = vst.msk [vmem:[#allocation2 + $0x8c] sm:$0xf] %vm1155, %v3285
      %v3356 = vld [vmem:[%s2] sm:$0xf]
      %v3357 = vld [vmem:[%s2 + $0x4] sm:$0x3]
      %v3358 = vld [vmem:[%s2 + $0x8] sm:$0xf]
      %v3359 = vld [vmem:[%s2 + $0xc] sm:$0x3]
      %v3360 = vld [vmem:[%s2 + $0x10] sm:$0xf]
      %v3361 = vld [vmem:[%s2 + $0x14] sm:$0x3]
      %v3362 = vld [vmem:[%s1200] sm:$0xf]
      %v3363 = vld [vmem:[%s1200 + $0x4] sm:$0xf]
      %v3364 = vld [vmem:[%s1200 + $0x8] sm:$0xf]
      %v3365 = vld [vmem:[%s1200 + $0xc] sm:$0xf]
      %v3366 = vld [vmem:[%s1200 + $0x10] sm:$0xf]
      %v3367 = vld [vmem:[%s1200 + $0x14] sm:$0xf]
      %v3368 = vld [vmem:[%s1200 + $0x18] sm:$0xf]
      %v3369 = vld [vmem:[%s1200 + $0x1c] sm:$0xf]
      %v3370 = vld [vmem:[%s1200 + $0x20] sm:$0xf]
      %v3371 = vld [vmem:[%s1200 + $0x24] sm:$0xf]
      %v3372 = vld [vmem:[%s1200 + $0x28] sm:$0xf]
      %v3373 = vld [vmem:[%s1200 + $0x2c] sm:$0xf]
      %v3374 = vld [vmem:[%s1200 + $0x30] sm:$0xf]
      %v3375 = vld [vmem:[%s1200 + $0x34] sm:$0xf]
      %v3376 = vld [vmem:[%s1200 + $0x38] sm:$0xf]
      %v3377 = vld [vmem:[%s1200 + $0x3c] sm:$0xf]
      %v3378 = vld [vmem:[%s1200 + $0x40] sm:$0xf]
      %v3379 = vld [vmem:[%s1200 + $0x44] sm:$0xf]
      %v3380 = vld [vmem:[%s1200 + $0x48] sm:$0xf]
      %v3381 = vld [vmem:[%s1200 + $0x4c] sm:$0xf]
      %v3382 = vld [vmem:[%s1200 + $0x50] sm:$0xf]
      %v3383 = vld [vmem:[%s1200 + $0x54] sm:$0xf]
      %v3384 = vld [vmem:[%s1200 + $0x58] sm:$0xf]
      %v3385 = vld [vmem:[%s1200 + $0x5c] sm:$0xf]
      %v3386 = vld [vmem:[%s1200 + $0x60] sm:$0xf]
      %v3387 = vld [vmem:[%s1200 + $0x64] sm:$0xf]
      %v3388 = vld [vmem:[%s1200 + $0x68] sm:$0xf]
      %v3389 = vld [vmem:[%s1200 + $0x6c] sm:$0xf]
      %v3390 = vld [vmem:[%s1200 + $0x70] sm:$0xf]
      %v3391 = vld [vmem:[%s1200 + $0x74] sm:$0xf]
      %v3392 = vld [vmem:[%s1200 + $0x78] sm:$0xf]
      %v3393 = vld [vmem:[%s1200 + $0x7c] sm:$0xf]
      %v3394 = vld [vmem:[%s1236] sm:$0xf]
      %v3395 = vld [vmem:[%s1236 + $0x4] sm:$0xf]
      %v3396 = vld [vmem:[%s1236 + $0x8] sm:$0xf]
      %v3397 = vld [vmem:[%s1236 + $0xc] sm:$0xf]
      %v3398 = vld [vmem:[%s1236 + $0x10] sm:$0xf]
      %v3399 = vld [vmem:[%s1236 + $0x14] sm:$0xf]
      %v3400 = vld [vmem:[%s1236 + $0x18] sm:$0xf]
      %v3401 = vld [vmem:[%s1236 + $0x1c] sm:$0xf]
      %v3402 = vld [vmem:[%s1236 + $0x20] sm:$0xf]
      %v3403 = vld [vmem:[%s1236 + $0x24] sm:$0xf]
      %v3404 = vld [vmem:[%s1236 + $0x28] sm:$0xf]
      %v3405 = vld [vmem:[%s1236 + $0x2c] sm:$0xf]
      %v3406 = vld [vmem:[%s1236 + $0x30] sm:$0xf]
      %v3407 = vld [vmem:[%s1236 + $0x34] sm:$0xf]
      %v3408 = vld [vmem:[%s1236 + $0x38] sm:$0xf]
      %v3409 = vld [vmem:[%s1236 + $0x3c] sm:$0xf]
      %v3410 = vld [vmem:[%s1236 + $0x40] sm:$0xf]
      %v3411 = vld [vmem:[%s1236 + $0x44] sm:$0xf]
      %v3412 = vld [vmem:[%s1236 + $0x48] sm:$0xf]
      %v3413 = vld [vmem:[%s1236 + $0x4c] sm:$0xf]
      %v3414 = vld [vmem:[%s1236 + $0x50] sm:$0xf]
      %v3415 = vld [vmem:[%s1236 + $0x54] sm:$0xf]
      %v3416 = vld [vmem:[%s1236 + $0x58] sm:$0xf]
      %v3417 = vld [vmem:[%s1236 + $0x5c] sm:$0xf]
      %v3418 = vld [vmem:[%s1236 + $0x60] sm:$0xf]
      %v3419 = vld [vmem:[%s1236 + $0x64] sm:$0xf]
      %v3420 = vld [vmem:[%s1236 + $0x68] sm:$0xf]
      %v3421 = vld [vmem:[%s1236 + $0x6c] sm:$0xf]
      %v3422 = vld [vmem:[%s1236 + $0x70] sm:$0xf]
      %v3423 = vld [vmem:[%s1236 + $0x74] sm:$0xf]
      %v3424 = vld [vmem:[%s1236 + $0x78] sm:$0xf]
      %v3425 = vld [vmem:[%s1236 + $0x7c] sm:$0xf]
      %v3458 = vunpack.c.l.b16 %v3394
      %v3459 = vunpack.c.l.b16 %v3395
      %v3460 = vunpack.c.l.b16 %v3396
      %v3461 = vunpack.c.l.b16 %v3397
      %v3462 = vunpack.c.l.b16 %v3398
      %v3463 = vunpack.c.l.b16 %v3399
      %v3464 = vunpack.c.l.b16 %v3400
      %v3465 = vunpack.c.l.b16 %v3401
      %v3466 = vunpack.c.l.b16 %v3402
      %v3467 = vunpack.c.l.b16 %v3403
      %v3468 = vunpack.c.l.b16 %v3404
      %v3469 = vunpack.c.l.b16 %v3405
      %v3470 = vunpack.c.l.b16 %v3406
      %v3471 = vunpack.c.l.b16 %v3407
      %v3472 = vunpack.c.l.b16 %v3408
      %v3473 = vunpack.c.l.b16 %v3409
      %v3474 = vunpack.c.l.b16 %v3410
      %v3475 = vunpack.c.l.b16 %v3411
      %v3476 = vunpack.c.l.b16 %v3412
      %v3477 = vunpack.c.l.b16 %v3413
      %v3478 = vunpack.c.l.b16 %v3414
      %v3479 = vunpack.c.l.b16 %v3415
      %v3480 = vunpack.c.l.b16 %v3416
      %v3481 = vunpack.c.l.b16 %v3417
      %v3482 = vunpack.c.l.b16 %v3418
      %v3483 = vunpack.c.l.b16 %v3419
      %v3484 = vunpack.c.l.b16 %v3420
      %v3485 = vunpack.c.l.b16 %v3421
      %v3486 = vunpack.c.l.b16 %v3422
      %v3487 = vunpack.c.l.b16 %v3423
      %v3488 = vunpack.c.l.b16 %v3424
      %v3489 = vunpack.c.l.b16 %v3425
      %v3490 = vpack.c.b16 %v3459, %v3458
      %v3491 = vpack.c.b16 %v3461, %v3460
      %v3492 = vpack.c.b16 %v3463, %v3462
      %v3493 = vpack.c.b16 %v3465, %v3464
      %v3494 = vpack.c.b16 %v3467, %v3466
      %v3495 = vpack.c.b16 %v3469, %v3468
      %v3496 = vpack.c.b16 %v3471, %v3470
      %v3497 = vpack.c.b16 %v3473, %v3472
      %v3498 = vpack.c.b16 %v3475, %v3474
      %v3499 = vpack.c.b16 %v3477, %v3476
      %v3500 = vpack.c.b16 %v3479, %v3478
      %v3501 = vpack.c.b16 %v3481, %v3480
      %v3502 = vpack.c.b16 %v3483, %v3482
      %v3503 = vpack.c.b16 %v3485, %v3484
      %v3504 = vpack.c.b16 %v3487, %v3486
      %v3505 = vpack.c.b16 %v3489, %v3488
      %v3508 = vunpack.c.l.b16 %v3358
      %v3509 = vunpack.c.l.b16 %v3359
      %v3510 = vpack.c.b16 %v3509, %v3508
      %v3512 = vsel %vm1354, %v3490, 0
      %v3515 = vsel %vm1354, %v3491, 0
      %v3518 = vsel %vm1354, %v3492, 0
      %v3521 = vsel %vm1354, %v3493, 0
      %v3524 = vsel %vm1354, %v3494, 0
      %v3527 = vsel %vm1354, %v3495, 0
      %v3530 = vsel %vm1354, %v3496, 0
      %v3533 = vsel %vm1354, %v3497, 0
      %v3536 = vsel %vm1354, %v3498, 0
      %v3539 = vsel %vm1354, %v3499, 0
      %v3542 = vsel %vm1354, %v3500, 0
      %v3545 = vsel %vm1354, %v3501, 0
      %v3548 = vsel %vm1354, %v3502, 0
      %v3551 = vsel %vm1354, %v3503, 0
      %v3554 = vsel %vm1354, %v3504, 0
      %v3557 = vsel %vm1354, %v3505, 0
      %v3560 = vsel %vm1403, %v3510, 0
      %3562 = vmatprep.subr.bf16.mxu0 0
      %3563 = vmatpush1.bf16.msra.mxu0 0
      %3564 = vmatprep.subr.bf16.mxu0 0
      %3565 = vmatpush1.bf16.msra.mxu0 0
      %3566 = vmatprep.subr.bf16.mxu0 0
      %3567 = vmatpush1.bf16.msra.mxu0 0
      %3568 = vmatprep.subr.bf16.mxu0 0
      %3569 = vmatpush1.bf16.msra.mxu0 0
      %3570 = vmatprep.subr.bf16.mxu0 0
      %3571 = vmatpush1.bf16.msra.mxu0 0
      %3572 = vmatprep.subr.bf16.mxu0 0
      %3573 = vmatpush1.bf16.msra.mxu0 0
      %3574 = vmatprep.subr.bf16.mxu0 0
      %3575 = vmatpush1.bf16.msra.mxu0 0
      %3576 = vmatprep.subr.bf16.mxu0 0
      %3577 = vmatpush1.bf16.msra.mxu0 %v3560
      %3578 = vmatprep.subr.bf16.mxu0 0
      %3579 = vmatpush2.bf16.msra.mxu0 0
      %3580 = vmatprep.subr.bf16.mxu0 0
      %3581 = vmatpush2.bf16.msra.mxu0 0
      %3582 = vmatprep.subr.bf16.mxu0 0
      %3583 = vmatpush2.bf16.msra.mxu0 0
      %3584 = vmatprep.subr.bf16.mxu0 0
      %3585 = vmatpush2.bf16.msra.mxu0 0
      %3586 = vmatprep.subr.bf16.mxu0 0
      %3587 = vmatpush2.bf16.msra.mxu0 0
      %3588 = vmatprep.subr.bf16.mxu0 0
      %3589 = vmatpush2.bf16.msra.mxu0 0
      %3590 = vmatprep.subr.bf16.mxu0 0
      %3591 = vmatpush2.bf16.msra.mxu0 0
      %3592 = vmatprep.subr.bf16.mxu0 0
      %3593 = vmatpush2.bf16.msra.mxu0 0
      %3594 = vmatprep.mubr.bf16.mxu0 0
      %3595 = vmatmul.mubr.bf16.gmra.mxu0 %v3512
      %v3596 = vpop.f32.mrf.mxu0
      %v3597 = vadd.f32 0.0, %v3596
      %v3598 = vpop.f32.mrf.mxu0
      %v3599 = vpop.f32.mrf.mxu0
      %v3600 = vadd.f32 0.0, %v3599
      %v3601 = vpop.f32.mrf.mxu0
      %3602 = vmatprep.mubr.bf16.mxu0 0
      %3603 = vmatmul.mubr.bf16.gmra.mxu0 %v3515
      %v3604 = vpop.f32.mrf.mxu0
      %v3605 = vadd.f32 0.0, %v3604
      %v3606 = vpop.f32.mrf.mxu0
      %v3607 = vpop.f32.mrf.mxu0
      %v3608 = vadd.f32 0.0, %v3607
      %v3609 = vpop.f32.mrf.mxu0
      %3610 = vmatprep.mubr.bf16.mxu0 0
      %3611 = vmatmul.mubr.bf16.gmra.mxu0 %v3518
      %v3612 = vpop.f32.mrf.mxu0
      %v3613 = vadd.f32 0.0, %v3612
      %v3614 = vpop.f32.mrf.mxu0
      %v3615 = vpop.f32.mrf.mxu0
      %v3616 = vadd.f32 0.0, %v3615
      %v3617 = vpop.f32.mrf.mxu0
      %3618 = vmatprep.mubr.bf16.mxu0 0
      %3619 = vmatmul.mubr.bf16.gmra.mxu0 %v3521
      %v3620 = vpop.f32.mrf.mxu0
      %v3621 = vadd.f32 0.0, %v3620
      %v3622 = vpop.f32.mrf.mxu0
      %v3623 = vpop.f32.mrf.mxu0
      %v3624 = vadd.f32 0.0, %v3623
      %v3625 = vpop.f32.mrf.mxu0
      %3626 = vmatprep.mubr.bf16.mxu0 0
      %3627 = vmatmul.mubr.bf16.gmra.mxu0 %v3524
      %v3628 = vpop.f32.mrf.mxu0
      %v3629 = vadd.f32 0.0, %v3628
      %v3630 = vpop.f32.mrf.mxu0
      %v3631 = vpop.f32.mrf.mxu0
      %v3632 = vadd.f32 0.0, %v3631
      %v3633 = vpop.f32.mrf.mxu0
      %3634 = vmatprep.mubr.bf16.mxu0 0
      %3635 = vmatmul.mubr.bf16.gmra.mxu0 %v3527
      %v3636 = vpop.f32.mrf.mxu0
      %v3637 = vadd.f32 0.0, %v3636
      %v3638 = vpop.f32.mrf.mxu0
      %v3639 = vpop.f32.mrf.mxu0
      %v3640 = vadd.f32 0.0, %v3639
      %v3641 = vpop.f32.mrf.mxu0
      %3642 = vmatprep.mubr.bf16.mxu0 0
      %3643 = vmatmul.mubr.bf16.gmra.mxu0 %v3530
      %v3644 = vpop.f32.mrf.mxu0
      %v3645 = vadd.f32 0.0, %v3644
      %v3646 = vpop.f32.mrf.mxu0
      %v3647 = vpop.f32.mrf.mxu0
      %v3648 = vadd.f32 0.0, %v3647
      %v3649 = vpop.f32.mrf.mxu0
      %3650 = vmatprep.mubr.bf16.mxu0 0
      %3651 = vmatmul.mubr.bf16.gmra.mxu0 %v3533
      %v3652 = vpop.f32.mrf.mxu0
      %v3653 = vadd.f32 0.0, %v3652
      %v3654 = vpop.f32.mrf.mxu0
      %v3655 = vpop.f32.mrf.mxu0
      %v3656 = vadd.f32 0.0, %v3655
      %v3657 = vpop.f32.mrf.mxu0
      %3658 = vmatprep.mubr.bf16.mxu0 0
      %3659 = vmatmul.mubr.bf16.gmra.mxu0 %v3536
      %v3660 = vpop.f32.mrf.mxu0
      %v3661 = vadd.f32 0.0, %v3660
      %v3662 = vpop.f32.mrf.mxu0
      %v3663 = vpop.f32.mrf.mxu0
      %v3664 = vadd.f32 0.0, %v3663
      %v3665 = vpop.f32.mrf.mxu0
      %3666 = vmatprep.mubr.bf16.mxu0 0
      %3667 = vmatmul.mubr.bf16.gmra.mxu0 %v3539
      %v3668 = vpop.f32.mrf.mxu0
      %v3669 = vadd.f32 0.0, %v3668
      %v3670 = vpop.f32.mrf.mxu0
      %v3671 = vpop.f32.mrf.mxu0
      %v3672 = vadd.f32 0.0, %v3671
      %v3673 = vpop.f32.mrf.mxu0
      %3674 = vmatprep.mubr.bf16.mxu0 0
      %3675 = vmatmul.mubr.bf16.gmra.mxu0 %v3542
      %v3676 = vpop.f32.mrf.mxu0
      %v3677 = vadd.f32 0.0, %v3676
      %v3678 = vpop.f32.mrf.mxu0
      %v3679 = vpop.f32.mrf.mxu0
      %v3680 = vadd.f32 0.0, %v3679
      %v3681 = vpop.f32.mrf.mxu0
      %3682 = vmatprep.mubr.bf16.mxu0 0
      %3683 = vmatmul.mubr.bf16.gmra.mxu0 %v3545
      %v3684 = vpop.f32.mrf.mxu0
      %v3685 = vadd.f32 0.0, %v3684
      %v3686 = vpop.f32.mrf.mxu0
      %v3687 = vpop.f32.mrf.mxu0
      %v3688 = vadd.f32 0.0, %v3687
      %v3689 = vpop.f32.mrf.mxu0
      %3690 = vmatprep.mubr.bf16.mxu0 0
      %3691 = vmatmul.mubr.bf16.gmra.mxu0 %v3548
      %v3692 = vpop.f32.mrf.mxu0
      %v3693 = vadd.f32 0.0, %v3692
      %v3694 = vpop.f32.mrf.mxu0
      %v3695 = vpop.f32.mrf.mxu0
      %v3696 = vadd.f32 0.0, %v3695
      %v3697 = vpop.f32.mrf.mxu0
      %3698 = vmatprep.mubr.bf16.mxu0 0
      %3699 = vmatmul.mubr.bf16.gmra.mxu0 %v3551
      %v3700 = vpop.f32.mrf.mxu0
      %v3701 = vadd.f32 0.0, %v3700
      %v3702 = vpop.f32.mrf.mxu0
      %v3703 = vpop.f32.mrf.mxu0
      %v3704 = vadd.f32 0.0, %v3703
      %v3705 = vpop.f32.mrf.mxu0
      %3706 = vmatprep.mubr.bf16.mxu0 0
      %3707 = vmatmul.mubr.bf16.gmra.mxu0 %v3554
      %v3708 = vpop.f32.mrf.mxu0
      %v3709 = vadd.f32 0.0, %v3708
      %v3710 = vpop.f32.mrf.mxu0
      %v3711 = vpop.f32.mrf.mxu0
      %v3712 = vadd.f32 0.0, %v3711
      %v3713 = vpop.f32.mrf.mxu0
      %3714 = vmatprep.mubr.bf16.mxu0 0
      %3715 = vmatmul.mubr.bf16.gmra.mxu0 %v3557
      %v3716 = vpop.f32.mrf.mxu0
      %v3717 = vadd.f32 0.0, %v3716
      %v3718 = vpop.f32.mrf.mxu0
      %v3719 = vpop.f32.mrf.mxu0
      %v3720 = vadd.f32 0.0, %v3719
      %v3721 = vpop.f32.mrf.mxu0
      %3722 = vdwg.mxu0
      %v3755 = vunpack.c.l.b16 %v3362
      %v3756 = vunpack.c.l.b16 %v3363
      %v3757 = vunpack.c.l.b16 %v3364
      %v3758 = vunpack.c.l.b16 %v3365
      %v3759 = vunpack.c.l.b16 %v3366
      %v3760 = vunpack.c.l.b16 %v3367
      %v3761 = vunpack.c.l.b16 %v3368
      %v3762 = vunpack.c.l.b16 %v3369
      %v3763 = vunpack.c.l.b16 %v3370
      %v3764 = vunpack.c.l.b16 %v3371
      %v3765 = vunpack.c.l.b16 %v3372
      %v3766 = vunpack.c.l.b16 %v3373
      %v3767 = vunpack.c.l.b16 %v3374
      %v3768 = vunpack.c.l.b16 %v3375
      %v3769 = vunpack.c.l.b16 %v3376
      %v3770 = vunpack.c.l.b16 %v3377
      %v3771 = vunpack.c.l.b16 %v3378
      %v3772 = vunpack.c.l.b16 %v3379
      %v3773 = vunpack.c.l.b16 %v3380
      %v3774 = vunpack.c.l.b16 %v3381
      %v3775 = vunpack.c.l.b16 %v3382
      %v3776 = vunpack.c.l.b16 %v3383
      %v3777 = vunpack.c.l.b16 %v3384
      %v3778 = vunpack.c.l.b16 %v3385
      %v3779 = vunpack.c.l.b16 %v3386
      %v3780 = vunpack.c.l.b16 %v3387
      %v3781 = vunpack.c.l.b16 %v3388
      %v3782 = vunpack.c.l.b16 %v3389
      %v3783 = vunpack.c.l.b16 %v3390
      %v3784 = vunpack.c.l.b16 %v3391
      %v3785 = vunpack.c.l.b16 %v3392
      %v3786 = vunpack.c.l.b16 %v3393
      %v3787 = vpack.c.b16 %v3756, %v3755
      %v3788 = vpack.c.b16 %v3758, %v3757
      %v3789 = vpack.c.b16 %v3760, %v3759
      %v3790 = vpack.c.b16 %v3762, %v3761
      %v3791 = vpack.c.b16 %v3764, %v3763
      %v3792 = vpack.c.b16 %v3766, %v3765
      %v3793 = vpack.c.b16 %v3768, %v3767
      %v3794 = vpack.c.b16 %v3770, %v3769
      %v3795 = vpack.c.b16 %v3772, %v3771
      %v3796 = vpack.c.b16 %v3774, %v3773
      %v3797 = vpack.c.b16 %v3776, %v3775
      %v3798 = vpack.c.b16 %v3778, %v3777
      %v3799 = vpack.c.b16 %v3780, %v3779
      %v3800 = vpack.c.b16 %v3782, %v3781
      %v3801 = vpack.c.b16 %v3784, %v3783
      %v3802 = vpack.c.b16 %v3786, %v3785
      %v3805 = vunpack.c.l.b16 %v3356
      %v3806 = vunpack.c.l.b16 %v3357
      %v3807 = vpack.c.b16 %v3806, %v3805
      %v3809 = vsel %vm1354, %v3787, 0
      %v3812 = vsel %vm1354, %v3788, 0
      %v3815 = vsel %vm1354, %v3789, 0
      %v3818 = vsel %vm1354, %v3790, 0
      %v3821 = vsel %vm1354, %v3791, 0
      %v3824 = vsel %vm1354, %v3792, 0
      %v3827 = vsel %vm1354, %v3793, 0
      %v3830 = vsel %vm1354, %v3794, 0
      %v3833 = vsel %vm1354, %v3795, 0
      %v3836 = vsel %vm1354, %v3796, 0
      %v3839 = vsel %vm1354, %v3797, 0
      %v3842 = vsel %vm1354, %v3798, 0
      %v3845 = vsel %vm1354, %v3799, 0
      %v3848 = vsel %vm1354, %v3800, 0
      %v3851 = vsel %vm1354, %v3801, 0
      %v3854 = vsel %vm1354, %v3802, 0
      %v3857 = vsel %vm1403, %v3807, 0
      %3859 = vmatprep.subr.bf16.mxu0 0
      %3860 = vmatpush1.bf16.msra.mxu0 0
      %3861 = vmatprep.subr.bf16.mxu0 0
      %3862 = vmatpush1.bf16.msra.mxu0 0
      %3863 = vmatprep.subr.bf16.mxu0 0
      %3864 = vmatpush1.bf16.msra.mxu0 0
      %3865 = vmatprep.subr.bf16.mxu0 0
      %3866 = vmatpush1.bf16.msra.mxu0 0
      %3867 = vmatprep.subr.bf16.mxu0 0
      %3868 = vmatpush1.bf16.msra.mxu0 0
      %3869 = vmatprep.subr.bf16.mxu0 0
      %3870 = vmatpush1.bf16.msra.mxu0 0
      %3871 = vmatprep.subr.bf16.mxu0 0
      %3872 = vmatpush1.bf16.msra.mxu0 0
      %3873 = vmatprep.subr.bf16.mxu0 0
      %3874 = vmatpush1.bf16.msra.mxu0 %v3857
      %3875 = vmatprep.subr.bf16.mxu0 0
      %3876 = vmatpush2.bf16.msra.mxu0 0
      %3877 = vmatprep.subr.bf16.mxu0 0
      %3878 = vmatpush2.bf16.msra.mxu0 0
      %3879 = vmatprep.subr.bf16.mxu0 0
      %3880 = vmatpush2.bf16.msra.mxu0 0
      %3881 = vmatprep.subr.bf16.mxu0 0
      %3882 = vmatpush2.bf16.msra.mxu0 0
      %3883 = vmatprep.subr.bf16.mxu0 0
      %3884 = vmatpush2.bf16.msra.mxu0 0
      %3885 = vmatprep.subr.bf16.mxu0 0
      %3886 = vmatpush2.bf16.msra.mxu0 0
      %3887 = vmatprep.subr.bf16.mxu0 0
      %3888 = vmatpush2.bf16.msra.mxu0 0
      %3889 = vmatprep.subr.bf16.mxu0 0
      %3890 = vmatpush2.bf16.msra.mxu0 0
      %3891 = vmatprep.mubr.bf16.mxu0 0
      %3892 = vmatmul.mubr.bf16.gmra.mxu0 %v3809
      %v3893 = vpop.f32.mrf.mxu0
      %v3894 = vadd.f32 %v3597, %v3893
      %v3895 = vpop.f32.mrf.mxu0
      %v3896 = vpop.f32.mrf.mxu0
      %v3897 = vadd.f32 %v3600, %v3896
      %v3898 = vpop.f32.mrf.mxu0
      %3899 = vmatprep.mubr.bf16.mxu0 0
      %3900 = vmatmul.mubr.bf16.gmra.mxu0 %v3812
      %v3901 = vpop.f32.mrf.mxu0
      %v3902 = vadd.f32 %v3605, %v3901
      %v3903 = vpop.f32.mrf.mxu0
      %v3904 = vpop.f32.mrf.mxu0
      %v3905 = vadd.f32 %v3608, %v3904
      %v3906 = vpop.f32.mrf.mxu0
      %3907 = vmatprep.mubr.bf16.mxu0 0
      %3908 = vmatmul.mubr.bf16.gmra.mxu0 %v3815
      %v3909 = vpop.f32.mrf.mxu0
      %v3910 = vadd.f32 %v3613, %v3909
      %v3911 = vpop.f32.mrf.mxu0
      %v3912 = vpop.f32.mrf.mxu0
      %v3913 = vadd.f32 %v3616, %v3912
      %v3914 = vpop.f32.mrf.mxu0
      %3915 = vmatprep.mubr.bf16.mxu0 0
      %3916 = vmatmul.mubr.bf16.gmra.mxu0 %v3818
      %v3917 = vpop.f32.mrf.mxu0
      %v3918 = vadd.f32 %v3621, %v3917
      %v3919 = vpop.f32.mrf.mxu0
      %v3920 = vpop.f32.mrf.mxu0
      %v3921 = vadd.f32 %v3624, %v3920
      %v3922 = vpop.f32.mrf.mxu0
      %3923 = vmatprep.mubr.bf16.mxu0 0
      %3924 = vmatmul.mubr.bf16.gmra.mxu0 %v3821
      %v3925 = vpop.f32.mrf.mxu0
      %v3926 = vadd.f32 %v3629, %v3925
      %v3927 = vpop.f32.mrf.mxu0
      %v3928 = vpop.f32.mrf.mxu0
      %v3929 = vadd.f32 %v3632, %v3928
      %v3930 = vpop.f32.mrf.mxu0
      %3931 = vmatprep.mubr.bf16.mxu0 0
      %3932 = vmatmul.mubr.bf16.gmra.mxu0 %v3824
      %v3933 = vpop.f32.mrf.mxu0
      %v3934 = vadd.f32 %v3637, %v3933
      %v3935 = vpop.f32.mrf.mxu0
      %v3936 = vpop.f32.mrf.mxu0
      %v3937 = vadd.f32 %v3640, %v3936
      %v3938 = vpop.f32.mrf.mxu0
      %3939 = vmatprep.mubr.bf16.mxu0 0
      %3940 = vmatmul.mubr.bf16.gmra.mxu0 %v3827
      %v3941 = vpop.f32.mrf.mxu0
      %v3942 = vadd.f32 %v3645, %v3941
      %v3943 = vpop.f32.mrf.mxu0
      %v3944 = vpop.f32.mrf.mxu0
      %v3945 = vadd.f32 %v3648, %v3944
      %v3946 = vpop.f32.mrf.mxu0
      %3947 = vmatprep.mubr.bf16.mxu0 0
      %3948 = vmatmul.mubr.bf16.gmra.mxu0 %v3830
      %v3949 = vpop.f32.mrf.mxu0
      %v3950 = vadd.f32 %v3653, %v3949
      %v3951 = vpop.f32.mrf.mxu0
      %v3952 = vpop.f32.mrf.mxu0
      %v3953 = vadd.f32 %v3656, %v3952
      %v3954 = vpop.f32.mrf.mxu0
      %3955 = vmatprep.mubr.bf16.mxu0 0
      %3956 = vmatmul.mubr.bf16.gmra.mxu0 %v3833
      %v3957 = vpop.f32.mrf.mxu0
      %v3958 = vadd.f32 %v3661, %v3957
      %v3959 = vpop.f32.mrf.mxu0
      %v3960 = vpop.f32.mrf.mxu0
      %v3961 = vadd.f32 %v3664, %v3960
      %v3962 = vpop.f32.mrf.mxu0
      %3963 = vmatprep.mubr.bf16.mxu0 0
      %3964 = vmatmul.mubr.bf16.gmra.mxu0 %v3836
      %v3965 = vpop.f32.mrf.mxu0
      %v3966 = vadd.f32 %v3669, %v3965
      %v3967 = vpop.f32.mrf.mxu0
      %v3968 = vpop.f32.mrf.mxu0
      %v3969 = vadd.f32 %v3672, %v3968
      %v3970 = vpop.f32.mrf.mxu0
      %3971 = vmatprep.mubr.bf16.mxu0 0
      %3972 = vmatmul.mubr.bf16.gmra.mxu0 %v3839
      %v3973 = vpop.f32.mrf.mxu0
      %v3974 = vadd.f32 %v3677, %v3973
      %v3975 = vpop.f32.mrf.mxu0
      %v3976 = vpop.f32.mrf.mxu0
      %v3977 = vadd.f32 %v3680, %v3976
      %v3978 = vpop.f32.mrf.mxu0
      %3979 = vmatprep.mubr.bf16.mxu0 0
      %3980 = vmatmul.mubr.bf16.gmra.mxu0 %v3842
      %v3981 = vpop.f32.mrf.mxu0
      %v3982 = vadd.f32 %v3685, %v3981
      %v3983 = vpop.f32.mrf.mxu0
      %v3984 = vpop.f32.mrf.mxu0
      %v3985 = vadd.f32 %v3688, %v3984
      %v3986 = vpop.f32.mrf.mxu0
      %3987 = vmatprep.mubr.bf16.mxu0 0
      %3988 = vmatmul.mubr.bf16.gmra.mxu0 %v3845
      %v3989 = vpop.f32.mrf.mxu0
      %v3990 = vadd.f32 %v3693, %v3989
      %v3991 = vpop.f32.mrf.mxu0
      %v3992 = vpop.f32.mrf.mxu0
      %v3993 = vadd.f32 %v3696, %v3992
      %v3994 = vpop.f32.mrf.mxu0
      %3995 = vmatprep.mubr.bf16.mxu0 0
      %3996 = vmatmul.mubr.bf16.gmra.mxu0 %v3848
      %v3997 = vpop.f32.mrf.mxu0
      %v3998 = vadd.f32 %v3701, %v3997
      %v3999 = vpop.f32.mrf.mxu0
      %v4000 = vpop.f32.mrf.mxu0
      %v4001 = vadd.f32 %v3704, %v4000
      %v4002 = vpop.f32.mrf.mxu0
      %4003 = vmatprep.mubr.bf16.mxu0 0
      %4004 = vmatmul.mubr.bf16.gmra.mxu0 %v3851
      %v4005 = vpop.f32.mrf.mxu0
      %v4006 = vadd.f32 %v3709, %v4005
      %v4007 = vpop.f32.mrf.mxu0
      %v4008 = vpop.f32.mrf.mxu0
      %v4009 = vadd.f32 %v3712, %v4008
      %v4010 = vpop.f32.mrf.mxu0
      %4011 = vmatprep.mubr.bf16.mxu0 0
      %4012 = vmatmul.mubr.bf16.gmra.mxu0 %v3854
      %v4013 = vpop.f32.mrf.mxu0
      %v4014 = vadd.f32 %v3717, %v4013
      %v4015 = vpop.f32.mrf.mxu0
      %v4016 = vpop.f32.mrf.mxu0
      %v4017 = vadd.f32 %v3720, %v4016
      %v4018 = vpop.f32.mrf.mxu0
      %4019 = vdwg.mxu0
      %v4020 = vld [vmem:[%s1868] sm:$0xf]
      %v4021 = vld [vmem:[%s1868 + $0x4] sm:$0xf]
      %v4022 = vld [vmem:[%s1868 + $0x8] sm:$0xf]
      %v4023 = vld [vmem:[%s1868 + $0xc] sm:$0xf]
      %v4024 = vld [vmem:[%s1868 + $0x10] sm:$0xf]
      %v4025 = vld [vmem:[%s1868 + $0x14] sm:$0xf]
      %v4026 = vld [vmem:[%s1868 + $0x18] sm:$0xf]
      %v4027 = vld [vmem:[%s1868 + $0x1c] sm:$0xf]
      %v4028 = vld [vmem:[%s1868 + $0x20] sm:$0xf]
      %v4029 = vld [vmem:[%s1868 + $0x24] sm:$0xf]
      %v4030 = vld [vmem:[%s1868 + $0x28] sm:$0xf]
      %v4031 = vld [vmem:[%s1868 + $0x2c] sm:$0xf]
      %v4032 = vld [vmem:[%s1868 + $0x30] sm:$0xf]
      %v4033 = vld [vmem:[%s1868 + $0x34] sm:$0xf]
      %v4034 = vld [vmem:[%s1868 + $0x38] sm:$0xf]
      %v4035 = vld [vmem:[%s1868 + $0x3c] sm:$0xf]
      %v4036 = vld [vmem:[%s1868 + $0x40] sm:$0xf]
      %v4037 = vld [vmem:[%s1868 + $0x44] sm:$0xf]
      %v4038 = vld [vmem:[%s1868 + $0x48] sm:$0xf]
      %v4039 = vld [vmem:[%s1868 + $0x4c] sm:$0xf]
      %v4040 = vld [vmem:[%s1868 + $0x50] sm:$0xf]
      %v4041 = vld [vmem:[%s1868 + $0x54] sm:$0xf]
      %v4042 = vld [vmem:[%s1868 + $0x58] sm:$0xf]
      %v4043 = vld [vmem:[%s1868 + $0x5c] sm:$0xf]
      %v4044 = vld [vmem:[%s1868 + $0x60] sm:$0xf]
      %v4045 = vld [vmem:[%s1868 + $0x64] sm:$0xf]
      %v4046 = vld [vmem:[%s1868 + $0x68] sm:$0xf]
      %v4047 = vld [vmem:[%s1868 + $0x6c] sm:$0xf]
      %v4048 = vld [vmem:[%s1868 + $0x70] sm:$0xf]
      %v4049 = vld [vmem:[%s1868 + $0x74] sm:$0xf]
      %v4050 = vld [vmem:[%s1868 + $0x78] sm:$0xf]
      %v4051 = vld [vmem:[%s1868 + $0x7c] sm:$0xf]
      %v4084 = vunpack.c.l.b16 %v4020
      %v4085 = vunpack.c.l.b16 %v4021
      %v4086 = vunpack.c.l.b16 %v4022
      %v4087 = vunpack.c.l.b16 %v4023
      %v4088 = vunpack.c.l.b16 %v4024
      %v4089 = vunpack.c.l.b16 %v4025
      %v4090 = vunpack.c.l.b16 %v4026
      %v4091 = vunpack.c.l.b16 %v4027
      %v4092 = vunpack.c.l.b16 %v4028
      %v4093 = vunpack.c.l.b16 %v4029
      %v4094 = vunpack.c.l.b16 %v4030
      %v4095 = vunpack.c.l.b16 %v4031
      %v4096 = vunpack.c.l.b16 %v4032
      %v4097 = vunpack.c.l.b16 %v4033
      %v4098 = vunpack.c.l.b16 %v4034
      %v4099 = vunpack.c.l.b16 %v4035
      %v4100 = vunpack.c.l.b16 %v4036
      %v4101 = vunpack.c.l.b16 %v4037
      %v4102 = vunpack.c.l.b16 %v4038
      %v4103 = vunpack.c.l.b16 %v4039
      %v4104 = vunpack.c.l.b16 %v4040
      %v4105 = vunpack.c.l.b16 %v4041
      %v4106 = vunpack.c.l.b16 %v4042
      %v4107 = vunpack.c.l.b16 %v4043
      %v4108 = vunpack.c.l.b16 %v4044
      %v4109 = vunpack.c.l.b16 %v4045
      %v4110 = vunpack.c.l.b16 %v4046
      %v4111 = vunpack.c.l.b16 %v4047
      %v4112 = vunpack.c.l.b16 %v4048
      %v4113 = vunpack.c.l.b16 %v4049
      %v4114 = vunpack.c.l.b16 %v4050
      %v4115 = vunpack.c.l.b16 %v4051
      %v4116 = vpack.c.b16 %v4085, %v4084
      %v4117 = vpack.c.b16 %v4087, %v4086
      %v4118 = vpack.c.b16 %v4089, %v4088
      %v4119 = vpack.c.b16 %v4091, %v4090
      %v4120 = vpack.c.b16 %v4093, %v4092
      %v4121 = vpack.c.b16 %v4095, %v4094
      %v4122 = vpack.c.b16 %v4097, %v4096
      %v4123 = vpack.c.b16 %v4099, %v4098
      %v4124 = vpack.c.b16 %v4101, %v4100
      %v4125 = vpack.c.b16 %v4103, %v4102
      %v4126 = vpack.c.b16 %v4105, %v4104
      %v4127 = vpack.c.b16 %v4107, %v4106
      %v4128 = vpack.c.b16 %v4109, %v4108
      %v4129 = vpack.c.b16 %v4111, %v4110
      %v4130 = vpack.c.b16 %v4113, %v4112
      %v4131 = vpack.c.b16 %v4115, %v4114
      %v4134 = vunpack.c.l.b16 %v3360
      %v4135 = vunpack.c.l.b16 %v3361
      %v4136 = vpack.c.b16 %v4135, %v4134
      %v4138 = vsel %vm1354, %v4116, 0
      %v4141 = vsel %vm1354, %v4117, 0
      %v4144 = vsel %vm1354, %v4118, 0
      %v4147 = vsel %vm1354, %v4119, 0
      %v4150 = vsel %vm1354, %v4120, 0
      %v4153 = vsel %vm1354, %v4121, 0
      %v4156 = vsel %vm1354, %v4122, 0
      %v4159 = vsel %vm1354, %v4123, 0
      %v4162 = vsel %vm1354, %v4124, 0
      %v4165 = vsel %vm1354, %v4125, 0
      %v4168 = vsel %vm1354, %v4126, 0
      %v4171 = vsel %vm1354, %v4127, 0
      %v4174 = vsel %vm1354, %v4128, 0
      %v4177 = vsel %vm1354, %v4129, 0
      %v4180 = vsel %vm1354, %v4130, 0
      %v4183 = vsel %vm1354, %v4131, 0
      %v4186 = vsel %vm1403, %v4136, 0
      %4188 = vmatprep.subr.bf16.mxu0 0
      %4189 = vmatpush1.bf16.msra.mxu0 0
      %4190 = vmatprep.subr.bf16.mxu0 0
      %4191 = vmatpush1.bf16.msra.mxu0 0
      %4192 = vmatprep.subr.bf16.mxu0 0
      %4193 = vmatpush1.bf16.msra.mxu0 0
      %4194 = vmatprep.subr.bf16.mxu0 0
      %4195 = vmatpush1.bf16.msra.mxu0 0
      %4196 = vmatprep.subr.bf16.mxu0 0
      %4197 = vmatpush1.bf16.msra.mxu0 0
      %4198 = vmatprep.subr.bf16.mxu0 0
      %4199 = vmatpush1.bf16.msra.mxu0 0
      %4200 = vmatprep.subr.bf16.mxu0 0
      %4201 = vmatpush1.bf16.msra.mxu0 0
      %4202 = vmatprep.subr.bf16.mxu0 0
      %4203 = vmatpush1.bf16.msra.mxu0 %v4186
      %4204 = vmatprep.subr.bf16.mxu0 0
      %4205 = vmatpush2.bf16.msra.mxu0 0
      %4206 = vmatprep.subr.bf16.mxu0 0
      %4207 = vmatpush2.bf16.msra.mxu0 0
      %4208 = vmatprep.subr.bf16.mxu0 0
      %4209 = vmatpush2.bf16.msra.mxu0 0
      %4210 = vmatprep.subr.bf16.mxu0 0
      %4211 = vmatpush2.bf16.msra.mxu0 0
      %4212 = vmatprep.subr.bf16.mxu0 0
      %4213 = vmatpush2.bf16.msra.mxu0 0
      %4214 = vmatprep.subr.bf16.mxu0 0
      %4215 = vmatpush2.bf16.msra.mxu0 0
      %4216 = vmatprep.subr.bf16.mxu0 0
      %4217 = vmatpush2.bf16.msra.mxu0 0
      %4218 = vmatprep.subr.bf16.mxu0 0
      %4219 = vmatpush2.bf16.msra.mxu0 0
      %4220 = vmatprep.mubr.bf16.mxu0 0
      %4221 = vmatmul.mubr.bf16.gmra.mxu0 %v4138
      %v4222 = vpop.f32.mrf.mxu0
      %v4223 = vadd.f32 0.0, %v4222
      %v4224 = vpop.f32.mrf.mxu0
      %v4225 = vpop.f32.mrf.mxu0
      %v4226 = vadd.f32 0.0, %v4225
      %v4227 = vpop.f32.mrf.mxu0
      %4228 = vmatprep.mubr.bf16.mxu0 0
      %4229 = vmatmul.mubr.bf16.gmra.mxu0 %v4141
      %v4230 = vpop.f32.mrf.mxu0
      %v4231 = vadd.f32 0.0, %v4230
      %v4232 = vpop.f32.mrf.mxu0
      %v4233 = vpop.f32.mrf.mxu0
      %v4234 = vadd.f32 0.0, %v4233
      %v4235 = vpop.f32.mrf.mxu0
      %4236 = vmatprep.mubr.bf16.mxu0 0
      %4237 = vmatmul.mubr.bf16.gmra.mxu0 %v4144
      %v4238 = vpop.f32.mrf.mxu0
      %v4239 = vadd.f32 0.0, %v4238
      %v4240 = vpop.f32.mrf.mxu0
      %v4241 = vpop.f32.mrf.mxu0
      %v4242 = vadd.f32 0.0, %v4241
      %v4243 = vpop.f32.mrf.mxu0
      %4244 = vmatprep.mubr.bf16.mxu0 0
      %4245 = vmatmul.mubr.bf16.gmra.mxu0 %v4147
      %v4246 = vpop.f32.mrf.mxu0
      %v4247 = vadd.f32 0.0, %v4246
      %v4248 = vpop.f32.mrf.mxu0
      %v4249 = vpop.f32.mrf.mxu0
      %v4250 = vadd.f32 0.0, %v4249
      %v4251 = vpop.f32.mrf.mxu0
      %4252 = vmatprep.mubr.bf16.mxu0 0
      %4253 = vmatmul.mubr.bf16.gmra.mxu0 %v4150
      %v4254 = vpop.f32.mrf.mxu0
      %v4255 = vadd.f32 0.0, %v4254
      %v4256 = vpop.f32.mrf.mxu0
      %v4257 = vpop.f32.mrf.mxu0
      %v4258 = vadd.f32 0.0, %v4257
      %v4259 = vpop.f32.mrf.mxu0
      %4260 = vmatprep.mubr.bf16.mxu0 0
      %4261 = vmatmul.mubr.bf16.gmra.mxu0 %v4153
      %v4262 = vpop.f32.mrf.mxu0
      %v4263 = vadd.f32 0.0, %v4262
      %v4264 = vpop.f32.mrf.mxu0
      %v4265 = vpop.f32.mrf.mxu0
      %v4266 = vadd.f32 0.0, %v4265
      %v4267 = vpop.f32.mrf.mxu0
      %4268 = vmatprep.mubr.bf16.mxu0 0
      %4269 = vmatmul.mubr.bf16.gmra.mxu0 %v4156
      %v4270 = vpop.f32.mrf.mxu0
      %v4271 = vadd.f32 0.0, %v4270
      %v4272 = vpop.f32.mrf.mxu0
      %v4273 = vpop.f32.mrf.mxu0
      %v4274 = vadd.f32 0.0, %v4273
      %v4275 = vpop.f32.mrf.mxu0
      %4276 = vmatprep.mubr.bf16.mxu0 0
      %4277 = vmatmul.mubr.bf16.gmra.mxu0 %v4159
      %v4278 = vpop.f32.mrf.mxu0
      %v4279 = vadd.f32 0.0, %v4278
      %v4280 = vpop.f32.mrf.mxu0
      %v4281 = vpop.f32.mrf.mxu0
      %v4282 = vadd.f32 0.0, %v4281
      %v4283 = vpop.f32.mrf.mxu0
      %4284 = vmatprep.mubr.bf16.mxu0 0
      %4285 = vmatmul.mubr.bf16.gmra.mxu0 %v4162
      %v4286 = vpop.f32.mrf.mxu0
      %v4287 = vadd.f32 0.0, %v4286
      %v4288 = vpop.f32.mrf.mxu0
      %v4289 = vpop.f32.mrf.mxu0
      %v4290 = vadd.f32 0.0, %v4289
      %v4291 = vpop.f32.mrf.mxu0
      %4292 = vmatprep.mubr.bf16.mxu0 0
      %4293 = vmatmul.mubr.bf16.gmra.mxu0 %v4165
      %v4294 = vpop.f32.mrf.mxu0
      %v4295 = vadd.f32 0.0, %v4294
      %v4296 = vpop.f32.mrf.mxu0
      %v4297 = vpop.f32.mrf.mxu0
      %v4298 = vadd.f32 0.0, %v4297
      %v4299 = vpop.f32.mrf.mxu0
      %4300 = vmatprep.mubr.bf16.mxu0 0
      %4301 = vmatmul.mubr.bf16.gmra.mxu0 %v4168
      %v4302 = vpop.f32.mrf.mxu0
      %v4303 = vadd.f32 0.0, %v4302
      %v4304 = vpop.f32.mrf.mxu0
      %v4305 = vpop.f32.mrf.mxu0
      %v4306 = vadd.f32 0.0, %v4305
      %v4307 = vpop.f32.mrf.mxu0
      %4308 = vmatprep.mubr.bf16.mxu0 0
      %4309 = vmatmul.mubr.bf16.gmra.mxu0 %v4171
      %v4310 = vpop.f32.mrf.mxu0
      %v4311 = vadd.f32 0.0, %v4310
      %v4312 = vpop.f32.mrf.mxu0
      %v4313 = vpop.f32.mrf.mxu0
      %v4314 = vadd.f32 0.0, %v4313
      %v4315 = vpop.f32.mrf.mxu0
      %4316 = vmatprep.mubr.bf16.mxu0 0
      %4317 = vmatmul.mubr.bf16.gmra.mxu0 %v4174
      %v4318 = vpop.f32.mrf.mxu0
      %v4319 = vadd.f32 0.0, %v4318
      %v4320 = vpop.f32.mrf.mxu0
      %v4321 = vpop.f32.mrf.mxu0
      %v4322 = vadd.f32 0.0, %v4321
      %v4323 = vpop.f32.mrf.mxu0
      %4324 = vmatprep.mubr.bf16.mxu0 0
      %4325 = vmatmul.mubr.bf16.gmra.mxu0 %v4177
      %v4326 = vpop.f32.mrf.mxu0
      %v4327 = vadd.f32 0.0, %v4326
      %v4328 = vpop.f32.mrf.mxu0
      %v4329 = vpop.f32.mrf.mxu0
      %v4330 = vadd.f32 0.0, %v4329
      %v4331 = vpop.f32.mrf.mxu0
      %4332 = vmatprep.mubr.bf16.mxu0 0
      %4333 = vmatmul.mubr.bf16.gmra.mxu0 %v4180
      %v4334 = vpop.f32.mrf.mxu0
      %v4335 = vadd.f32 0.0, %v4334
      %v4336 = vpop.f32.mrf.mxu0
      %v4337 = vpop.f32.mrf.mxu0
      %v4338 = vadd.f32 0.0, %v4337
      %v4339 = vpop.f32.mrf.mxu0
      %4340 = vmatprep.mubr.bf16.mxu0 0
      %4341 = vmatmul.mubr.bf16.gmra.mxu0 %v4183
      %v4342 = vpop.f32.mrf.mxu0
      %v4343 = vadd.f32 0.0, %v4342
      %v4344 = vpop.f32.mrf.mxu0
      %v4345 = vpop.f32.mrf.mxu0
      %v4346 = vadd.f32 0.0, %v4345
      %v4347 = vpop.f32.mrf.mxu0
      %4348 = vdwg.mxu0
      %v4349 = vadd.f32 %v3894, %v4223
      %v4350 = vadd.f32 %v3897, %v4226
      %v4351 = vadd.f32 %v3902, %v4231
      %v4352 = vadd.f32 %v3905, %v4234
      %v4353 = vadd.f32 %v3910, %v4239
      %v4354 = vadd.f32 %v3913, %v4242
      %v4355 = vadd.f32 %v3918, %v4247
      %v4356 = vadd.f32 %v3921, %v4250
      %v4357 = vadd.f32 %v3926, %v4255
      %v4358 = vadd.f32 %v3929, %v4258
      %v4359 = vadd.f32 %v3934, %v4263
      %v4360 = vadd.f32 %v3937, %v4266
      %v4361 = vadd.f32 %v3942, %v4271
      %v4362 = vadd.f32 %v3945, %v4274
      %v4363 = vadd.f32 %v3950, %v4279
      %v4364 = vadd.f32 %v3953, %v4282
      %v4365 = vadd.f32 %v3958, %v4287
      %v4366 = vadd.f32 %v3961, %v4290
      %v4367 = vadd.f32 %v3966, %v4295
      %v4368 = vadd.f32 %v3969, %v4298
      %v4369 = vadd.f32 %v3974, %v4303
      %v4370 = vadd.f32 %v3977, %v4306
      %v4371 = vadd.f32 %v3982, %v4311
      %v4372 = vadd.f32 %v3985, %v4314
      %v4373 = vadd.f32 %v3990, %v4319
      %v4374 = vadd.f32 %v3993, %v4322
      %v4375 = vadd.f32 %v3998, %v4327
      %v4376 = vadd.f32 %v4001, %v4330
      %v4377 = vadd.f32 %v4006, %v4335
      %v4378 = vadd.f32 %v4009, %v4338
      %v4379 = vadd.f32 %v4014, %v4343
      %v4380 = vadd.f32 %v4017, %v4346
      %v4381 = vsel %vm977, %v4349, 0.0
      %v4382 = vsel %vm977, %v4350, 0.0
      %v4383 = vadd.f32 %v4381, %v4382
      %v4384 = vsel %vm977, %v4351, 0.0
      %v4385 = vadd.f32 %v4383, %v4384
      %v4386 = vsel %vm977, %v4352, 0.0
      %v4387 = vadd.f32 %v4385, %v4386
      %v4388 = vsel %vm977, %v4353, 0.0
      %v4389 = vadd.f32 %v4387, %v4388
      %v4390 = vsel %vm977, %v4354, 0.0
      %v4391 = vadd.f32 %v4389, %v4390
      %v4392 = vsel %vm977, %v4355, 0.0
      %v4393 = vadd.f32 %v4391, %v4392
      %v4394 = vsel %vm977, %v4356, 0.0
      %v4395 = vadd.f32 %v4393, %v4394
      %v4396 = vsel %vm977, %v4357, 0.0
      %v4397 = vadd.f32 %v4395, %v4396
      %v4398 = vsel %vm977, %v4358, 0.0
      %v4399 = vadd.f32 %v4397, %v4398
      %v4400 = vsel %vm977, %v4359, 0.0
      %v4401 = vadd.f32 %v4399, %v4400
      %v4402 = vsel %vm977, %v4360, 0.0
      %v4403 = vadd.f32 %v4401, %v4402
      %v4404 = vsel %vm977, %v4361, 0.0
      %v4405 = vadd.f32 %v4403, %v4404
      %v4406 = vsel %vm977, %v4362, 0.0
      %v4407 = vadd.f32 %v4405, %v4406
      %v4408 = vsel %vm977, %v4363, 0.0
      %v4409 = vadd.f32 %v4407, %v4408
      %v4410 = vsel %vm977, %v4364, 0.0
      %v4411 = vadd.f32 %v4409, %v4410
      %v4412 = vsel %vm977, %v4365, 0.0
      %v4413 = vadd.f32 %v4411, %v4412
      %v4414 = vsel %vm977, %v4366, 0.0
      %v4415 = vadd.f32 %v4413, %v4414
      %v4416 = vsel %vm977, %v4367, 0.0
      %v4417 = vadd.f32 %v4415, %v4416
      %v4418 = vsel %vm977, %v4368, 0.0
      %v4419 = vadd.f32 %v4417, %v4418
      %v4420 = vsel %vm977, %v4369, 0.0
      %v4421 = vadd.f32 %v4419, %v4420
      %v4422 = vsel %vm977, %v4370, 0.0
      %v4423 = vadd.f32 %v4421, %v4422
      %v4424 = vsel %vm977, %v4371, 0.0
      %v4425 = vadd.f32 %v4423, %v4424
      %v4426 = vsel %vm977, %v4372, 0.0
      %v4427 = vadd.f32 %v4425, %v4426
      %v4428 = vsel %vm977, %v4373, 0.0
      %v4429 = vadd.f32 %v4427, %v4428
      %v4430 = vsel %vm977, %v4374, 0.0
      %v4431 = vadd.f32 %v4429, %v4430
      %v4432 = vsel %vm977, %v4375, 0.0
      %v4433 = vadd.f32 %v4431, %v4432
      %v4434 = vsel %vm977, %v4376, 0.0
      %v4435 = vadd.f32 %v4433, %v4434
      %v4436 = vsel %vm977, %v4377, 0.0
      %v4437 = vadd.f32 %v4435, %v4436
      %v4438 = vsel %vm977, %v4378, 0.0
      %v4439 = vadd.f32 %v4437, %v4438
      %v4440 = vsel %vm977, %v4379, 0.0
      %v4441 = vadd.f32 %v4439, %v4440
      %v4442 = vsel %vm977, %v4380, 0.0
      %v4443 = vadd.f32 %v4441, %v4442
      %v4444 = vrot.slane %v4443, 4
      %v4445 = vadd.f32 %v4443, %v4444
      %v4446 = vrot.slane %v4445, 2
      %v4447 = vadd.f32 %v4445, %v4446
      %v4448 = vrot.slane %v4447, 1
      %v4449 = vadd.f32 %v4447, %v4448
      %v4450 = vadd.f32 %v4449, 0.0
      %v4451 = vmul.f32 %v4349, %v4349
      %v4452 = vmul.f32 %v4350, %v4350
      %v4453 = vmul.f32 %v4351, %v4351
      %v4454 = vmul.f32 %v4352, %v4352
      %v4455 = vmul.f32 %v4353, %v4353
      %v4456 = vmul.f32 %v4354, %v4354
      %v4457 = vmul.f32 %v4355, %v4355
      %v4458 = vmul.f32 %v4356, %v4356
      %v4459 = vmul.f32 %v4357, %v4357
      %v4460 = vmul.f32 %v4358, %v4358
      %v4461 = vmul.f32 %v4359, %v4359
      %v4462 = vmul.f32 %v4360, %v4360
      %v4463 = vmul.f32 %v4361, %v4361
      %v4464 = vmul.f32 %v4362, %v4362
      %v4465 = vmul.f32 %v4363, %v4363
      %v4466 = vmul.f32 %v4364, %v4364
      %v4467 = vmul.f32 %v4365, %v4365
      %v4468 = vmul.f32 %v4366, %v4366
      %v4469 = vmul.f32 %v4367, %v4367
      %v4470 = vmul.f32 %v4368, %v4368
      %v4471 = vmul.f32 %v4369, %v4369
      %v4472 = vmul.f32 %v4370, %v4370
      %v4473 = vmul.f32 %v4371, %v4371
      %v4474 = vmul.f32 %v4372, %v4372
      %v4475 = vmul.f32 %v4373, %v4373
      %v4476 = vmul.f32 %v4374, %v4374
      %v4477 = vmul.f32 %v4375, %v4375
      %v4478 = vmul.f32 %v4376, %v4376
      %v4479 = vmul.f32 %v4377, %v4377
      %v4480 = vmul.f32 %v4378, %v4378
      %v4481 = vmul.f32 %v4379, %v4379
      %v4482 = vmul.f32 %v4380, %v4380
      %v4483 = vsel %vm977, %v4451, 0.0
      %v4484 = vsel %vm977, %v4452, 0.0
      %v4485 = vadd.f32 %v4483, %v4484
      %v4486 = vsel %vm977, %v4453, 0.0
      %v4487 = vadd.f32 %v4485, %v4486
      %v4488 = vsel %vm977, %v4454, 0.0
      %v4489 = vadd.f32 %v4487, %v4488
      %v4490 = vsel %vm977, %v4455, 0.0
      %v4491 = vadd.f32 %v4489, %v4490
      %v4492 = vsel %vm977, %v4456, 0.0
      %v4493 = vadd.f32 %v4491, %v4492
      %v4494 = vsel %vm977, %v4457, 0.0
      %v4495 = vadd.f32 %v4493, %v4494
      %v4496 = vsel %vm977, %v4458, 0.0
      %v4497 = vadd.f32 %v4495, %v4496
      %v4498 = vsel %vm977, %v4459, 0.0
      %v4499 = vadd.f32 %v4497, %v4498
      %v4500 = vsel %vm977, %v4460, 0.0
      %v4501 = vadd.f32 %v4499, %v4500
      %v4502 = vsel %vm977, %v4461, 0.0
      %v4503 = vadd.f32 %v4501, %v4502
      %v4504 = vsel %vm977, %v4462, 0.0
      %v4505 = vadd.f32 %v4503, %v4504
      %v4506 = vsel %vm977, %v4463, 0.0
      %v4507 = vadd.f32 %v4505, %v4506
      %v4508 = vsel %vm977, %v4464, 0.0
      %v4509 = vadd.f32 %v4507, %v4508
      %v4510 = vsel %vm977, %v4465, 0.0
      %v4511 = vadd.f32 %v4509, %v4510
      %v4512 = vsel %vm977, %v4466, 0.0
      %v4513 = vadd.f32 %v4511, %v4512
      %v4514 = vsel %vm977, %v4467, 0.0
      %v4515 = vadd.f32 %v4513, %v4514
      %v4516 = vsel %vm977, %v4468, 0.0
      %v4517 = vadd.f32 %v4515, %v4516
      %v4518 = vsel %vm977, %v4469, 0.0
      %v4519 = vadd.f32 %v4517, %v4518
      %v4520 = vsel %vm977, %v4470, 0.0
      %v4521 = vadd.f32 %v4519, %v4520
      %v4522 = vsel %vm977, %v4471, 0.0
      %v4523 = vadd.f32 %v4521, %v4522
      %v4524 = vsel %vm977, %v4472, 0.0
      %v4525 = vadd.f32 %v4523, %v4524
      %v4526 = vsel %vm977, %v4473, 0.0
      %v4527 = vadd.f32 %v4525, %v4526
      %v4528 = vsel %vm977, %v4474, 0.0
      %v4529 = vadd.f32 %v4527, %v4528
      %v4530 = vsel %vm977, %v4475, 0.0
      %v4531 = vadd.f32 %v4529, %v4530
      %v4532 = vsel %vm977, %v4476, 0.0
      %v4533 = vadd.f32 %v4531, %v4532
      %v4534 = vsel %vm977, %v4477, 0.0
      %v4535 = vadd.f32 %v4533, %v4534
      %v4536 = vsel %vm977, %v4478, 0.0
      %v4537 = vadd.f32 %v4535, %v4536
      %v4538 = vsel %vm977, %v4479, 0.0
      %v4539 = vadd.f32 %v4537, %v4538
      %v4540 = vsel %vm977, %v4480, 0.0
      %v4541 = vadd.f32 %v4539, %v4540
      %v4542 = vsel %vm977, %v4481, 0.0
      %v4543 = vadd.f32 %v4541, %v4542
      %v4544 = vsel %vm977, %v4482, 0.0
      %v4545 = vadd.f32 %v4543, %v4544
      %v4546 = vrot.slane %v4545, 4
      %v4547 = vadd.f32 %v4545, %v4546
      %v4548 = vrot.slane %v4547, 2
      %v4549 = vadd.f32 %v4547, %v4548
      %v4550 = vrot.slane %v4549, 1
      %v4551 = vadd.f32 %v4549, %v4550
      %v4552 = vadd.f32 %v4551, 0.0
      %4553 = vst.msk [vmem:[#allocation3] sm:$0xff] %vm977, %v4349
      %4554 = vst.msk [vmem:[#allocation3 + $0x8] sm:$0xff] %vm977, %v4350
      %4555 = vst.msk [vmem:[#allocation3 + $0x10] sm:$0xff] %vm977, %v4351
      %4556 = vst.msk [vmem:[#allocation3 + $0x18] sm:$0xff] %vm977, %v4352
      %4557 = vst.msk [vmem:[#allocation3 + $0x20] sm:$0xff] %vm977, %v4353
      %4558 = vst.msk [vmem:[#allocation3 + $0x28] sm:$0xff] %vm977, %v4354
      %4559 = vst.msk [vmem:[#allocation3 + $0x30] sm:$0xff] %vm977, %v4355
      %4560 = vst.msk [vmem:[#allocation3 + $0x38] sm:$0xff] %vm977, %v4356
      %4561 = vst.msk [vmem:[#allocation3 + $0x40] sm:$0xff] %vm977, %v4357
      %4562 = vst.msk [vmem:[#allocation3 + $0x48] sm:$0xff] %vm977, %v4358
      %4563 = vst.msk [vmem:[#allocation3 + $0x50] sm:$0xff] %vm977, %v4359
      %4564 = vst.msk [vmem:[#allocation3 + $0x58] sm:$0xff] %vm977, %v4360
      %4565 = vst.msk [vmem:[#allocation3 + $0x60] sm:$0xff] %vm977, %v4361
      %4566 = vst.msk [vmem:[#allocation3 + $0x68] sm:$0xff] %vm977, %v4362
      %4567 = vst.msk [vmem:[#allocation3 + $0x70] sm:$0xff] %vm977, %v4363
      %4568 = vst.msk [vmem:[#allocation3 + $0x78] sm:$0xff] %vm977, %v4364
      %4569 = vst.msk [vmem:[#allocation3 + $0x80] sm:$0xff] %vm977, %v4365
      %4570 = vst.msk [vmem:[#allocation3 + $0x88] sm:$0xff] %vm977, %v4366
      %4571 = vst.msk [vmem:[#allocation3 + $0x90] sm:$0xff] %vm977, %v4367
      %4572 = vst.msk [vmem:[#allocation3 + $0x98] sm:$0xff] %vm977, %v4368
      %4573 = vst.msk [vmem:[#allocation3 + $0xa0] sm:$0xff] %vm977, %v4369
      %4574 = vst.msk [vmem:[#allocation3 + $0xa8] sm:$0xff] %vm977, %v4370
      %4575 = vst.msk [vmem:[#allocation3 + $0xb0] sm:$0xff] %vm977, %v4371
      %4576 = vst.msk [vmem:[#allocation3 + $0xb8] sm:$0xff] %vm977, %v4372
      %4577 = vst.msk [vmem:[#allocation3 + $0xc0] sm:$0xff] %vm977, %v4373
      %4578 = vst.msk [vmem:[#allocation3 + $0xc8] sm:$0xff] %vm977, %v4374
      %4579 = vst.msk [vmem:[#allocation3 + $0xd0] sm:$0xff] %vm977, %v4375
      %4580 = vst.msk [vmem:[#allocation3 + $0xd8] sm:$0xff] %vm977, %v4376
      %4581 = vst.msk [vmem:[#allocation3 + $0xe0] sm:$0xff] %vm977, %v4377
      %4582 = vst.msk [vmem:[#allocation3 + $0xe8] sm:$0xff] %vm977, %v4378
      %4583 = vst.msk [vmem:[#allocation3 + $0xf0] sm:$0xff] %vm977, %v4379
      %4584 = vst.msk [vmem:[#allocation3 + $0xf8] sm:$0xff] %vm977, %v4380
      %v4585 = vmul.f32 %v4450, 0.00390625
      %v4586 = vmul.f32 %v4552, 0.00390625
      %v4587 = vmul.f32 %v4585, %v4585
      %v4588 = vsub.f32 %v4586, %v4587
      %v4589 = vadd.f32 %v4588, 1e-05
      %v4590 = vrsqrt.pop %v4589
      %v4591 = vld [vmem:[#allocation3] sm:$0xff]
      %v4592 = vld [vmem:[#allocation3 + $0x8] sm:$0xff]
      %v4593 = vld [vmem:[#allocation3 + $0x10] sm:$0xff]
      %v4594 = vld [vmem:[#allocation3 + $0x18] sm:$0xff]
      %v4595 = vld [vmem:[#allocation3 + $0x20] sm:$0xff]
      %v4596 = vld [vmem:[#allocation3 + $0x28] sm:$0xff]
      %v4597 = vld [vmem:[#allocation3 + $0x30] sm:$0xff]
      %v4598 = vld [vmem:[#allocation3 + $0x38] sm:$0xff]
      %v4599 = vld [vmem:[#allocation3 + $0x40] sm:$0xff]
      %v4600 = vld [vmem:[#allocation3 + $0x48] sm:$0xff]
      %v4601 = vld [vmem:[#allocation3 + $0x50] sm:$0xff]
      %v4602 = vld [vmem:[#allocation3 + $0x58] sm:$0xff]
      %v4603 = vld [vmem:[#allocation3 + $0x60] sm:$0xff]
      %v4604 = vld [vmem:[#allocation3 + $0x68] sm:$0xff]
      %v4605 = vld [vmem:[#allocation3 + $0x70] sm:$0xff]
      %v4606 = vld [vmem:[#allocation3 + $0x78] sm:$0xff]
      %v4607 = vld [vmem:[#allocation3 + $0x80] sm:$0xff]
      %v4608 = vld [vmem:[#allocation3 + $0x88] sm:$0xff]
      %v4609 = vld [vmem:[#allocation3 + $0x90] sm:$0xff]
      %v4610 = vld [vmem:[#allocation3 + $0x98] sm:$0xff]
      %v4611 = vld [vmem:[#allocation3 + $0xa0] sm:$0xff]
      %v4612 = vld [vmem:[#allocation3 + $0xa8] sm:$0xff]
      %v4613 = vld [vmem:[#allocation3 + $0xb0] sm:$0xff]
      %v4614 = vld [vmem:[#allocation3 + $0xb8] sm:$0xff]
      %v4615 = vld [vmem:[#allocation3 + $0xc0] sm:$0xff]
      %v4616 = vld [vmem:[#allocation3 + $0xc8] sm:$0xff]
      %v4617 = vld [vmem:[#allocation3 + $0xd0] sm:$0xff]
      %v4618 = vld [vmem:[#allocation3 + $0xd8] sm:$0xff]
      %v4619 = vld [vmem:[#allocation3 + $0xe0] sm:$0xff]
      %v4620 = vld [vmem:[#allocation3 + $0xe8] sm:$0xff]
      %v4621 = vld [vmem:[#allocation3 + $0xf0] sm:$0xff]
      %v4622 = vld [vmem:[#allocation3 + $0xf8] sm:$0xff]
      %v4623 = vsub.f32 %v4591, %v4585
      %v4624 = vsub.f32 %v4592, %v4585
      %v4625 = vsub.f32 %v4593, %v4585
      %v4626 = vsub.f32 %v4594, %v4585
      %v4627 = vsub.f32 %v4595, %v4585
      %v4628 = vsub.f32 %v4596, %v4585
      %v4629 = vsub.f32 %v4597, %v4585
      %v4630 = vsub.f32 %v4598, %v4585
      %v4631 = vsub.f32 %v4599, %v4585
      %v4632 = vsub.f32 %v4600, %v4585
      %v4633 = vsub.f32 %v4601, %v4585
      %v4634 = vsub.f32 %v4602, %v4585
      %v4635 = vsub.f32 %v4603, %v4585
      %v4636 = vsub.f32 %v4604, %v4585
      %v4637 = vsub.f32 %v4605, %v4585
      %v4638 = vsub.f32 %v4606, %v4585
      %v4639 = vsub.f32 %v4607, %v4585
      %v4640 = vsub.f32 %v4608, %v4585
      %v4641 = vsub.f32 %v4609, %v4585
      %v4642 = vsub.f32 %v4610, %v4585
      %v4643 = vsub.f32 %v4611, %v4585
      %v4644 = vsub.f32 %v4612, %v4585
      %v4645 = vsub.f32 %v4613, %v4585
      %v4646 = vsub.f32 %v4614, %v4585
      %v4647 = vsub.f32 %v4615, %v4585
      %v4648 = vsub.f32 %v4616, %v4585
      %v4649 = vsub.f32 %v4617, %v4585
      %v4650 = vsub.f32 %v4618, %v4585
      %v4651 = vsub.f32 %v4619, %v4585
      %v4652 = vsub.f32 %v4620, %v4585
      %v4653 = vsub.f32 %v4621, %v4585
      %v4654 = vsub.f32 %v4622, %v4585
      %v4655 = vmul.f32 %v4623, %v4590
      %v4656 = vmul.f32 %v4624, %v4590
      %v4657 = vmul.f32 %v4625, %v4590
      %v4658 = vmul.f32 %v4626, %v4590
      %v4659 = vmul.f32 %v4627, %v4590
      %v4660 = vmul.f32 %v4628, %v4590
      %v4661 = vmul.f32 %v4629, %v4590
      %v4662 = vmul.f32 %v4630, %v4590
      %v4663 = vmul.f32 %v4631, %v4590
      %v4664 = vmul.f32 %v4632, %v4590
      %v4665 = vmul.f32 %v4633, %v4590
      %v4666 = vmul.f32 %v4634, %v4590
      %v4667 = vmul.f32 %v4635, %v4590
      %v4668 = vmul.f32 %v4636, %v4590
      %v4669 = vmul.f32 %v4637, %v4590
      %v4670 = vmul.f32 %v4638, %v4590
      %v4671 = vmul.f32 %v4639, %v4590
      %v4672 = vmul.f32 %v4640, %v4590
      %v4673 = vmul.f32 %v4641, %v4590
      %v4674 = vmul.f32 %v4642, %v4590
      %v4675 = vmul.f32 %v4643, %v4590
      %v4676 = vmul.f32 %v4644, %v4590
      %v4677 = vmul.f32 %v4645, %v4590
      %v4678 = vmul.f32 %v4646, %v4590
      %v4679 = vmul.f32 %v4647, %v4590
      %v4680 = vmul.f32 %v4648, %v4590
      %v4681 = vmul.f32 %v4649, %v4590
      %v4682 = vmul.f32 %v4650, %v4590
      %v4683 = vmul.f32 %v4651, %v4590
      %v4684 = vmul.f32 %v4652, %v4590
      %v4685 = vmul.f32 %v4653, %v4590
      %v4686 = vmul.f32 %v4654, %v4590
      %v4687 = vld [vmem:[%s165] sm:$0xf]
      %v4688 = vld [vmem:[%s165 + $0x4] sm:$0xf]
      %v4689 = vld [vmem:[%s165 + $0x8] sm:$0xf]
      %v4690 = vld [vmem:[%s165 + $0xc] sm:$0xf]
      %v4691 = vld [vmem:[%s165 + $0x10] sm:$0xf]
      %v4692 = vld [vmem:[%s165 + $0x14] sm:$0xf]
      %v4693 = vld [vmem:[%s165 + $0x18] sm:$0xf]
      %v4694 = vld [vmem:[%s165 + $0x1c] sm:$0xf]
      %v4695 = vld [vmem:[%s165 + $0x20] sm:$0xf]
      %v4696 = vld [vmem:[%s165 + $0x24] sm:$0xf]
      %v4697 = vld [vmem:[%s165 + $0x28] sm:$0xf]
      %v4698 = vld [vmem:[%s165 + $0x2c] sm:$0xf]
      %v4699 = vld [vmem:[%s165 + $0x30] sm:$0xf]
      %v4700 = vld [vmem:[%s165 + $0x34] sm:$0xf]
      %v4701 = vld [vmem:[%s165 + $0x38] sm:$0xf]
      %v4702 = vld [vmem:[%s165 + $0x3c] sm:$0xf]
      %v4703 = vld [vmem:[%s165 + $0x40] sm:$0xf]
      %v4704 = vld [vmem:[%s165 + $0x44] sm:$0xf]
      %v4705 = vld [vmem:[%s165 + $0x48] sm:$0xf]
      %v4706 = vld [vmem:[%s165 + $0x4c] sm:$0xf]
      %v4707 = vld [vmem:[%s165 + $0x50] sm:$0xf]
      %v4708 = vld [vmem:[%s165 + $0x54] sm:$0xf]
      %v4709 = vld [vmem:[%s165 + $0x58] sm:$0xf]
      %v4710 = vld [vmem:[%s165 + $0x5c] sm:$0xf]
      %v4711 = vld [vmem:[%s165 + $0x60] sm:$0xf]
      %v4712 = vld [vmem:[%s165 + $0x64] sm:$0xf]
      %v4713 = vld [vmem:[%s165 + $0x68] sm:$0xf]
      %v4714 = vld [vmem:[%s165 + $0x6c] sm:$0xf]
      %v4715 = vld [vmem:[%s165 + $0x70] sm:$0xf]
      %v4716 = vld [vmem:[%s165 + $0x74] sm:$0xf]
      %v4717 = vld [vmem:[%s165 + $0x78] sm:$0xf]
      %v4718 = vld [vmem:[%s165 + $0x7c] sm:$0xf]
      %v4719 = vunpack.c.l.bf16 %v4687
      %v4720 = vunpack.c.l.bf16 %v4688
      %v4721 = vunpack.c.l.bf16 %v4689
      %v4722 = vunpack.c.l.bf16 %v4690
      %v4723 = vunpack.c.l.bf16 %v4691
      %v4724 = vunpack.c.l.bf16 %v4692
      %v4725 = vunpack.c.l.bf16 %v4693
      %v4726 = vunpack.c.l.bf16 %v4694
      %v4727 = vunpack.c.l.bf16 %v4695
      %v4728 = vunpack.c.l.bf16 %v4696
      %v4729 = vunpack.c.l.bf16 %v4697
      %v4730 = vunpack.c.l.bf16 %v4698
      %v4731 = vunpack.c.l.bf16 %v4699
      %v4732 = vunpack.c.l.bf16 %v4700
      %v4733 = vunpack.c.l.bf16 %v4701
      %v4734 = vunpack.c.l.bf16 %v4702
      %v4735 = vunpack.c.l.bf16 %v4703
      %v4736 = vunpack.c.l.bf16 %v4704
      %v4737 = vunpack.c.l.bf16 %v4705
      %v4738 = vunpack.c.l.bf16 %v4706
      %v4739 = vunpack.c.l.bf16 %v4707
      %v4740 = vunpack.c.l.bf16 %v4708
      %v4741 = vunpack.c.l.bf16 %v4709
      %v4742 = vunpack.c.l.bf16 %v4710
      %v4743 = vunpack.c.l.bf16 %v4711
      %v4744 = vunpack.c.l.bf16 %v4712
      %v4745 = vunpack.c.l.bf16 %v4713
      %v4746 = vunpack.c.l.bf16 %v4714
      %v4747 = vunpack.c.l.bf16 %v4715
      %v4748 = vunpack.c.l.bf16 %v4716
      %v4749 = vunpack.c.l.bf16 %v4717
      %v4750 = vunpack.c.l.bf16 %v4718
      %v4751 = vadd.f32 %v4719, %v4655
      %v4752 = vadd.f32 %v4720, %v4656
      %v4753 = vadd.f32 %v4721, %v4657
      %v4754 = vadd.f32 %v4722, %v4658
      %v4755 = vadd.f32 %v4723, %v4659
      %v4756 = vadd.f32 %v4724, %v4660
      %v4757 = vadd.f32 %v4725, %v4661
      %v4758 = vadd.f32 %v4726, %v4662
      %v4759 = vadd.f32 %v4727, %v4663
      %v4760 = vadd.f32 %v4728, %v4664
      %v4761 = vadd.f32 %v4729, %v4665
      %v4762 = vadd.f32 %v4730, %v4666
      %v4763 = vadd.f32 %v4731, %v4667
      %v4764 = vadd.f32 %v4732, %v4668
      %v4765 = vadd.f32 %v4733, %v4669
      %v4766 = vadd.f32 %v4734, %v4670
      %v4767 = vadd.f32 %v4735, %v4671
      %v4768 = vadd.f32 %v4736, %v4672
      %v4769 = vadd.f32 %v4737, %v4673
      %v4770 = vadd.f32 %v4738, %v4674
      %v4771 = vadd.f32 %v4739, %v4675
      %v4772 = vadd.f32 %v4740, %v4676
      %v4773 = vadd.f32 %v4741, %v4677
      %v4774 = vadd.f32 %v4742, %v4678
      %v4775 = vadd.f32 %v4743, %v4679
      %v4776 = vadd.f32 %v4744, %v4680
      %v4777 = vadd.f32 %v4745, %v4681
      %v4778 = vadd.f32 %v4746, %v4682
      %v4779 = vadd.f32 %v4747, %v4683
      %v4780 = vadd.f32 %v4748, %v4684
      %v4781 = vadd.f32 %v4749, %v4685
      %v4782 = vadd.f32 %v4750, %v4686
      %v4783 = vpack.c.bf16 %v4752, %v4751
      %v4784 = vpack.c.bf16 %v4754, %v4753
      %v4785 = vpack.c.bf16 %v4756, %v4755
      %v4786 = vpack.c.bf16 %v4758, %v4757
      %v4787 = vpack.c.bf16 %v4760, %v4759
      %v4788 = vpack.c.bf16 %v4762, %v4761
      %v4789 = vpack.c.bf16 %v4764, %v4763
      %v4790 = vpack.c.bf16 %v4766, %v4765
      %v4791 = vpack.c.bf16 %v4768, %v4767
      %v4792 = vpack.c.bf16 %v4770, %v4769
      %v4793 = vpack.c.bf16 %v4772, %v4771
      %v4794 = vpack.c.bf16 %v4774, %v4773
      %v4795 = vpack.c.bf16 %v4776, %v4775
      %v4796 = vpack.c.bf16 %v4778, %v4777
      %v4797 = vpack.c.bf16 %v4780, %v4779
      %v4798 = vpack.c.bf16 %v4782, %v4781
      %v4815 = vunpack.c.l.b16 %v4783
      %v4816 = vunpack.c.h.b16 %v4783
      %v4817 = vunpack.c.l.b16 %v4784
      %v4818 = vunpack.c.h.b16 %v4784
      %v4819 = vunpack.c.l.b16 %v4785
      %v4820 = vunpack.c.h.b16 %v4785
      %v4821 = vunpack.c.l.b16 %v4786
      %v4822 = vunpack.c.h.b16 %v4786
      %v4823 = vunpack.c.l.b16 %v4787
      %v4824 = vunpack.c.h.b16 %v4787
      %v4825 = vunpack.c.l.b16 %v4788
      %v4826 = vunpack.c.h.b16 %v4788
      %v4827 = vunpack.c.l.b16 %v4789
      %v4828 = vunpack.c.h.b16 %v4789
      %v4829 = vunpack.c.l.b16 %v4790
      %v4830 = vunpack.c.h.b16 %v4790
      %v4831 = vunpack.c.l.b16 %v4791
      %v4832 = vunpack.c.h.b16 %v4791
      %v4833 = vunpack.c.l.b16 %v4792
      %v4834 = vunpack.c.h.b16 %v4792
      %v4835 = vunpack.c.l.b16 %v4793
      %v4836 = vunpack.c.h.b16 %v4793
      %v4837 = vunpack.c.l.b16 %v4794
      %v4838 = vunpack.c.h.b16 %v4794
      %v4839 = vunpack.c.l.b16 %v4795
      %v4840 = vunpack.c.h.b16 %v4795
      %v4841 = vunpack.c.l.b16 %v4796
      %v4842 = vunpack.c.h.b16 %v4796
      %v4843 = vunpack.c.l.b16 %v4797
      %v4844 = vunpack.c.h.b16 %v4797
      %v4845 = vunpack.c.l.b16 %v4798
      %v4846 = vunpack.c.h.b16 %v4798
      %v4847 = vpack.c.b16 %v4815, %v4815
      %v4848 = vpack.c.b16 %v4816, %v4816
      %v4849 = vpack.c.b16 %v4817, %v4817
      %v4850 = vpack.c.b16 %v4818, %v4818
      %v4851 = vpack.c.b16 %v4819, %v4819
      %v4852 = vpack.c.b16 %v4820, %v4820
      %v4853 = vpack.c.b16 %v4821, %v4821
      %v4854 = vpack.c.b16 %v4822, %v4822
      %v4855 = vpack.c.b16 %v4823, %v4823
      %v4856 = vpack.c.b16 %v4824, %v4824
      %v4857 = vpack.c.b16 %v4825, %v4825
      %v4858 = vpack.c.b16 %v4826, %v4826
      %v4859 = vpack.c.b16 %v4827, %v4827
      %v4860 = vpack.c.b16 %v4828, %v4828
      %v4861 = vpack.c.b16 %v4829, %v4829
      %v4862 = vpack.c.b16 %v4830, %v4830
      %v4863 = vpack.c.b16 %v4831, %v4831
      %v4864 = vpack.c.b16 %v4832, %v4832
      %v4865 = vpack.c.b16 %v4833, %v4833
      %v4866 = vpack.c.b16 %v4834, %v4834
      %v4867 = vpack.c.b16 %v4835, %v4835
      %v4868 = vpack.c.b16 %v4836, %v4836
      %v4869 = vpack.c.b16 %v4837, %v4837
      %v4870 = vpack.c.b16 %v4838, %v4838
      %v4871 = vpack.c.b16 %v4839, %v4839
      %v4872 = vpack.c.b16 %v4840, %v4840
      %v4873 = vpack.c.b16 %v4841, %v4841
      %v4874 = vpack.c.b16 %v4842, %v4842
      %v4875 = vpack.c.b16 %v4843, %v4843
      %v4876 = vpack.c.b16 %v4844, %v4844
      %v4877 = vpack.c.b16 %v4845, %v4845
      %v4878 = vpack.c.b16 %v4846, %v4846
      %vm4911 = vcmask 27648
      %4912 = vst.msk [vmem:[%s170] sm:$0xf] %vm4911, %v4847
      %4913 = vst.msk [vmem:[%s170 + $0x4] sm:$0xf] %vm4911, %v4848
      %4914 = vst.msk [vmem:[%s170 + $0x8] sm:$0xf] %vm4911, %v4849
      %4915 = vst.msk [vmem:[%s170 + $0xc] sm:$0xf] %vm4911, %v4850
      %4916 = vst.msk [vmem:[%s170 + $0x10] sm:$0xf] %vm4911, %v4851
      %4917 = vst.msk [vmem:[%s170 + $0x14] sm:$0xf] %vm4911, %v4852
      %4918 = vst.msk [vmem:[%s170 + $0x18] sm:$0xf] %vm4911, %v4853
      %4919 = vst.msk [vmem:[%s170 + $0x1c] sm:$0xf] %vm4911, %v4854
      %4920 = vst.msk [vmem:[%s170 + $0x20] sm:$0xf] %vm4911, %v4855
      %4921 = vst.msk [vmem:[%s170 + $0x24] sm:$0xf] %vm4911, %v4856
      %4922 = vst.msk [vmem:[%s170 + $0x28] sm:$0xf] %vm4911, %v4857
      %4923 = vst.msk [vmem:[%s170 + $0x2c] sm:$0xf] %vm4911, %v4858
      %4924 = vst.msk [vmem:[%s170 + $0x30] sm:$0xf] %vm4911, %v4859
      %4925 = vst.msk [vmem:[%s170 + $0x34] sm:$0xf] %vm4911, %v4860
      %4926 = vst.msk [vmem:[%s170 + $0x38] sm:$0xf] %vm4911, %v4861
      %4927 = vst.msk [vmem:[%s170 + $0x3c] sm:$0xf] %vm4911, %v4862
      %4928 = vst.msk [vmem:[%s170 + $0x40] sm:$0xf] %vm4911, %v4863
      %4929 = vst.msk [vmem:[%s170 + $0x44] sm:$0xf] %vm4911, %v4864
      %4930 = vst.msk [vmem:[%s170 + $0x48] sm:$0xf] %vm4911, %v4865
      %4931 = vst.msk [vmem:[%s170 + $0x4c] sm:$0xf] %vm4911, %v4866
      %4932 = vst.msk [vmem:[%s170 + $0x50] sm:$0xf] %vm4911, %v4867
      %4933 = vst.msk [vmem:[%s170 + $0x54] sm:$0xf] %vm4911, %v4868
      %4934 = vst.msk [vmem:[%s170 + $0x58] sm:$0xf] %vm4911, %v4869
      %4935 = vst.msk [vmem:[%s170 + $0x5c] sm:$0xf] %vm4911, %v4870
      %4936 = vst.msk [vmem:[%s170 + $0x60] sm:$0xf] %vm4911, %v4871
      %4937 = vst.msk [vmem:[%s170 + $0x64] sm:$0xf] %vm4911, %v4872
      %4938 = vst.msk [vmem:[%s170 + $0x68] sm:$0xf] %vm4911, %v4873
      %4939 = vst.msk [vmem:[%s170 + $0x6c] sm:$0xf] %vm4911, %v4874
      %4940 = vst.msk [vmem:[%s170 + $0x70] sm:$0xf] %vm4911, %v4875
      %4941 = vst.msk [vmem:[%s170 + $0x74] sm:$0xf] %vm4911, %v4876
      %4942 = vst.msk [vmem:[%s170 + $0x78] sm:$0xf] %vm4911, %v4877
      %4943 = vst.msk [vmem:[%s170 + $0x7c] sm:$0xf] %vm4911, %v4878
      %p4944 = scmp.lt.s32.totalorder %s14, 1
      %s4945 = scalar_select %p4944, %s14, 1
      %s4946 = smul.addr %s4945, 32
      %s4947 = smul.addr %s4946, 4
      %s4948 = scalar_lea.vmem %s3, %s4947
      // Predicated region
      $region33: #{resnet_blocks_forward.2} parent=31 // pred_check
        %p4949 = pneg %p100
      $region34: #{resnet_blocks_forward.2} parent=31 // pred_check_branch
        %4951 = sbr.rel (%p4949) target = $region36
      $region35: #{resnet_blocks_forward.2} parent=31 // pred_region
        _
      $region36: #{resnet_blocks_forward.2} parent=31 // pred_fallthru
        _
    $region32: #{resnet_blocks_forward.2} parent=5 // pred_fallthru
      _
    %p4952 = scmp.le.s32.totalorder 2, %s9
    // Predicated region
    $region37: #{resnet_blocks_forward.2} parent=5 // pred_check
      %p4953 = pneg %p4952
    $region38: #{resnet_blocks_forward.2} parent=5 // pred_check_branch
      %4955 = sbr.rel (%p4953) target = $region40
    $region39: #{resnet_blocks_forward.2} parent=5 // pred_region
      %s4956 = ssub.s32 %s9, 2
      // Predicated region
      $region41: #{resnet_blocks_forward.2} parent=39 // pred_check
        %p4957 = pneg %p106
      $region42: #{resnet_blocks_forward.2} parent=39 // pred_check_branch
        %4959 = sbr.rel (%p4957) target = $region44
      $region43: #{resnet_blocks_forward.2} parent=39 // pred_region
        %p4960 = scmp.lt.s32.totalorder %s15, 1
        %s4961 = scalar_select %p4960, %s15, 1
        %s4962 = smul.addr %s4961, 32
        %s4963 = smul.addr %s4962, 4
        %s4964 = scalar_lea.vmem %s3, %s4963
      $region44: #{resnet_blocks_forward.2} parent=39 // pred_fallthru
        _
    $region40: #{resnet_blocks_forward.2} parent=5 // pred_fallthru
      _
  $region6: #{resnet_blocks_forward.2} parent=0 // loop_footer
    %s13 = sadd.s32 1, %s9
  $region7: #{resnet_blocks_forward.2} parent=0 // loop_footer_branch
    %8 = sbr.rel target = $region3
  $region8: #{resnet_blocks_forward.2} parent=0 // loop_exit
    _

</llo_original>
